<compile_context>
chip_gen: v7x
topology: tpu7x:2x2x1
jax: 0.10.0
libtpu: 0.0.40
codegen_flags: <defaults>
</compile_context>

<pallas_src>
import jax
import jax.numpy as jnp
from jax.experimental import pallas as pl
from jax.experimental.pallas import tpu as pltpu

EPS = 1e-5
LANE = 128
HPAD = 128   # fc1 hidden width (64) padded to a full lane tile
C3 = 256     # conv3 output channels (fixed by the module)


# ----------------------------------------------------------------------------
# Fused kernel: (conv+BN+ReLU+pool) x3  ->  flatten  ->  fc1+ReLU  ->  fc2
# ----------------------------------------------------------------------------
def _make_fused_kernel(TB, T, Cin):
    T1, T2, T3 = T // 2, T // 4, T // 8

    def conv_relu_pool(a, w_prev, w_curr, w_next, shift, t_len):
        # a: (TB*t_len, c_in), row index = b*t_len + t (batch folded into M).
        rows, c_in = a.shape
        c_out = w_curr.shape[1]
        # Time index within each sample, broadcast over input lanes (VPU, cheap).
        t_idx = jax.lax.broadcasted_iota(jnp.int32, (rows, c_in), 0) % t_len
        # x[t-1] / x[t+1] via whole-slab sublane rolls (XLU) + boundary masks that
        # re-impose the zero time-padding and stop rows leaking across samples.
        a_prev = jnp.where(t_idx == 0, 0.0, pltpu.roll(a, 1, 0))
        a_next = jnp.where(t_idx == t_len - 1, 0.0, pltpu.roll(a, rows - 1, 0))
        y = (jnp.dot(a_prev, w_prev, preferred_element_type=jnp.float32)
             + jnp.dot(a, w_curr, preferred_element_type=jnp.float32)
             + jnp.dot(a_next, w_next, preferred_element_type=jnp.float32))
        y = jnp.maximum(y + shift, 0.0)          # folded bias/BN + ReLU
        # MaxPool1d(kernel=2): pairs (2i, 2i+1) never cross a sample boundary.
        return jnp.max(y.reshape(rows // 2, 2, c_out), axis=1)

    def kernel(x_ref,
               w10, w11, w12, s1,
               w20, w21, w22, s2,
               w30, w31, w32, s3,
               wf1, bf1, wf2, bf2,
               out_ref):
        y = conv_relu_pool(x_ref[...], w10[...], w11[...], w12[...], s1[...], T)   # (TB*T1, 64)
        y = conv_relu_pool(y, w20[...], w21[...], w22[...], s2[...], T1)           # (TB*T2, 128)
        y = conv_relu_pool(y, w30[...], w31[...], w32[...], s3[...], T2)           # (TB*T3, 256)

        # Dropout(0.2) is identity in eval; the time-mask is folded into wf1.
        # Row index of y is b*T3 + t, so this reshape == the (t, c) flatten.
        flat = y.reshape(TB, T3 * C3)

        h = jnp.dot(flat, wf1[...], preferred_element_type=jnp.float32)
        h = jnp.maximum(h + bf1[...], 0.0)                                          # fc1 + ReLU
        out = jnp.dot(h, wf2[...], preferred_element_type=jnp.float32) + bf2[...]   # fc2 (lane-padded)
        out_ref[0] = out.astype(out_ref.dtype)

    return kernel


def cnn_forward(x, prep, num_classes, tb=1):
    """x: (B, window_size, input_features) -> (B, num_classes)."""
    B, T, Cin = x.shape
    assert T % 8 == 0, "window_size must be a multiple of 8 (three MaxPool(2) stages)"
    assert B % tb == 0, "batch must be divisible by the batch tile"
    T1, T2, T3 = T // 2, T // 4, T // 8
    G = B // tb

    x2d = x.reshape(B * T, Cin)                  # fold batch into the matmul M dim
    weights = (prep["w1_0"], prep["w1_1"], prep["w1_2"], prep["s1"],
               prep["w2_0"], prep["w2_1"], prep["w2_2"], prep["s2"],
               prep["w3_0"], prep["w3_1"], prep["w3_2"], prep["s3"],
               prep["wf1"], prep["bf1"], prep["wf2"], prep["bf2"])

    in_specs = [pl.BlockSpec((tb * T, Cin), lambda i: (i, 0))]          # x: tiled over batch
    in_specs += [pl.BlockSpec(w.shape, lambda i: (0, 0)) for w in weights]  # weights: resident
    # 3-D output block so the last two block dims always equal the array dims.
    out_spec = pl.BlockSpec((1, tb, LANE), lambda i: (i, 0, 0))

    flops = 2 * B * (3 * T * Cin * 64 + 3 * T1 * 64 * 128 + 3 * T2 * 128 * 256
                     + T3 * C3 * HPAD + HPAD * LANE)
    bytes_accessed = 4 * (x2d.size + sum(int(w.size) for w in weights) + B * LANE)

    out = pl.pallas_call(
        _make_fused_kernel(tb, T, Cin),
        out_shape=jax.ShapeDtypeStruct((G, tb, LANE), jnp.float32),
        grid_spec=pltpu.PrefetchScalarGridSpec(
            num_scalar_prefetch=0,
            grid=(G,),
            in_specs=in_specs,
            out_specs=out_spec),
        compiler_params=pltpu.CompilerParams(
            dimension_semantics=("parallel",)),
        cost_estimate=pl.CostEstimate(flops=flops, transcendentals=0,
                                      bytes_accessed=bytes_accessed),
    )(x2d, *weights)
    return out.reshape(B, LANE)[:, :num_classes]


# ----------------------------------------------------------------------------
# One-time parameter preparation (all layout plumbing hoisted out of the forward)
# ----------------------------------------------------------------------------
def prepare_params(p, window_size):
    T3 = window_size // 8

    def taps(w, scale=None):
        # PyTorch Conv1d weight (Cout, Cin, 3) -> three (Cin, Cout) tap matrices,
        # optionally scaled along Cout (folded BatchNorm).
        if scale is not None:
            w = w * scale[:, None, None]
        return tuple(w[:, :, k].T for k in range(3))

    # Fold BN (eval) into conv1: y = sum_k shift_k(x)@(W_k*scale) + shift
    scale1 = p["bn1_gamma"] / jnp.sqrt(p["bn1_var"] + EPS)
    w1_0, w1_1, w1_2 = taps(p["conv1_w"], scale1)
    s1 = ((p["conv1_b"] - p["bn1_mean"]) * scale1 + p["bn1_beta"])[None, :]

    w2_0, w2_1, w2_2 = taps(p["conv2_w"])
    s2 = p["conv2_b"][None, :]
    w3_0, w3_1, w3_2 = taps(p["conv3_w"])
    s3 = p["conv3_b"][None, :]

    # Time-weight mask (applied right before flatten in the reference) -> fold into fc1.
    t = jnp.arange(T3, dtype=jnp.float32)
    denom = max(T3 - 60, 1)
    mask = jnp.where(t < 60.0, 1.0, 1.0 + 0.2 * (t - 60.0) / denom)     # (T3,)

    # PyTorch flattens (B, 256, T3) channel-major (idx = c*T3 + t); the kernel flattens
    # (t, c) -> remap fc1 weight rows to t*256 + c, fold the mask, pad hidden 64 -> 128.
    H = p["fc1_w"].shape[0]
    wf1 = jnp.transpose(p["fc1_w"].reshape(H, C3, T3), (2, 1, 0)).reshape(T3 * C3, H)
    wf1 = wf1 * jnp.repeat(mask, C3)[:, None]
    wf1 = jnp.zeros((T3 * C3, HPAD), jnp.float32).at[:, :H].set(wf1)
    bf1 = jnp.zeros((1, HPAD), jnp.float32).at[0, :H].set(p["fc1_b"])

    # fc2 padded to (128, 128) so the kernel's only HBM store is lane-dense.
    ncls = p["fc2_w"].shape[0]
    assert ncls <= LANE
    wf2 = jnp.zeros((HPAD, LANE), jnp.float32).at[:H, :ncls].set(p["fc2_w"].T)
    bf2 = jnp.zeros((1, LANE), jnp.float32).at[0, :ncls].set(p["fc2_b"])

    return {"w1_0": w1_0, "w1_1": w1_1, "w1_2": w1_2, "s1": s1,
            "w2_0": w2_0, "w2_1": w2_1, "w2_2": w2_2, "s2": s2,
            "w3_0": w3_0, "w3_1": w3_1, "w3_2": w3_2, "s3": s3,
            "wf1": wf1, "bf1": bf1, "wf2": wf2, "bf2": bf2}


# ----------------------------------------------------------------------------
# Parameters (deterministic synthetic init, PyTorch-native layouts)
# ----------------------------------------------------------------------------
def init_params(key, num_classes, window_size, input_features):
    ks = jax.random.split(key, 14)

    def nrm(k, shape, scale=0.05):
        return scale * jax.random.normal(k, shape, jnp.float32)

    T3 = window_size // 8
    flat_dim = C3 * T3
    return {
        "conv1_w": nrm(ks[0], (64, input_features, 3)),    # (O, I, W)
        "conv1_b": nrm(ks[1], (64,)),
        "bn1_gamma": 1.0 + nrm(ks[2], (64,)),
        "bn1_beta": nrm(ks[3], (64,)),
        "bn1_mean": nrm(ks[4], (64,)),
        "bn1_var": jnp.abs(nrm(ks[5], (64,))) + 1.0,
        "conv2_w": nrm(ks[6], (128, 64, 3)),
        "conv2_b": nrm(ks[7], (128,)),
        "conv3_w": nrm(ks[8], (256, 128, 3)),
        "conv3_b": nrm(ks[9], (256,)),
        "fc1_w": nrm(ks[10], (64, flat_dim)),              # (out, in), PyTorch order
        "fc1_b": nrm(ks[11], (64,)),
        "fc2_w": nrm(ks[12], (num_classes, 64)),
        "fc2_b": nrm(ks[13], (num_classes,)),
    }


# ----------------------------------------------------------------------------
# Pure-JAX reference (mirrors the PyTorch forward in NCW layout)
# ----------------------------------------------------------------------------
def reference_forward(x, p):
    xc = jnp.transpose(x, (0, 2, 1))                       # (B, C, W)

    def conv1d(a, w, b):
        y = jax.lax.conv_general_dilated(
            a, w, window_strides=(1,), padding=[(1, 1)],
            dimension_numbers=("NCW", "OIW", "NCW"))
        return y + b[None, :, None]

    def pool(a):
        B, C, T = a.shape
        return jnp.max(a.reshape(B, C, T // 2, 2), axis=-1)

    y = conv1d(xc, p["conv1_w"], p["conv1_b"])
    y = (y - p["bn1_mean"][None, :, None]) / jnp.sqrt(p["bn1_var"][None, :, None] + EPS)
    y = y * p["bn1_gamma"][None, :, None] + p["bn1_beta"][None, :, None]
    y = pool(jnp.maximum(y, 0.0))
    y = pool(jnp.maximum(conv1d(y, p["conv2_w"], p["conv2_b"]), 0.0))
    y = pool(jnp.maximum(conv1d(y, p["conv3_w"], p["conv3_b"]), 0.0))
    T3 = y.shape[-1]
    t = jnp.arange(T3, dtype=jnp.float32)
    denom = max(T3 - 60, 1)
    weight = jnp.where(t < 60.0, 1.0, 1.0 + 0.2 * (t - 60.0) / denom)
    y = y * weight[None, None, :]
    flat = y.reshape(y.shape[0], -1)
    h = jnp.maximum(flat @ p["fc1_w"].T + p["fc1_b"], 0.0)
    return h @ p["fc2_w"].T + p["fc2_b"]


if __name__ == "__main__":
    num_classes = 5
    window_size = 32          # must be a multiple of 8 (three MaxPool(2) stages)
    input_features = 6
    batch = 2
    tb = 1                    # batch tile per grid step -> grid=(2,), "parallel"

    key = jax.random.PRNGKey(0)
    kx, kp = jax.random.split(key)
    x = jax.random.normal(kx, (batch, window_size, input_features), jnp.float32)
    params = init_params(kp, num_classes, window_size, input_features)

    prep = prepare_params(params, window_size)             # one-time weight plumbing
    prep = jax.tree_util.tree_map(jax.block_until_ready, prep)

    fwd = jax.jit(cnn_forward, static_argnums=(2, 3))
    out = jax.block_until_ready(fwd(x, prep, num_classes, tb))
    ref = reference_forward(x, params)

    assert out.shape == (batch, num_classes)
    assert jnp.allclose(out, ref, atol=1e-4, rtol=1e-4), (out, ref)
    print("KERNEL_OK")
</pallas_src>

<mosaic_0001>
module attributes {stable_mosaic.version = 11 : i64} {
  func.func @kernel(%arg0: i32, %arg1: memref<32x6xf32, #tpu.memory_space<vmem>>, %arg2: memref<6x64xf32, #tpu.memory_space<vmem>>, %arg3: memref<6x64xf32, #tpu.memory_space<vmem>>, %arg4: memref<6x64xf32, #tpu.memory_space<vmem>>, %arg5: memref<1x64xf32, #tpu.memory_space<vmem>>, %arg6: memref<64x128xf32, #tpu.memory_space<vmem>>, %arg7: memref<64x128xf32, #tpu.memory_space<vmem>>, %arg8: memref<64x128xf32, #tpu.memory_space<vmem>>, %arg9: memref<1x128xf32, #tpu.memory_space<vmem>>, %arg10: memref<128x256xf32, #tpu.memory_space<vmem>>, %arg11: memref<128x256xf32, #tpu.memory_space<vmem>>, %arg12: memref<128x256xf32, #tpu.memory_space<vmem>>, %arg13: memref<1x256xf32, #tpu.memory_space<vmem>>, %arg14: memref<1024x128xf32, #tpu.memory_space<vmem>>, %arg15: memref<1x128xf32, #tpu.memory_space<vmem>>, %arg16: memref<128x128xf32, #tpu.memory_space<vmem>>, %arg17: memref<1x128xf32, #tpu.memory_space<vmem>>, %arg18: memref<1x1x128xf32, #tpu.memory_space<vmem>>) attributes {dimension_semantics = [#tpu.dimension_semantics<parallel>], iteration_bounds = array<i64: 2>, scalar_prefetch = 0 : i64, scratch_operands = 0 : i64, tpu.core_type = #tpu.core_type<tc>, window_params = [{transform_indices = @transform_0, window_bounds = array<i64: 32, 6>}, {pipeline_mode = #tpu.pipeline_mode<synchronous>, transform_indices = @transform_1, window_bounds = array<i64: 6, 64>}, {pipeline_mode = #tpu.pipeline_mode<synchronous>, transform_indices = @transform_2, window_bounds = array<i64: 6, 64>}, {pipeline_mode = #tpu.pipeline_mode<synchronous>, transform_indices = @transform_3, window_bounds = array<i64: 6, 64>}, {pipeline_mode = #tpu.pipeline_mode<synchronous>, transform_indices = @transform_4, window_bounds = array<i64: 1, 64>}, {pipeline_mode = #tpu.pipeline_mode<synchronous>, transform_indices = @transform_5, window_bounds = array<i64: 64, 128>}, {pipeline_mode = #tpu.pipeline_mode<synchronous>, transform_indices = @transform_6, window_bounds = array<i64: 64, 128>}, {pipeline_mode = #tpu.pipeline_mode<synchronous>, transform_indices = @transform_7, window_bounds = array<i64: 64, 128>}, {pipeline_mode = #tpu.pipeline_mode<synchronous>, transform_indices = @transform_8, window_bounds = array<i64: 1, 128>}, {pipeline_mode = #tpu.pipeline_mode<synchronous>, transform_indices = @transform_9, window_bounds = array<i64: 128, 256>}, {pipeline_mode = #tpu.pipeline_mode<synchronous>, transform_indices = @transform_10, window_bounds = array<i64: 128, 256>}, {pipeline_mode = #tpu.pipeline_mode<synchronous>, transform_indices = @transform_11, window_bounds = array<i64: 128, 256>}, {pipeline_mode = #tpu.pipeline_mode<synchronous>, transform_indices = @transform_12, window_bounds = array<i64: 1, 256>}, {pipeline_mode = #tpu.pipeline_mode<synchronous>, transform_indices = @transform_13, window_bounds = array<i64: 1024, 128>}, {pipeline_mode = #tpu.pipeline_mode<synchronous>, transform_indices = @transform_14, window_bounds = array<i64: 1, 128>}, {pipeline_mode = #tpu.pipeline_mode<synchronous>, transform_indices = @transform_15, window_bounds = array<i64: 128, 128>}, {pipeline_mode = #tpu.pipeline_mode<synchronous>, transform_indices = @transform_16, window_bounds = array<i64: 1, 128>}, {transform_indices = @transform_17, window_bounds = array<i64: 1, 1, 128>}]} {
    %c0 = arith.constant 0 : index
    %c0_0 = arith.constant 0 : index
    %0 = vector.load %arg1[%c0, %c0_0] : memref<32x6xf32, #tpu.memory_space<vmem>>, vector<32x6xf32>
    %c0_1 = arith.constant 0 : index
    %c0_2 = arith.constant 0 : index
    %1 = vector.load %arg2[%c0_1, %c0_2] : memref<6x64xf32, #tpu.memory_space<vmem>>, vector<6x64xf32>
    %c0_3 = arith.constant 0 : index
    %c0_4 = arith.constant 0 : index
    %2 = vector.load %arg3[%c0_3, %c0_4] : memref<6x64xf32, #tpu.memory_space<vmem>>, vector<6x64xf32>
    %c0_5 = arith.constant 0 : index
    %c0_6 = arith.constant 0 : index
    %3 = vector.load %arg4[%c0_5, %c0_6] : memref<6x64xf32, #tpu.memory_space<vmem>>, vector<6x64xf32>
    %c0_7 = arith.constant 0 : index
    %c0_8 = arith.constant 0 : index
    %4 = vector.load %arg5[%c0_7, %c0_8] : memref<1x64xf32, #tpu.memory_space<vmem>>, vector<1x64xf32>
    %5 = tpu.iota {dimensions = array<i32: 0>} : vector<32x6xi32>
    %c32_i32 = arith.constant 32 : i32
    %c0_i32 = arith.constant 0 : i32
    %6 = arith.cmpi eq, %c32_i32, %c0_i32 : i32
    %c1_i32 = arith.constant 1 : i32
    %7 = arith.select %6, %c1_i32, %c32_i32 : i32
    %8 = vector.broadcast %7 : i32 to vector<32x6xi32>
    %9 = arith.remsi %5, %8 : vector<32x6xi32>
    %c0_i32_9 = arith.constant 0 : i32
    %10 = vector.broadcast %c0_i32_9 : i32 to vector<32x6xi32>
    %11 = arith.cmpi ne, %9, %10 : vector<32x6xi32>
    %c0_i32_10 = arith.constant 0 : i32
    %12 = vector.broadcast %c0_i32_10 : i32 to vector<32x6xi32>
    %13 = arith.cmpi slt, %9, %12 : vector<32x6xi32>
    %c0_i32_11 = arith.constant 0 : i32
    %14 = arith.cmpi slt, %7, %c0_i32_11 : i32
    %15 = vector.broadcast %14 : i1 to vector<32x6xi1>
    %16 = vector.broadcast %15 : vector<32x6xi1> to vector<32x6xi1>
    %17 = arith.xori %13, %16 : vector<32x6xi1>
    %18 = arith.andi %17, %11 : vector<32x6xi1>
    %19 = vector.broadcast %7 : i32 to vector<32x6xi32>
    %20 = arith.addi %9, %19 : vector<32x6xi32>
    %21 = arith.select %18, %20, %9 : vector<32x6xi1>, vector<32x6xi32>
    %c0_i32_12 = arith.constant 0 : i32
    %22 = vector.broadcast %c0_i32_12 : i32 to vector<32x6xi32>
    %23 = arith.cmpi eq, %21, %22 : vector<32x6xi32>
    %c1_i32_13 = arith.constant 1 : i32
    %24 = tpu.dynamic_rotate %0 by %c1_i32_13 dim 0 : vector<32x6xf32>, i32 -> vector<32x6xf32>
    %cst = arith.constant 0.000000e+00 : f32
    %25 = vector.broadcast %cst : f32 to vector<32x6xf32>
    %26 = arith.select %23, %25, %24 : vector<32x6xi1>, vector<32x6xf32>
    %c31_i32 = arith.constant 31 : i32
    %27 = vector.broadcast %c31_i32 : i32 to vector<32x6xi32>
    %28 = arith.cmpi eq, %21, %27 : vector<32x6xi32>
    %c31_i32_14 = arith.constant 31 : i32
    %29 = tpu.dynamic_rotate %0 by %c31_i32_14 dim 0 : vector<32x6xf32>, i32 -> vector<32x6xf32>
    %cst_15 = arith.constant 0.000000e+00 : f32
    %30 = vector.broadcast %cst_15 : f32 to vector<32x6xf32>
    %31 = arith.select %28, %30, %29 : vector<32x6xi1>, vector<32x6xf32>
    %cst_16 = arith.constant dense<0.000000e+00> : vector<32x64xf32>
    %32 = tpu.matmul %26, %1, %cst_16 {dimension_numbers = #tpu.dot_dimension_numbers<[1], [0], [0], [1], [0, 0, 1, 1], [], []>} : vector<32x6xf32>, vector<6x64xf32>, vector<32x64xf32> -> vector<32x64xf32>
    %cst_17 = arith.constant dense<0.000000e+00> : vector<32x64xf32>
    %33 = tpu.matmul %0, %2, %cst_17 {dimension_numbers = #tpu.dot_dimension_numbers<[1], [0], [0], [1], [0, 0, 1, 1], [], []>} : vector<32x6xf32>, vector<6x64xf32>, vector<32x64xf32> -> vector<32x64xf32>
    %34 = arith.addf %32, %33 : vector<32x64xf32>
    %cst_18 = arith.constant dense<0.000000e+00> : vector<32x64xf32>
    %35 = tpu.matmul %31, %3, %cst_18 {dimension_numbers = #tpu.dot_dimension_numbers<[1], [0], [0], [1], [0, 0, 1, 1], [], []>} : vector<32x6xf32>, vector<6x64xf32>, vector<32x64xf32> -> vector<32x64xf32>
    %36 = arith.addf %34, %35 : vector<32x64xf32>
    %37 = vector.broadcast %4 : vector<1x64xf32> to vector<32x64xf32>
    %38 = arith.addf %36, %37 : vector<32x64xf32>
    %cst_19 = arith.constant 0.000000e+00 : f32
    %39 = vector.broadcast %cst_19 : f32 to vector<32x64xf32>
    %40 = arith.maximumf %38, %39 : vector<32x64xf32>
    %41 = vector.shape_cast %40 : vector<32x64xf32> to vector<16x2x64xf32>
    %cst_20 = arith.constant dense<0xFF800000> : vector<16x64xf32>
    %42 = vector.multi_reduction <maximumf>, %41, %cst_20 [1] : vector<16x2x64xf32> to vector<16x64xf32>
    %c0_21 = arith.constant 0 : index
    %c0_22 = arith.constant 0 : index
    %43 = vector.load %arg6[%c0_21, %c0_22] : memref<64x128xf32, #tpu.memory_space<vmem>>, vector<64x128xf32>
    %c0_23 = arith.constant 0 : index
    %c0_24 = arith.constant 0 : index
    %44 = vector.load %arg7[%c0_23, %c0_24] : memref<64x128xf32, #tpu.memory_space<vmem>>, vector<64x128xf32>
    %c0_25 = arith.constant 0 : index
    %c0_26 = arith.constant 0 : index
    %45 = vector.load %arg8[%c0_25, %c0_26] : memref<64x128xf32, #tpu.memory_space<vmem>>, vector<64x128xf32>
    %c0_27 = arith.constant 0 : index
    %c0_28 = arith.constant 0 : index
    %46 = vector.load %arg9[%c0_27, %c0_28] : memref<1x128xf32, #tpu.memory_space<vmem>>, vector<1x128xf32>
    %47 = tpu.iota {dimensions = array<i32: 0>} : vector<16x64xi32>
    %c16_i32 = arith.constant 16 : i32
    %c0_i32_29 = arith.constant 0 : i32
    %48 = arith.cmpi eq, %c16_i32, %c0_i32_29 : i32
    %c1_i32_30 = arith.constant 1 : i32
    %49 = arith.select %48, %c1_i32_30, %c16_i32 : i32
    %50 = vector.broadcast %49 : i32 to vector<16x64xi32>
    %51 = arith.remsi %47, %50 : vector<16x64xi32>
    %c0_i32_31 = arith.constant 0 : i32
    %52 = vector.broadcast %c0_i32_31 : i32 to vector<16x64xi32>
    %53 = arith.cmpi ne, %51, %52 : vector<16x64xi32>
    %c0_i32_32 = arith.constant 0 : i32
    %54 = vector.broadcast %c0_i32_32 : i32 to vector<16x64xi32>
    %55 = arith.cmpi slt, %51, %54 : vector<16x64xi32>
    %c0_i32_33 = arith.constant 0 : i32
    %56 = arith.cmpi slt, %49, %c0_i32_33 : i32
    %57 = vector.broadcast %56 : i1 to vector<16x64xi1>
    %58 = vector.broadcast %57 : vector<16x64xi1> to vector<16x64xi1>
    %59 = arith.xori %55, %58 : vector<16x64xi1>
    %60 = arith.andi %59, %53 : vector<16x64xi1>
    %61 = vector.broadcast %49 : i32 to vector<16x64xi32>
    %62 = arith.addi %51, %61 : vector<16x64xi32>
    %63 = arith.select %60, %62, %51 : vector<16x64xi1>, vector<16x64xi32>
    %c0_i32_34 = arith.constant 0 : i32
    %64 = vector.broadcast %c0_i32_34 : i32 to vector<16x64xi32>
    %65 = arith.cmpi eq, %63, %64 : vector<16x64xi32>
    %c1_i32_35 = arith.constant 1 : i32
    %66 = tpu.dynamic_rotate %42 by %c1_i32_35 dim 0 : vector<16x64xf32>, i32 -> vector<16x64xf32>
    %cst_36 = arith.constant 0.000000e+00 : f32
    %67 = vector.broadcast %cst_36 : f32 to vector<16x64xf32>
    %68 = arith.select %65, %67, %66 : vector<16x64xi1>, vector<16x64xf32>
    %c15_i32 = arith.constant 15 : i32
    %69 = vector.broadcast %c15_i32 : i32 to vector<16x64xi32>
    %70 = arith.cmpi eq, %63, %69 : vector<16x64xi32>
    %c15_i32_37 = arith.constant 15 : i32
    %71 = tpu.dynamic_rotate %42 by %c15_i32_37 dim 0 : vector<16x64xf32>, i32 -> vector<16x64xf32>
    %cst_38 = arith.constant 0.000000e+00 : f32
    %72 = vector.broadcast %cst_38 : f32 to vector<16x64xf32>
    %73 = arith.select %70, %72, %71 : vector<16x64xi1>, vector<16x64xf32>
    %cst_39 = arith.constant dense<0.000000e+00> : vector<16x128xf32>
    %74 = tpu.matmul %68, %43, %cst_39 {dimension_numbers = #tpu.dot_dimension_numbers<[1], [0], [0], [1], [0, 0, 1, 1], [], []>} : vector<16x64xf32>, vector<64x128xf32>, vector<16x128xf32> -> vector<16x128xf32>
    %cst_40 = arith.constant dense<0.000000e+00> : vector<16x128xf32>
    %75 = tpu.matmul %42, %44, %cst_40 {dimension_numbers = #tpu.dot_dimension_numbers<[1], [0], [0], [1], [0, 0, 1, 1], [], []>} : vector<16x64xf32>, vector<64x128xf32>, vector<16x128xf32> -> vector<16x128xf32>
    %76 = arith.addf %74, %75 : vector<16x128xf32>
    %cst_41 = arith.constant dense<0.000000e+00> : vector<16x128xf32>
    %77 = tpu.matmul %73, %45, %cst_41 {dimension_numbers = #tpu.dot_dimension_numbers<[1], [0], [0], [1], [0, 0, 1, 1], [], []>} : vector<16x64xf32>, vector<64x128xf32>, vector<16x128xf32> -> vector<16x128xf32>
    %78 = arith.addf %76, %77 : vector<16x128xf32>
    %79 = vector.broadcast %46 : vector<1x128xf32> to vector<16x128xf32>
    %80 = arith.addf %78, %79 : vector<16x128xf32>
    %cst_42 = arith.constant 0.000000e+00 : f32
    %81 = vector.broadcast %cst_42 : f32 to vector<16x128xf32>
    %82 = arith.maximumf %80, %81 : vector<16x128xf32>
    %83 = vector.shape_cast %82 : vector<16x128xf32> to vector<8x2x128xf32>
    %cst_43 = arith.constant dense<0xFF800000> : vector<8x128xf32>
    %84 = vector.multi_reduction <maximumf>, %83, %cst_43 [1] : vector<8x2x128xf32> to vector<8x128xf32>
    %c0_44 = arith.constant 0 : index
    %c0_45 = arith.constant 0 : index
    %85 = vector.load %arg10[%c0_44, %c0_45] : memref<128x256xf32, #tpu.memory_space<vmem>>, vector<128x256xf32>
    %c0_46 = arith.constant 0 : index
    %c0_47 = arith.constant 0 : index
    %86 = vector.load %arg11[%c0_46, %c0_47] : memref<128x256xf32, #tpu.memory_space<vmem>>, vector<128x256xf32>
    %c0_48 = arith.constant 0 : index
    %c0_49 = arith.constant 0 : index
    %87 = vector.load %arg12[%c0_48, %c0_49] : memref<128x256xf32, #tpu.memory_space<vmem>>, vector<128x256xf32>
    %c0_50 = arith.constant 0 : index
    %c0_51 = arith.constant 0 : index
    %88 = vector.load %arg13[%c0_50, %c0_51] : memref<1x256xf32, #tpu.memory_space<vmem>>, vector<1x256xf32>
    %89 = tpu.iota {dimensions = array<i32: 0>} : vector<8x128xi32>
    %c8_i32 = arith.constant 8 : i32
    %c0_i32_52 = arith.constant 0 : i32
    %90 = arith.cmpi eq, %c8_i32, %c0_i32_52 : i32
    %c1_i32_53 = arith.constant 1 : i32
    %91 = arith.select %90, %c1_i32_53, %c8_i32 : i32
    %92 = vector.broadcast %91 : i32 to vector<8x128xi32>
    %93 = arith.remsi %89, %92 : vector<8x128xi32>
    %c0_i32_54 = arith.constant 0 : i32
    %94 = vector.broadcast %c0_i32_54 : i32 to vector<8x128xi32>
    %95 = arith.cmpi ne, %93, %94 : vector<8x128xi32>
    %c0_i32_55 = arith.constant 0 : i32
    %96 = vector.broadcast %c0_i32_55 : i32 to vector<8x128xi32>
    %97 = arith.cmpi slt, %93, %96 : vector<8x128xi32>
    %c0_i32_56 = arith.constant 0 : i32
    %98 = arith.cmpi slt, %91, %c0_i32_56 : i32
    %99 = vector.broadcast %98 : i1 to vector<8x128xi1>
    %100 = vector.broadcast %99 : vector<8x128xi1> to vector<8x128xi1>
    %101 = arith.xori %97, %100 : vector<8x128xi1>
    %102 = arith.andi %101, %95 : vector<8x128xi1>
    %103 = vector.broadcast %91 : i32 to vector<8x128xi32>
    %104 = arith.addi %93, %103 : vector<8x128xi32>
    %105 = arith.select %102, %104, %93 : vector<8x128xi1>, vector<8x128xi32>
    %c0_i32_57 = arith.constant 0 : i32
    %106 = vector.broadcast %c0_i32_57 : i32 to vector<8x128xi32>
    %107 = arith.cmpi eq, %105, %106 : vector<8x128xi32>
    %c1_i32_58 = arith.constant 1 : i32
    %108 = tpu.dynamic_rotate %84 by %c1_i32_58 dim 0 : vector<8x128xf32>, i32 -> vector<8x128xf32>
    %cst_59 = arith.constant 0.000000e+00 : f32
    %109 = vector.broadcast %cst_59 : f32 to vector<8x128xf32>
    %110 = arith.select %107, %109, %108 : vector<8x128xi1>, vector<8x128xf32>
    %c7_i32 = arith.constant 7 : i32
    %111 = vector.broadcast %c7_i32 : i32 to vector<8x128xi32>
    %112 = arith.cmpi eq, %105, %111 : vector<8x128xi32>
    %c7_i32_60 = arith.constant 7 : i32
    %113 = tpu.dynamic_rotate %84 by %c7_i32_60 dim 0 : vector<8x128xf32>, i32 -> vector<8x128xf32>
    %cst_61 = arith.constant 0.000000e+00 : f32
    %114 = vector.broadcast %cst_61 : f32 to vector<8x128xf32>
    %115 = arith.select %112, %114, %113 : vector<8x128xi1>, vector<8x128xf32>
    %cst_62 = arith.constant dense<0.000000e+00> : vector<8x256xf32>
    %116 = tpu.matmul %110, %85, %cst_62 {dimension_numbers = #tpu.dot_dimension_numbers<[1], [0], [0], [1], [0, 0, 1, 1], [], []>} : vector<8x128xf32>, vector<128x256xf32>, vector<8x256xf32> -> vector<8x256xf32>
    %cst_63 = arith.constant dense<0.000000e+00> : vector<8x256xf32>
    %117 = tpu.matmul %84, %86, %cst_63 {dimension_numbers = #tpu.dot_dimension_numbers<[1], [0], [0], [1], [0, 0, 1, 1], [], []>} : vector<8x128xf32>, vector<128x256xf32>, vector<8x256xf32> -> vector<8x256xf32>
    %118 = arith.addf %116, %117 : vector<8x256xf32>
    %cst_64 = arith.constant dense<0.000000e+00> : vector<8x256xf32>
    %119 = tpu.matmul %115, %87, %cst_64 {dimension_numbers = #tpu.dot_dimension_numbers<[1], [0], [0], [1], [0, 0, 1, 1], [], []>} : vector<8x128xf32>, vector<128x256xf32>, vector<8x256xf32> -> vector<8x256xf32>
    %120 = arith.addf %118, %119 : vector<8x256xf32>
    %121 = vector.broadcast %88 : vector<1x256xf32> to vector<8x256xf32>
    %122 = arith.addf %120, %121 : vector<8x256xf32>
    %cst_65 = arith.constant 0.000000e+00 : f32
    %123 = vector.broadcast %cst_65 : f32 to vector<8x256xf32>
    %124 = arith.maximumf %122, %123 : vector<8x256xf32>
    %125 = vector.shape_cast %124 : vector<8x256xf32> to vector<4x2x256xf32>
    %cst_66 = arith.constant dense<0xFF800000> : vector<4x256xf32>
    %126 = vector.multi_reduction <maximumf>, %125, %cst_66 [1] : vector<4x2x256xf32> to vector<4x256xf32>
    %127 = vector.shape_cast %126 : vector<4x256xf32> to vector<1x1024xf32>
    %c0_67 = arith.constant 0 : index
    %c0_68 = arith.constant 0 : index
    %128 = vector.load %arg14[%c0_67, %c0_68] : memref<1024x128xf32, #tpu.memory_space<vmem>>, vector<1024x128xf32>
    %cst_69 = arith.constant dense<0.000000e+00> : vector<1x128xf32>
    %129 = tpu.matmul %127, %128, %cst_69 {dimension_numbers = #tpu.dot_dimension_numbers<[1], [0], [0], [1], [0, 0, 1, 1], [], []>} : vector<1x1024xf32>, vector<1024x128xf32>, vector<1x128xf32> -> vector<1x128xf32>
    %c0_70 = arith.constant 0 : index
    %c0_71 = arith.constant 0 : index
    %130 = vector.load %arg15[%c0_70, %c0_71] : memref<1x128xf32, #tpu.memory_space<vmem>>, vector<1x128xf32>
    %131 = arith.addf %129, %130 : vector<1x128xf32>
    %cst_72 = arith.constant 0.000000e+00 : f32
    %132 = vector.broadcast %cst_72 : f32 to vector<1x128xf32>
    %133 = arith.maximumf %131, %132 : vector<1x128xf32>
    %c0_73 = arith.constant 0 : index
    %c0_74 = arith.constant 0 : index
    %134 = vector.load %arg16[%c0_73, %c0_74] : memref<128x128xf32, #tpu.memory_space<vmem>>, vector<128x128xf32>
    %cst_75 = arith.constant dense<0.000000e+00> : vector<1x128xf32>
    %135 = tpu.matmul %133, %134, %cst_75 {dimension_numbers = #tpu.dot_dimension_numbers<[1], [0], [0], [1], [0, 0, 1, 1], [], []>} : vector<1x128xf32>, vector<128x128xf32>, vector<1x128xf32> -> vector<1x128xf32>
    %c0_76 = arith.constant 0 : index
    %c0_77 = arith.constant 0 : index
    %136 = vector.load %arg17[%c0_76, %c0_77] : memref<1x128xf32, #tpu.memory_space<vmem>>, vector<1x128xf32>
    %137 = arith.addf %135, %136 : vector<1x128xf32>
    %c0_78 = arith.constant 0 : index
    %c0_79 = arith.constant 0 : index
    %c0_80 = arith.constant 0 : index
    %138 = vector.load %arg18[%c0_78, %c0_79, %c0_80] : memref<1x1x128xf32, #tpu.memory_space<vmem>>, vector<1x1x128xf32>
    %139 = vector.shape_cast %138 : vector<1x1x128xf32> to vector<1x128xf32>
    %140 = vector.shape_cast %137 : vector<1x128xf32> to vector<1x1x128xf32>
    tpu.vector_store %arg18[%c0_78, %c0_79, %c0_80], %140 {strides = array<i32>} : memref<1x1x128xf32, #tpu.memory_space<vmem>>, vector<1x1x128xf32>,
    return
  }
  func.func @transform_0(%arg0: i32) -> (i32, i32) {
    %c0_i32 = arith.constant 0 : i32
    %c0_i32_0 = arith.constant 0 : i32
    return %arg0, %c0_i32 : i32, i32
  }
  func.func @transform_1(%arg0: i32) -> (i32, i32) {
    %c0_i32 = arith.constant 0 : i32
    %c0_i32_0 = arith.constant 0 : i32
    %c0_i32_1 = arith.constant 0 : i32
    return %c0_i32, %c0_i32_0 : i32, i32
  }
  func.func @transform_2(%arg0: i32) -> (i32, i32) {
    %c0_i32 = arith.constant 0 : i32
    %c0_i32_0 = arith.constant 0 : i32
    %c0_i32_1 = arith.constant 0 : i32
    return %c0_i32, %c0_i32_0 : i32, i32
  }
  func.func @transform_3(%arg0: i32) -> (i32, i32) {
    %c0_i32 = arith.constant 0 : i32
    %c0_i32_0 = arith.constant 0 : i32
    %c0_i32_1 = arith.constant 0 : i32
    return %c0_i32, %c0_i32_0 : i32, i32
  }
  func.func @transform_4(%arg0: i32) -> (i32, i32) {
    %c0_i32 = arith.constant 0 : i32
    %c0_i32_0 = arith.constant 0 : i32
    %c0_i32_1 = arith.constant 0 : i32
    return %c0_i32, %c0_i32_0 : i32, i32
  }
  func.func @transform_5(%arg0: i32) -> (i32, i32) {
    %c0_i32 = arith.constant 0 : i32
    %c0_i32_0 = arith.constant 0 : i32
    %c0_i32_1 = arith.constant 0 : i32
    return %c0_i32, %c0_i32_0 : i32, i32
  }
  func.func @transform_6(%arg0: i32) -> (i32, i32) {
    %c0_i32 = arith.constant 0 : i32
    %c0_i32_0 = arith.constant 0 : i32
    %c0_i32_1 = arith.constant 0 : i32
    return %c0_i32, %c0_i32_0 : i32, i32
  }
  func.func @transform_7(%arg0: i32) -> (i32, i32) {
    %c0_i32 = arith.constant 0 : i32
    %c0_i32_0 = arith.constant 0 : i32
    %c0_i32_1 = arith.constant 0 : i32
    return %c0_i32, %c0_i32_0 : i32, i32
  }
  func.func @transform_8(%arg0: i32) -> (i32, i32) {
    %c0_i32 = arith.constant 0 : i32
    %c0_i32_0 = arith.constant 0 : i32
    %c0_i32_1 = arith.constant 0 : i32
    return %c0_i32, %c0_i32_0 : i32, i32
  }
  func.func @transform_9(%arg0: i32) -> (i32, i32) {
    %c0_i32 = arith.constant 0 : i32
    %c0_i32_0 = arith.constant 0 : i32
    %c0_i32_1 = arith.constant 0 : i32
    return %c0_i32, %c0_i32_0 : i32, i32
  }
  func.func @transform_10(%arg0: i32) -> (i32, i32) {
    %c0_i32 = arith.constant 0 : i32
    %c0_i32_0 = arith.constant 0 : i32
    %c0_i32_1 = arith.constant 0 : i32
    return %c0_i32, %c0_i32_0 : i32, i32
  }
  func.func @transform_11(%arg0: i32) -> (i32, i32) {
    %c0_i32 = arith.constant 0 : i32
    %c0_i32_0 = arith.constant 0 : i32
    %c0_i32_1 = arith.constant 0 : i32
    return %c0_i32, %c0_i32_0 : i32, i32
  }
  func.func @transform_12(%arg0: i32) -> (i32, i32) {
    %c0_i32 = arith.constant 0 : i32
    %c0_i32_0 = arith.constant 0 : i32
    %c0_i32_1 = arith.constant 0 : i32
    return %c0_i32, %c0_i32_0 : i32, i32
  }
  func.func @transform_13(%arg0: i32) -> (i32, i32) {
    %c0_i32 = arith.constant 0 : i32
    %c0_i32_0 = arith.constant 0 : i32
    %c0_i32_1 = arith.constant 0 : i32
    return %c0_i32, %c0_i32_0 : i32, i32
  }
  func.func @transform_14(%arg0: i32) -> (i32, i32) {
    %c0_i32 = arith.constant 0 : i32
    %c0_i32_0 = arith.constant 0 : i32
    %c0_i32_1 = arith.constant 0 : i32
    return %c0_i32, %c0_i32_0 : i32, i32
  }
  func.func @transform_15(%arg0: i32) -> (i32, i32) {
    %c0_i32 = arith.constant 0 : i32
    %c0_i32_0 = arith.constant 0 : i32
    %c0_i32_1 = arith.constant 0 : i32
    return %c0_i32, %c0_i32_0 : i32, i32
  }
  func.func @transform_16(%arg0: i32) -> (i32, i32) {
    %c0_i32 = arith.constant 0 : i32
    %c0_i32_0 = arith.constant 0 : i32
    %c0_i32_1 = arith.constant 0 : i32
    return %c0_i32, %c0_i32_0 : i32, i32
  }
  func.func @transform_17(%arg0: i32) -> (i32, i32, i32) {
    %c0_i32 = arith.constant 0 : i32
    %c0_i32_0 = arith.constant 0 : i32
    %c0_i32_1 = arith.constant 0 : i32
    return %arg0, %c0_i32, %c0_i32_0 : i32, i32, i32
  }
}

</mosaic_0001>

<llo_original>
// kernel: cnn_forward.1
$region0: #{cnn_forward.1}
  #allocation0 [shape = 'u32[]', space=smem, size = 0x4, offset = 0x4, fixed_abs, tag = 'smem constant byte address 0x4 - core index']
  #allocation1 [shape = 'u32[144,128]{1,0:T(1,128)}', space=vmem, size = 0x12000, scoped, tag = 'internal scratch']
  %s0 = inlined_call_operand.vmem [shape: f32[64,6], index: 0, kind: input, shape index: {}]
  %s1 = inlined_call_operand.vmem [shape: f32[6,64], index: 1, kind: input, shape index: {}]
  %s2 = inlined_call_operand.hbm [shape: f32[6,64], index: 2, kind: input, shape index: {}]
  %s3 = inlined_call_operand.hbm [shape: f32[6,64], index: 3, kind: input, shape index: {}]
  %s4 = inlined_call_operand.vmem [shape: f32[1,64], index: 4, kind: input, shape index: {}]
  %s5 = inlined_call_operand.hbm [shape: f32[64,128], index: 5, kind: input, shape index: {}]
  %s6 = inlined_call_operand.hbm [shape: f32[64,128], index: 6, kind: input, shape index: {}]
  %s7 = inlined_call_operand.hbm [shape: f32[64,128], index: 7, kind: input, shape index: {}]
  %s8 = inlined_call_operand.vmem [shape: f32[1,128], index: 8, kind: input, shape index: {}]
  %s9 = inlined_call_operand.hbm [shape: f32[128,256], index: 9, kind: input, shape index: {}]
  %s10 = inlined_call_operand.hbm [shape: f32[128,256], index: 10, kind: input, shape index: {}]
  %s11 = inlined_call_operand.hbm [shape: f32[128,256], index: 11, kind: input, shape index: {}]
  %s12 = inlined_call_operand.vmem [shape: f32[1,256], index: 12, kind: input, shape index: {}]
  %s13 = inlined_call_operand.hbm [shape: f32[1024,128], index: 13, kind: input, shape index: {}]
  %s14 = inlined_call_operand.hbm [shape: f32[1,128], index: 14, kind: input, shape index: {}]
  %s15 = inlined_call_operand.vmem [shape: f32[128,128], index: 15, kind: input, shape index: {}]
  %s16 = inlined_call_operand.hbm [shape: f32[1,128], index: 16, kind: input, shape index: {}]
  %s17 = inlined_call_operand.hbm [shape: f32[2,1,128], index: 17, kind: output, shape index: {}]
  %s18 = sld [smem:[#allocation0]]
  $region145: #{cnn_forward.1} parent=0
    _
  %s20 = ssub.s32 1, %s18
  %s21 = scalar_select 0, %s20, %s18
  $region1: #{cnn_forward.1} parent=0
    #allocation2 [shape = 'u8[4096]{0}', space=vmem, size = 0x1000, scoped, tag = 'input window, operand 2, single buffered']
    #allocation3 [shape = 's32[2]{0}', space=sflag, size = 0x8, scoped, tag = 'scoped memory for cnn_forward.1']
    #allocation4 [shape = 's32[2]{0}', space=sflag, size = 0x8, scoped, tag = 'scoped memory for cnn_forward.1']
    #allocation5 [shape = 'u8[4096]{0}', space=vmem, size = 0x1000, scoped, tag = 'input window, operand 3, single buffered']
    #allocation6 [shape = 's32[1]{0}', space=sflag, size = 0x4, scoped, tag = 'scoped memory for cnn_forward.1']
    #allocation7 [shape = 'u8[32768]{0}', space=vmem, size = 0x8000, scoped, tag = 'input window, operand 5, single buffered']
    #allocation8 [shape = 'u8[32768]{0}', space=vmem, size = 0x8000, scoped, tag = 'input window, operand 6, single buffered']
    #allocation9 [shape = 's32[1]{0}', space=sflag, size = 0x4, scoped, tag = 'scoped memory for cnn_forward.1']
    #allocation10 [shape = 'u8[32768]{0}', space=vmem, size = 0x8000, scoped, tag = 'input window, operand 7, single buffered']
    #allocation11 [shape = 'u8[131072]{0}', space=vmem, size = 0x20000, scoped, tag = 'input window, operand 9, single buffered']
    #allocation12 [shape = 's32[1]{0}', space=sflag, size = 0x4, scoped, tag = 'scoped memory for cnn_forward.1']
    #allocation13 [shape = 'u8[131072]{0}', space=vmem, size = 0x20000, scoped, tag = 'input window, operand 10, single buffered']
    #allocation14 [shape = 'u8[131072]{0}', space=vmem, size = 0x20000, scoped, tag = 'input window, operand 11, single buffered']
    #allocation15 [shape = 's32[1]{0}', space=sflag, size = 0x4, scoped, tag = 'scoped memory for cnn_forward.1']
    #allocation16 [shape = 'u8[524288]{0}', space=vmem, size = 0x80000, scoped, tag = 'input window, operand 13, single buffered']
    #allocation17 [shape = 'u8[512]{0}', space=vmem, size = 0x400, scoped, tag = 'input window, operand 14, single buffered']
    #allocation18 [shape = 's32[1]{0}', space=sflag, size = 0x4, scoped, tag = 'scoped memory for cnn_forward.1']
    #allocation19 [shape = 'u8[512]{0}', space=vmem, size = 0x400, scoped, tag = 'input window, operand 16, single buffered']
    #allocation20 [shape = 'u8[1024]{0}', space=vmem, size = 0x400, scoped, tag = 'output window, operand 0']
    %22 = vsyncpa [#allocation3], 0
    %23 = vsyncpa [#allocation6], 0
    %24 = vsyncpa [#allocation9], 0
    %25 = vsyncpa [#allocation12], 0
    %26 = vsyncpa [#allocation15], 0
    %27 = vsyncpa [#allocation18], 0
    %28 = vsyncpa [#allocation4], 0
    %s29 = scalar_lea.sflag [#allocation4], 1
    %30 = vsyncpa %s29, 0
    loop: start=0, step=1, limit=4
    $region2: #{cnn_forward.1} parent=1 // loop_pre_header
      _
    $region3: #{cnn_forward.1} parent=1 // loop_header
      %s32 = sphi 0, %s36
      %p33 = scmp.ge.s32.totalorder %s32, 4
      %s42 = sphi 0, %s44
      %s45 = sphi 0, %s42
      %s46 = sphi 0, %s45
      %s62 = sphi 0, %s46
      %s66 = sphi 0, %s66
      %s68 = sphi 0, %s66
      %s69 = sphi 0, %s68
      %s83 = sphi 0, %s69
      %s87 = sphi 0, %s87
      %s89 = sphi 0, %s87
      %s90 = sphi 0, %s89
      %s104 = sphi 0, %s90
      %s108 = sphi 0, %s108
      %s110 = sphi 0, %s108
      %s111 = sphi 0, %s110
      %s125 = sphi 0, %s111
      %s129 = sphi 0, %s129
      %s131 = sphi 0, %s129
      %s132 = sphi 0, %s131
      %s146 = sphi 0, %s132
      %s150 = sphi 0, %s150
      %s152 = sphi 0, %s150
      %s153 = sphi 0, %s152
      %s167 = sphi 0, %s153
      %s171 = sphi 0, %s171
      %s173 = sphi 0, %s171
      %s174 = sphi 0, %s173
      %s188 = sphi 0, %s174
      %s192 = sphi 0, %s192
      %s194 = sphi 0, %s192
      %s195 = sphi 0, %s194
      %s209 = sphi 0, %s195
      %s213 = sphi 0, %s213
      %s215 = sphi 0, %s213
      %s216 = sphi 0, %s215
      %s230 = sphi 0, %s216
      %s234 = sphi 0, %s234
      %s236 = sphi 0, %s234
      %s237 = sphi 0, %s236
      %s251 = sphi 0, %s237
      %s255 = sphi 0, %s255
      %s257 = sphi 0, %s255
      %s258 = sphi 0, %s257
      %s272 = sphi 0, %s258
      %s276 = sphi 0, %s276
      %s278 = sphi 0, %s276
      %s279 = sphi 0, %s278
      %s293 = sphi 0, %s279
      %s297 = sphi 0, %s297
      %s299 = sphi 0, %s297
      %s300 = sphi 0, %s299
      %s314 = sphi 0, %s300
      %s318 = sphi 0, %s318
      %s320 = sphi 0, %s318
      %s321 = sphi 0, %s320
      %s335 = sphi 0, %s321
      %s339 = sphi 0, %s339
      %s341 = sphi 0, %s339
      %s342 = sphi 0, %s341
      %s356 = sphi 0, %s342
      %s360 = sphi 0, %s360
      %s362 = sphi 0, %s360
      %s363 = sphi 0, %s362
      %s377 = sphi 0, %s363
      %s381 = sphi 0, %s381
      %s383 = sphi 0, %s381
      %s384 = sphi 0, %s383
      %s398 = sphi 0, %s384
      %s404 = sphi 0, %s406
      %s407 = sphi 0, %s404
      %s408 = sphi 0, %s407
      %s424 = sphi 0, %s408
    $region4: #{cnn_forward.1} parent=1 // loop_header_branch
      %35 = sbr.rel (%p33) target = $region8
    $region5: #{cnn_forward.1} parent=1 // loop_body
      %s37 = ssub.s32 %s32, 1
      %s38 = ssub.s32 %s32, 2
      %s39 = sadd.s32 %s32, 1
      %s40 = ssub.s32 %s32, %s39
      %p41 = scmp.eq.s32.totalorder %s40, 0
      %s43 = sadd.s32 %s42, 1
      %s44 = scalar_select %p41, %s42, %s43
      %p47 = pneg %p41
      %p48 = scmp.eq.s32.totalorder %s32, 1
      %p49 = por %p47, %p48
      %p50 = scmp.ne.s32.totalorder %s42, %s45
      %p51 = scmp.eq.s32.totalorder %s32, 0
      %p52 = por %p50, %p51
      %p53 = scmp.ne.s32.totalorder %s42, %s45
      %p54 = scmp.eq.s32.totalorder %s37, 1
      %p55 = por %p53, %p54
      %p56 = scmp.ne.s32.totalorder %s45, %s46
      %p57 = scmp.eq.s32.totalorder %s37, 0
      %p58 = por %p56, %p57
      %p59 = scmp.ne.s32.totalorder %s45, %s46
      %p60 = scmp.eq.s32.totalorder %s38, 1
      %p61 = por %p59, %p60
      %p63 = scmp.ne.s32.totalorder %s46, %s62
      %p64 = scmp.eq.s32.totalorder %s38, 0
      %p65 = por %p63, %p64
      %s67 = sadd.s32 %s66, 1
      %p70 = scmp.eq.s32.totalorder %s32, 1
      %p71 = scmp.ne.s32.totalorder %s66, %s68
      %p72 = scmp.eq.s32.totalorder %s32, 0
      %p73 = por %p71, %p72
      %p74 = scmp.ne.s32.totalorder %s66, %s68
      %p75 = scmp.eq.s32.totalorder %s37, 1
      %p76 = por %p74, %p75
      %p77 = scmp.ne.s32.totalorder %s68, %s69
      %p78 = scmp.eq.s32.totalorder %s37, 0
      %p79 = por %p77, %p78
      %p80 = scmp.ne.s32.totalorder %s68, %s69
      %p81 = scmp.eq.s32.totalorder %s38, 1
      %p82 = por %p80, %p81
      %p84 = scmp.ne.s32.totalorder %s69, %s83
      %p85 = scmp.eq.s32.totalorder %s38, 0
      %p86 = por %p84, %p85
      %s88 = sadd.s32 %s87, 1
      %p91 = scmp.eq.s32.totalorder %s32, 1
      %p92 = scmp.ne.s32.totalorder %s87, %s89
      %p93 = scmp.eq.s32.totalorder %s32, 0
      %p94 = por %p92, %p93
      %p95 = scmp.ne.s32.totalorder %s87, %s89
      %p96 = scmp.eq.s32.totalorder %s37, 1
      %p97 = por %p95, %p96
      %p98 = scmp.ne.s32.totalorder %s89, %s90
      %p99 = scmp.eq.s32.totalorder %s37, 0
      %p100 = por %p98, %p99
      %p101 = scmp.ne.s32.totalorder %s89, %s90
      %p102 = scmp.eq.s32.totalorder %s38, 1
      %p103 = por %p101, %p102
      %p105 = scmp.ne.s32.totalorder %s90, %s104
      %p106 = scmp.eq.s32.totalorder %s38, 0
      %p107 = por %p105, %p106
      %s109 = sadd.s32 %s108, 1
      %p112 = scmp.eq.s32.totalorder %s32, 1
      %p113 = scmp.ne.s32.totalorder %s108, %s110
      %p114 = scmp.eq.s32.totalorder %s32, 0
      %p115 = por %p113, %p114
      %p116 = scmp.ne.s32.totalorder %s108, %s110
      %p117 = scmp.eq.s32.totalorder %s37, 1
      %p118 = por %p116, %p117
      %p119 = scmp.ne.s32.totalorder %s110, %s111
      %p120 = scmp.eq.s32.totalorder %s37, 0
      %p121 = por %p119, %p120
      %p122 = scmp.ne.s32.totalorder %s110, %s111
      %p123 = scmp.eq.s32.totalorder %s38, 1
      %p124 = por %p122, %p123
      %p126 = scmp.ne.s32.totalorder %s111, %s125
      %p127 = scmp.eq.s32.totalorder %s38, 0
      %p128 = por %p126, %p127
      %s130 = sadd.s32 %s129, 1
      %p133 = scmp.eq.s32.totalorder %s32, 1
      %p134 = scmp.ne.s32.totalorder %s129, %s131
      %p135 = scmp.eq.s32.totalorder %s32, 0
      %p136 = por %p134, %p135
      %p137 = scmp.ne.s32.totalorder %s129, %s131
      %p138 = scmp.eq.s32.totalorder %s37, 1
      %p139 = por %p137, %p138
      %p140 = scmp.ne.s32.totalorder %s131, %s132
      %p141 = scmp.eq.s32.totalorder %s37, 0
      %p142 = por %p140, %p141
      %p143 = scmp.ne.s32.totalorder %s131, %s132
      %p144 = scmp.eq.s32.totalorder %s38, 1
      %p145 = por %p143, %p144
      %p147 = scmp.ne.s32.totalorder %s132, %s146
      %p148 = scmp.eq.s32.totalorder %s38, 0
      %p149 = por %p147, %p148
      %s151 = sadd.s32 %s150, 1
      %p154 = scmp.eq.s32.totalorder %s32, 1
      %p155 = scmp.ne.s32.totalorder %s150, %s152
      %p156 = scmp.eq.s32.totalorder %s32, 0
      %p157 = por %p155, %p156
      %p158 = scmp.ne.s32.totalorder %s150, %s152
      %p159 = scmp.eq.s32.totalorder %s37, 1
      %p160 = por %p158, %p159
      %p161 = scmp.ne.s32.totalorder %s152, %s153
      %p162 = scmp.eq.s32.totalorder %s37, 0
      %p163 = por %p161, %p162
      %p164 = scmp.ne.s32.totalorder %s152, %s153
      %p165 = scmp.eq.s32.totalorder %s38, 1
      %p166 = por %p164, %p165
      %p168 = scmp.ne.s32.totalorder %s153, %s167
      %p169 = scmp.eq.s32.totalorder %s38, 0
      %p170 = por %p168, %p169
      %s172 = sadd.s32 %s171, 1
      %p175 = scmp.eq.s32.totalorder %s32, 1
      %p176 = scmp.ne.s32.totalorder %s171, %s173
      %p177 = scmp.eq.s32.totalorder %s32, 0
      %p178 = por %p176, %p177
      %p179 = scmp.ne.s32.totalorder %s171, %s173
      %p180 = scmp.eq.s32.totalorder %s37, 1
      %p181 = por %p179, %p180
      %p182 = scmp.ne.s32.totalorder %s173, %s174
      %p183 = scmp.eq.s32.totalorder %s37, 0
      %p184 = por %p182, %p183
      %p185 = scmp.ne.s32.totalorder %s173, %s174
      %p186 = scmp.eq.s32.totalorder %s38, 1
      %p187 = por %p185, %p186
      %p189 = scmp.ne.s32.totalorder %s174, %s188
      %p190 = scmp.eq.s32.totalorder %s38, 0
      %p191 = por %p189, %p190
      %s193 = sadd.s32 %s192, 1
      %p196 = scmp.eq.s32.totalorder %s32, 1
      %p197 = scmp.ne.s32.totalorder %s192, %s194
      %p198 = scmp.eq.s32.totalorder %s32, 0
      %p199 = por %p197, %p198
      %p200 = scmp.ne.s32.totalorder %s192, %s194
      %p201 = scmp.eq.s32.totalorder %s37, 1
      %p202 = por %p200, %p201
      %p203 = scmp.ne.s32.totalorder %s194, %s195
      %p204 = scmp.eq.s32.totalorder %s37, 0
      %p205 = por %p203, %p204
      %p206 = scmp.ne.s32.totalorder %s194, %s195
      %p207 = scmp.eq.s32.totalorder %s38, 1
      %p208 = por %p206, %p207
      %p210 = scmp.ne.s32.totalorder %s195, %s209
      %p211 = scmp.eq.s32.totalorder %s38, 0
      %p212 = por %p210, %p211
      %s214 = sadd.s32 %s213, 1
      %p217 = scmp.eq.s32.totalorder %s32, 1
      %p218 = scmp.ne.s32.totalorder %s213, %s215
      %p219 = scmp.eq.s32.totalorder %s32, 0
      %p220 = por %p218, %p219
      %p221 = scmp.ne.s32.totalorder %s213, %s215
      %p222 = scmp.eq.s32.totalorder %s37, 1
      %p223 = por %p221, %p222
      %p224 = scmp.ne.s32.totalorder %s215, %s216
      %p225 = scmp.eq.s32.totalorder %s37, 0
      %p226 = por %p224, %p225
      %p227 = scmp.ne.s32.totalorder %s215, %s216
      %p228 = scmp.eq.s32.totalorder %s38, 1
      %p229 = por %p227, %p228
      %p231 = scmp.ne.s32.totalorder %s216, %s230
      %p232 = scmp.eq.s32.totalorder %s38, 0
      %p233 = por %p231, %p232
      %s235 = sadd.s32 %s234, 1
      %p238 = scmp.eq.s32.totalorder %s32, 1
      %p239 = scmp.ne.s32.totalorder %s234, %s236
      %p240 = scmp.eq.s32.totalorder %s32, 0
      %p241 = por %p239, %p240
      %p242 = scmp.ne.s32.totalorder %s234, %s236
      %p243 = scmp.eq.s32.totalorder %s37, 1
      %p244 = por %p242, %p243
      %p245 = scmp.ne.s32.totalorder %s236, %s237
      %p246 = scmp.eq.s32.totalorder %s37, 0
      %p247 = por %p245, %p246
      %p248 = scmp.ne.s32.totalorder %s236, %s237
      %p249 = scmp.eq.s32.totalorder %s38, 1
      %p250 = por %p248, %p249
      %p252 = scmp.ne.s32.totalorder %s237, %s251
      %p253 = scmp.eq.s32.totalorder %s38, 0
      %p254 = por %p252, %p253
      %s256 = sadd.s32 %s255, 1
      %p259 = scmp.eq.s32.totalorder %s32, 1
      %p260 = scmp.ne.s32.totalorder %s255, %s257
      %p261 = scmp.eq.s32.totalorder %s32, 0
      %p262 = por %p260, %p261
      %p263 = scmp.ne.s32.totalorder %s255, %s257
      %p264 = scmp.eq.s32.totalorder %s37, 1
      %p265 = por %p263, %p264
      %p266 = scmp.ne.s32.totalorder %s257, %s258
      %p267 = scmp.eq.s32.totalorder %s37, 0
      %p268 = por %p266, %p267
      %p269 = scmp.ne.s32.totalorder %s257, %s258
      %p270 = scmp.eq.s32.totalorder %s38, 1
      %p271 = por %p269, %p270
      %p273 = scmp.ne.s32.totalorder %s258, %s272
      %p274 = scmp.eq.s32.totalorder %s38, 0
      %p275 = por %p273, %p274
      %s277 = sadd.s32 %s276, 1
      %p280 = scmp.eq.s32.totalorder %s32, 1
      %p281 = scmp.ne.s32.totalorder %s276, %s278
      %p282 = scmp.eq.s32.totalorder %s32, 0
      %p283 = por %p281, %p282
      %p284 = scmp.ne.s32.totalorder %s276, %s278
      %p285 = scmp.eq.s32.totalorder %s37, 1
      %p286 = por %p284, %p285
      %p287 = scmp.ne.s32.totalorder %s278, %s279
      %p288 = scmp.eq.s32.totalorder %s37, 0
      %p289 = por %p287, %p288
      %p290 = scmp.ne.s32.totalorder %s278, %s279
      %p291 = scmp.eq.s32.totalorder %s38, 1
      %p292 = por %p290, %p291
      %p294 = scmp.ne.s32.totalorder %s279, %s293
      %p295 = scmp.eq.s32.totalorder %s38, 0
      %p296 = por %p294, %p295
      %s298 = sadd.s32 %s297, 1
      %p301 = scmp.eq.s32.totalorder %s32, 1
      %p302 = scmp.ne.s32.totalorder %s297, %s299
      %p303 = scmp.eq.s32.totalorder %s32, 0
      %p304 = por %p302, %p303
      %p305 = scmp.ne.s32.totalorder %s297, %s299
      %p306 = scmp.eq.s32.totalorder %s37, 1
      %p307 = por %p305, %p306
      %p308 = scmp.ne.s32.totalorder %s299, %s300
      %p309 = scmp.eq.s32.totalorder %s37, 0
      %p310 = por %p308, %p309
      %p311 = scmp.ne.s32.totalorder %s299, %s300
      %p312 = scmp.eq.s32.totalorder %s38, 1
      %p313 = por %p311, %p312
      %p315 = scmp.ne.s32.totalorder %s300, %s314
      %p316 = scmp.eq.s32.totalorder %s38, 0
      %p317 = por %p315, %p316
      %s319 = sadd.s32 %s318, 1
      %p322 = scmp.eq.s32.totalorder %s32, 1
      %p323 = scmp.ne.s32.totalorder %s318, %s320
      %p324 = scmp.eq.s32.totalorder %s32, 0
      %p325 = por %p323, %p324
      %p326 = scmp.ne.s32.totalorder %s318, %s320
      %p327 = scmp.eq.s32.totalorder %s37, 1
      %p328 = por %p326, %p327
      %p329 = scmp.ne.s32.totalorder %s320, %s321
      %p330 = scmp.eq.s32.totalorder %s37, 0
      %p331 = por %p329, %p330
      %p332 = scmp.ne.s32.totalorder %s320, %s321
      %p333 = scmp.eq.s32.totalorder %s38, 1
      %p334 = por %p332, %p333
      %p336 = scmp.ne.s32.totalorder %s321, %s335
      %p337 = scmp.eq.s32.totalorder %s38, 0
      %p338 = por %p336, %p337
      %s340 = sadd.s32 %s339, 1
      %p343 = scmp.eq.s32.totalorder %s32, 1
      %p344 = scmp.ne.s32.totalorder %s339, %s341
      %p345 = scmp.eq.s32.totalorder %s32, 0
      %p346 = por %p344, %p345
      %p347 = scmp.ne.s32.totalorder %s339, %s341
      %p348 = scmp.eq.s32.totalorder %s37, 1
      %p349 = por %p347, %p348
      %p350 = scmp.ne.s32.totalorder %s341, %s342
      %p351 = scmp.eq.s32.totalorder %s37, 0
      %p352 = por %p350, %p351
      %p353 = scmp.ne.s32.totalorder %s341, %s342
      %p354 = scmp.eq.s32.totalorder %s38, 1
      %p355 = por %p353, %p354
      %p357 = scmp.ne.s32.totalorder %s342, %s356
      %p358 = scmp.eq.s32.totalorder %s38, 0
      %p359 = por %p357, %p358
      %s361 = sadd.s32 %s360, 1
      %p364 = scmp.eq.s32.totalorder %s32, 1
      %p365 = scmp.ne.s32.totalorder %s360, %s362
      %p366 = scmp.eq.s32.totalorder %s32, 0
      %p367 = por %p365, %p366
      %p368 = scmp.ne.s32.totalorder %s360, %s362
      %p369 = scmp.eq.s32.totalorder %s37, 1
      %p370 = por %p368, %p369
      %p371 = scmp.ne.s32.totalorder %s362, %s363
      %p372 = scmp.eq.s32.totalorder %s37, 0
      %p373 = por %p371, %p372
      %p374 = scmp.ne.s32.totalorder %s362, %s363
      %p375 = scmp.eq.s32.totalorder %s38, 1
      %p376 = por %p374, %p375
      %p378 = scmp.ne.s32.totalorder %s363, %s377
      %p379 = scmp.eq.s32.totalorder %s38, 0
      %p380 = por %p378, %p379
      %s382 = sadd.s32 %s381, 1
      %p385 = scmp.eq.s32.totalorder %s32, 1
      %p386 = scmp.ne.s32.totalorder %s381, %s383
      %p387 = scmp.eq.s32.totalorder %s32, 0
      %p388 = por %p386, %p387
      %p389 = scmp.ne.s32.totalorder %s381, %s383
      %p390 = scmp.eq.s32.totalorder %s37, 1
      %p391 = por %p389, %p390
      %p392 = scmp.ne.s32.totalorder %s383, %s384
      %p393 = scmp.eq.s32.totalorder %s37, 0
      %p394 = por %p392, %p393
      %p395 = scmp.ne.s32.totalorder %s383, %s384
      %p396 = scmp.eq.s32.totalorder %s38, 1
      %p397 = por %p395, %p396
      %p399 = scmp.ne.s32.totalorder %s384, %s398
      %p400 = scmp.eq.s32.totalorder %s38, 0
      %p401 = por %p399, %p400
      %s402 = ssub.s32 %s32, %s39
      %p403 = scmp.eq.s32.totalorder %s402, 0
      %s405 = sadd.s32 %s404, 1
      %s406 = scalar_select %p403, %s404, %s405
      %p409 = pneg %p403
      %p410 = scmp.eq.s32.totalorder %s32, 1
      %p411 = por %p409, %p410
      %p412 = scmp.ne.s32.totalorder %s404, %s407
      %p413 = scmp.eq.s32.totalorder %s32, 0
      %p414 = por %p412, %p413
      %p415 = scmp.ne.s32.totalorder %s404, %s407
      %p416 = scmp.eq.s32.totalorder %s37, 1
      %p417 = por %p415, %p416
      %p418 = scmp.ne.s32.totalorder %s407, %s408
      %p419 = scmp.eq.s32.totalorder %s37, 0
      %p420 = por %p418, %p419
      %p421 = scmp.ne.s32.totalorder %s407, %s408
      %p422 = scmp.eq.s32.totalorder %s38, 1
      %p423 = por %p421, %p422
      %p425 = scmp.ne.s32.totalorder %s408, %s424
      %p426 = scmp.eq.s32.totalorder %s38, 0
      %p427 = por %p425, %p426
      %p428 = scmp.le.s32.totalorder 1, %s32
      %p429 = scmp.lt.s32.totalorder %s32, 3
      %p430 = pnand %p428, %p429
      %p431 = pneg %p430
      // Predicated region
      $region9: #{cnn_forward.1} parent=5 // pred_check
        _
      $region10: #{cnn_forward.1} parent=5 // pred_check_branch
        %433 = sbr.rel (%p430) target = $region12
      $region11: #{cnn_forward.1} parent=5 // pred_region
        %s434 = ssub.s32 %s32, 1
        // Predicated region
        $region13: #{cnn_forward.1} parent=11 // pred_check
          %p435 = pneg %p79
        $region14: #{cnn_forward.1} parent=11 // pred_check_branch
          %437 = sbr.rel (%p435) target = $region16
        $region15: #{cnn_forward.1} parent=11 // pred_region
          _
        $region16: #{cnn_forward.1} parent=11 // pred_fallthru
          _
        // Predicated region
        $region17: #{cnn_forward.1} parent=11 // pred_check
          %p438 = pneg %p100
        $region18: #{cnn_forward.1} parent=11 // pred_check_branch
          %440 = sbr.rel (%p438) target = $region20
        $region19: #{cnn_forward.1} parent=11 // pred_region
          %s442 = ssub.s32 128, 128
          %443 = vsyncadd [#allocation3], %s442
          %s445 = sshll.u32 [#allocation2], 4
          %s446 = int_to_ptr.vmem [resolvable:$true] %s445
          %448 = dma.hbm_to_vmem [thread:$0]  %s2, 128, %s446, [#allocation3]
        $region20: #{cnn_forward.1} parent=11 // pred_fallthru
          _
        // Predicated region
        $region21: #{cnn_forward.1} parent=11 // pred_check
          %p449 = pneg %p121
        $region22: #{cnn_forward.1} parent=11 // pred_check_branch
          %451 = sbr.rel (%p449) target = $region24
        $region23: #{cnn_forward.1} parent=11 // pred_region
          %s453 = ssub.s32 128, 128
          %454 = vsyncadd [#allocation6], %s453
          %s456 = sshll.u32 [#allocation5], 4
          %s457 = int_to_ptr.vmem [resolvable:$true] %s456
          %459 = dma.hbm_to_vmem [thread:$0]  %s3, 128, %s457, [#allocation6]
        $region24: #{cnn_forward.1} parent=11 // pred_fallthru
          _
        // Predicated region
        $region25: #{cnn_forward.1} parent=11 // pred_check
          %p460 = pneg %p142
        $region26: #{cnn_forward.1} parent=11 // pred_check_branch
          %462 = sbr.rel (%p460) target = $region28
        $region27: #{cnn_forward.1} parent=11 // pred_region
          _
        $region28: #{cnn_forward.1} parent=11 // pred_fallthru
          _
        // Predicated region
        $region29: #{cnn_forward.1} parent=11 // pred_check
          %p463 = pneg %p163
        $region30: #{cnn_forward.1} parent=11 // pred_check_branch
          %465 = sbr.rel (%p463) target = $region32
        $region31: #{cnn_forward.1} parent=11 // pred_region
          %s467 = ssub.s32 1024, 1024
          %468 = vsyncadd [#allocation6], %s467
          %s469 = sshll.u32 [#allocation7], 4
          %s470 = int_to_ptr.vmem [resolvable:$true] %s469
          %475 = dma.hbm_to_vmem [thread:$0]  %s5, 1024, %s470, [#allocation6], 128, 128, 8
        $region32: #{cnn_forward.1} parent=11 // pred_fallthru
          _
        // Predicated region
        $region33: #{cnn_forward.1} parent=11 // pred_check
          %p476 = pneg %p184
        $region34: #{cnn_forward.1} parent=11 // pred_check_branch
          %478 = sbr.rel (%p476) target = $region36
        $region35: #{cnn_forward.1} parent=11 // pred_region
          %s480 = ssub.s32 1024, 1024
          %481 = vsyncadd [#allocation9], %s480
          %s482 = sshll.u32 [#allocation8], 4
          %s483 = int_to_ptr.vmem [resolvable:$true] %s482
          %488 = dma.hbm_to_vmem [thread:$0]  %s6, 1024, %s483, [#allocation9], 128, 128, 8
        $region36: #{cnn_forward.1} parent=11 // pred_fallthru
          _
        // Predicated region
        $region37: #{cnn_forward.1} parent=11 // pred_check
          %p489 = pneg %p205
        $region38: #{cnn_forward.1} parent=11 // pred_check_branch
          %491 = sbr.rel (%p489) target = $region40
        $region39: #{cnn_forward.1} parent=11 // pred_region
          %s493 = ssub.s32 1024, 1024
          %494 = vsyncadd [#allocation9], %s493
          %s495 = sshll.u32 [#allocation10], 4
          %s496 = int_to_ptr.vmem [resolvable:$true] %s495
          %501 = dma.hbm_to_vmem [thread:$0]  %s7, 1024, %s496, [#allocation9], 128, 128, 8
        $region40: #{cnn_forward.1} parent=11 // pred_fallthru
          _
        // Predicated region
        $region41: #{cnn_forward.1} parent=11 // pred_check
          %p502 = pneg %p226
        $region42: #{cnn_forward.1} parent=11 // pred_check_branch
          %504 = sbr.rel (%p502) target = $region44
        $region43: #{cnn_forward.1} parent=11 // pred_region
          _
        $region44: #{cnn_forward.1} parent=11 // pred_fallthru
          _
        // Predicated region
        $region45: #{cnn_forward.1} parent=11 // pred_check
          %p505 = pneg %p247
        $region46: #{cnn_forward.1} parent=11 // pred_check_branch
          %507 = sbr.rel (%p505) target = $region48
        $region47: #{cnn_forward.1} parent=11 // pred_region
          %s509 = ssub.s32 4096, 4096
          %510 = vsyncadd [#allocation12], %s509
          %s511 = sshll.u32 [#allocation11], 4
          %s512 = int_to_ptr.vmem [resolvable:$true] %s511
          %517 = dma.hbm_to_vmem [thread:$0]  %s9, 4096, %s512, [#allocation12], 256, 256, 16
        $region48: #{cnn_forward.1} parent=11 // pred_fallthru
          _
        // Predicated region
        $region49: #{cnn_forward.1} parent=11 // pred_check
          %p518 = pneg %p268
        $region50: #{cnn_forward.1} parent=11 // pred_check_branch
          %520 = sbr.rel (%p518) target = $region52
        $region51: #{cnn_forward.1} parent=11 // pred_region
          %s522 = ssub.s32 4096, 4096
          %523 = vsyncadd [#allocation12], %s522
          %s524 = sshll.u32 [#allocation13], 4
          %s525 = int_to_ptr.vmem [resolvable:$true] %s524
          %530 = dma.hbm_to_vmem [thread:$0]  %s10, 4096, %s525, [#allocation12], 256, 256, 16
        $region52: #{cnn_forward.1} parent=11 // pred_fallthru
          _
        // Predicated region
        $region53: #{cnn_forward.1} parent=11 // pred_check
          %p531 = pneg %p289
        $region54: #{cnn_forward.1} parent=11 // pred_check_branch
          %533 = sbr.rel (%p531) target = $region56
        $region55: #{cnn_forward.1} parent=11 // pred_region
          %s535 = ssub.s32 4096, 4096
          %536 = vsyncadd [#allocation15], %s535
          %s537 = sshll.u32 [#allocation14], 4
          %s538 = int_to_ptr.vmem [resolvable:$true] %s537
          %543 = dma.hbm_to_vmem [thread:$0]  %s11, 4096, %s538, [#allocation15], 256, 256, 16
        $region56: #{cnn_forward.1} parent=11 // pred_fallthru
          _
        // Predicated region
        $region57: #{cnn_forward.1} parent=11 // pred_check
          %p544 = pneg %p310
        $region58: #{cnn_forward.1} parent=11 // pred_check_branch
          %546 = sbr.rel (%p544) target = $region60
        $region59: #{cnn_forward.1} parent=11 // pred_region
          _
        $region60: #{cnn_forward.1} parent=11 // pred_fallthru
          _
        // Predicated region
        $region61: #{cnn_forward.1} parent=11 // pred_check
          %p547 = pneg %p331
        $region62: #{cnn_forward.1} parent=11 // pred_check_branch
          %549 = sbr.rel (%p547) target = $region64
        $region63: #{cnn_forward.1} parent=11 // pred_region
          %s551 = ssub.s32 16384, 16384
          %552 = vsyncadd [#allocation15], %s551
          %s553 = sshll.u32 [#allocation16], 4
          %s554 = int_to_ptr.vmem [resolvable:$true] %s553
          %559 = dma.hbm_to_vmem [thread:$0]  %s13, 16384, %s554, [#allocation15], 128, 128, 8
        $region64: #{cnn_forward.1} parent=11 // pred_fallthru
          _
        // Predicated region
        $region65: #{cnn_forward.1} parent=11 // pred_check
          %p560 = pneg %p352
        $region66: #{cnn_forward.1} parent=11 // pred_check_branch
          %562 = sbr.rel (%p560) target = $region68
        $region67: #{cnn_forward.1} parent=11 // pred_region
          %s564 = ssub.s32 16, 16
          %565 = vsyncadd [#allocation18], %s564
          %s567 = sshll.u32 [#allocation17], 4
          %s568 = int_to_ptr.vmem [resolvable:$true] %s567
          %570 = dma.hbm_to_vmem [thread:$0]  %s14, 16, %s568, [#allocation18]
        $region68: #{cnn_forward.1} parent=11 // pred_fallthru
          _
        // Predicated region
        $region69: #{cnn_forward.1} parent=11 // pred_check
          %p571 = pneg %p373
        $region70: #{cnn_forward.1} parent=11 // pred_check_branch
          %573 = sbr.rel (%p571) target = $region72
        $region71: #{cnn_forward.1} parent=11 // pred_region
          _
        $region72: #{cnn_forward.1} parent=11 // pred_fallthru
          _
        // Predicated region
        $region73: #{cnn_forward.1} parent=11 // pred_check
          %p574 = pneg %p394
        $region74: #{cnn_forward.1} parent=11 // pred_check_branch
          %576 = sbr.rel (%p574) target = $region76
        $region75: #{cnn_forward.1} parent=11 // pred_region
          %s578 = ssub.s32 16, 16
          %579 = vsyncadd [#allocation18], %s578
          %s581 = sshll.u32 [#allocation19], 4
          %s582 = int_to_ptr.vmem [resolvable:$true] %s581
          %584 = dma.hbm_to_vmem [thread:$0]  %s16, 16, %s582, [#allocation18]
        $region76: #{cnn_forward.1} parent=11 // pred_fallthru
          _
      $region12: #{cnn_forward.1} parent=5 // pred_fallthru
        _
      %p585 = scmp.lt.s32.totalorder %s32, 2
      // Predicated region
      $region77: #{cnn_forward.1} parent=5 // pred_check
        %p586 = pneg %p585
      $region78: #{cnn_forward.1} parent=5 // pred_check_branch
        %588 = sbr.rel (%p586) target = $region80
      $region79: #{cnn_forward.1} parent=5 // pred_region
        // Predicated region
        $region81: #{cnn_forward.1} parent=79 // pred_check
          %p589 = pneg %p52
        $region82: #{cnn_forward.1} parent=79 // pred_check_branch
          %591 = sbr.rel (%p589) target = $region84
        $region83: #{cnn_forward.1} parent=79 // pred_region
          %s592 = smul.u32 4, %s32
          %p593 = scmp.lt.s32.totalorder %s592, 7
          %s594 = scalar_select %p593, %s592, 7
          %s595 = smul.addr %s594, 8
          %s596 = scalar_lea.vmem %s0, %s595
          %s597 = smul.u32 4, %s32
        $region84: #{cnn_forward.1} parent=79 // pred_fallthru
          _
      $region80: #{cnn_forward.1} parent=5 // pred_fallthru
        _
      %p598 = scmp.le.s32.totalorder 1, %s32
      %p599 = scmp.lt.s32.totalorder %s32, 3
      %p600 = pnand %p598, %p599
      %p601 = pneg %p600
      // Predicated region
      $region85: #{cnn_forward.1} parent=5 // pred_check
        _
      $region86: #{cnn_forward.1} parent=5 // pred_check_branch
        %603 = sbr.rel (%p600) target = $region88
      $region87: #{cnn_forward.1} parent=5 // pred_region
        %s604 = ssub.s32 %s32, 1
        // Predicated region
        $region89: #{cnn_forward.1} parent=87 // pred_check
          %p605 = pneg %p100
        $region90: #{cnn_forward.1} parent=87 // pred_check_branch
          %607 = sbr.rel (%p605) target = $region92
        $region91: #{cnn_forward.1} parent=87 // pred_region
          %608 = dma.done [#allocation3], 128
        $region92: #{cnn_forward.1} parent=87 // pred_fallthru
          _
        // Predicated region
        $region93: #{cnn_forward.1} parent=87 // pred_check
          %p609 = pneg %p121
        $region94: #{cnn_forward.1} parent=87 // pred_check_branch
          %611 = sbr.rel (%p609) target = $region96
        $region95: #{cnn_forward.1} parent=87 // pred_region
          %612 = dma.done [#allocation6], 128
        $region96: #{cnn_forward.1} parent=87 // pred_fallthru
          _
        // Predicated region
        $region97: #{cnn_forward.1} parent=87 // pred_check
          %p613 = pneg %p163
        $region98: #{cnn_forward.1} parent=87 // pred_check_branch
          %615 = sbr.rel (%p613) target = $region100
        $region99: #{cnn_forward.1} parent=87 // pred_region
          %616 = dma.done [#allocation6], 1024
        $region100: #{cnn_forward.1} parent=87 // pred_fallthru
          _
        // Predicated region
        $region101: #{cnn_forward.1} parent=87 // pred_check
          %p617 = pneg %p184
        $region102: #{cnn_forward.1} parent=87 // pred_check_branch
          %619 = sbr.rel (%p617) target = $region104
        $region103: #{cnn_forward.1} parent=87 // pred_region
          %620 = dma.done [#allocation9], 1024
        $region104: #{cnn_forward.1} parent=87 // pred_fallthru
          _
        // Predicated region
        $region105: #{cnn_forward.1} parent=87 // pred_check
          %p621 = pneg %p205
        $region106: #{cnn_forward.1} parent=87 // pred_check_branch
          %623 = sbr.rel (%p621) target = $region108
        $region107: #{cnn_forward.1} parent=87 // pred_region
          %624 = dma.done [#allocation9], 1024
        $region108: #{cnn_forward.1} parent=87 // pred_fallthru
          _
        // Predicated region
        $region109: #{cnn_forward.1} parent=87 // pred_check
          %p625 = pneg %p247
        $region110: #{cnn_forward.1} parent=87 // pred_check_branch
          %627 = sbr.rel (%p625) target = $region112
        $region111: #{cnn_forward.1} parent=87 // pred_region
          %628 = dma.done [#allocation12], 4096
        $region112: #{cnn_forward.1} parent=87 // pred_fallthru
          _
        // Predicated region
        $region113: #{cnn_forward.1} parent=87 // pred_check
          %p629 = pneg %p268
        $region114: #{cnn_forward.1} parent=87 // pred_check_branch
          %631 = sbr.rel (%p629) target = $region116
        $region115: #{cnn_forward.1} parent=87 // pred_region
          %632 = dma.done [#allocation12], 4096
        $region116: #{cnn_forward.1} parent=87 // pred_fallthru
          _
        // Predicated region
        $region117: #{cnn_forward.1} parent=87 // pred_check
          %p633 = pneg %p289
        $region118: #{cnn_forward.1} parent=87 // pred_check_branch
          %635 = sbr.rel (%p633) target = $region120
        $region119: #{cnn_forward.1} parent=87 // pred_region
          %636 = dma.done [#allocation15], 4096
        $region120: #{cnn_forward.1} parent=87 // pred_fallthru
          _
        // Predicated region
        $region121: #{cnn_forward.1} parent=87 // pred_check
          %p637 = pneg %p331
        $region122: #{cnn_forward.1} parent=87 // pred_check_branch
          %639 = sbr.rel (%p637) target = $region124
        $region123: #{cnn_forward.1} parent=87 // pred_region
          %640 = dma.done [#allocation15], 16384
        $region124: #{cnn_forward.1} parent=87 // pred_fallthru
          _
        // Predicated region
        $region125: #{cnn_forward.1} parent=87 // pred_check
          %p641 = pneg %p352
        $region126: #{cnn_forward.1} parent=87 // pred_check_branch
          %643 = sbr.rel (%p641) target = $region128
        $region127: #{cnn_forward.1} parent=87 // pred_region
          %644 = dma.done [#allocation18], 16
        $region128: #{cnn_forward.1} parent=87 // pred_fallthru
          _
        // Predicated region
        $region129: #{cnn_forward.1} parent=87 // pred_check
          %p645 = pneg %p394
        $region130: #{cnn_forward.1} parent=87 // pred_check_branch
          %647 = sbr.rel (%p645) target = $region132
        $region131: #{cnn_forward.1} parent=87 // pred_region
          %648 = dma.done [#allocation18], 16
        $region132: #{cnn_forward.1} parent=87 // pred_fallthru
          _
        %s649 = smul.u32 4, %s37
        %p650 = scmp.lt.s32.totalorder %s649, 7
        %s651 = scalar_select %p650, %s649, 7
        %s652 = smul.addr %s651, 8
        %s653 = scalar_lea.vmem %s0, %s652
        %p654 = pneg %p58
        %p655 = pneg %p55
        %p656 = pneg %p79
        %p657 = pneg %p76
        %p658 = pneg %p100
        %p659 = pneg %p97
        %p660 = pneg %p121
        %p661 = pneg %p118
        %p662 = pneg %p142
        %p663 = pneg %p139
        %p664 = pneg %p163
        %p665 = pneg %p160
        %p666 = pneg %p184
        %p667 = pneg %p181
        %p668 = pneg %p205
        %p669 = pneg %p202
        %p670 = pneg %p226
        %p671 = pneg %p223
        %p672 = pneg %p247
        %p673 = pneg %p244
        %p674 = pneg %p268
        %p675 = pneg %p265
        %p676 = pneg %p289
        %p677 = pneg %p286
        %p678 = pneg %p310
        %p679 = pneg %p307
        %p680 = pneg %p331
        %p681 = pneg %p328
        %p682 = pneg %p352
        %p683 = pneg %p349
        %p684 = pneg %p373
        %p685 = pneg %p370
        %p686 = pneg %p394
        %p687 = pneg %p391
        %p688 = pneg %p420
        %p689 = pneg %p417
        %s690 = sand.u32 %s407, 1
        %s691 = scalar_lea.sflag [#allocation4], %s690
        %s692 = sand.u32 %s407, 1
        %s693 = scalar_lea.vmem [#allocation20], %s692
        %s694 = smul.u32 4, %s37
        %p695 = scmp.lt.s32.totalorder %s694, 7
        %s696 = scalar_select %p695, %s694, 7
        %s697 = smul.addr %s696, 8
        %s698 = scalar_lea.vmem %s0, %s697
        %s699 = smul.u32 4, %s37
        %v700 = vld [vmem:[%s698] sm:$0xff]
        %v701 = vld [vmem:[%s698 + $0x8] sm:$0xff]
        %v702 = vld [vmem:[%s698 + $0x10] sm:$0xff]
        %v703 = vld [vmem:[%s698 + $0x18] sm:$0xff]
        %v704 = vld [vmem:[%s1] sm:$0x3f]
        %v705 = vld [vmem:[#allocation2] sm:$0x3f]
        %v706 = vld [vmem:[#allocation5] sm:$0x3f]
        %v707 = vld [vmem:[%s4] sm:$0x1]
        %v708 = vlaneseq
        %v709 = vshrl.u32 %v708, 7
        %v710 = vadd.s32 %v709, 8
        %v711 = vadd.s32 %v709, 16
        %v712 = vadd.s32 %v709, 24
        %vm713 = vcmp.lt.s32.totalorder %v709, 0
        %v714 = vsub.s32 0, %v709
        %v715 = vsel %vm713, %v714, %v709
        %v716 = vshrl.u32 %v715, 5
        %v717 = vand.u32 %v715, 31
        %v718 = vsub.s32 0, %v717
        %v719 = vsel %vm713, %v718, %v717
        %vm720 = vcmp.lt.s32.totalorder %v710, 0
        %v721 = vsub.s32 0, %v710
        %v722 = vsel %vm720, %v721, %v710
        %v723 = vshrl.u32 %v722, 5
        %v724 = vand.u32 %v722, 31
        %v725 = vsub.s32 0, %v724
        %v726 = vsel %vm720, %v725, %v724
        %vm727 = vcmp.lt.s32.totalorder %v711, 0
        %v728 = vsub.s32 0, %v711
        %v729 = vsel %vm727, %v728, %v711
        %v730 = vshrl.u32 %v729, 5
        %v731 = vand.u32 %v729, 31
        %v732 = vsub.s32 0, %v731
        %v733 = vsel %vm727, %v732, %v731
        %vm734 = vcmp.lt.s32.totalorder %v712, 0
        %v735 = vsub.s32 0, %v712
        %v736 = vsel %vm734, %v735, %v712
        %v737 = vshrl.u32 %v736, 5
        %v738 = vand.u32 %v736, 31
        %v739 = vsub.s32 0, %v738
        %v740 = vsel %vm734, %v739, %v738
        %vm741 = vcmp.ne.s32.totalorder %v719, 0
        %vm742 = vcmp.ne.s32.totalorder %v726, 0
        %vm743 = vcmp.ne.s32.totalorder %v733, 0
        %vm744 = vcmp.ne.s32.totalorder %v740, 0
        %vm745 = vcmp.lt.s32.totalorder %v719, 0
        %vm746 = vcmp.lt.s32.totalorder %v726, 0
        %vm747 = vcmp.lt.s32.totalorder %v733, 0
        %vm748 = vcmp.lt.s32.totalorder %v740, 0
        %vm749 = vmand %vm745, %vm741
        %vm750 = vmand %vm746, %vm742
        %vm751 = vmand %vm747, %vm743
        %vm752 = vmand %vm748, %vm744
        %v753 = vadd.s32 %v719, 32
        %v754 = vadd.s32 %v726, 32
        %v755 = vadd.s32 %v733, 32
        %v756 = vadd.s32 %v740, 32
        %v757 = vsel %vm749, %v753, %v719
        %v758 = vsel %vm750, %v754, %v726
        %v759 = vsel %vm751, %v755, %v733
        %v760 = vsel %vm752, %v756, %v740
        %vm761 = vcmp.eq.s32.totalorder %v757, 0
        %vm762 = vcmp.eq.s32.totalorder %v758, 0
        %vm763 = vcmp.eq.s32.totalorder %v759, 0
        %vm764 = vcmp.eq.s32.totalorder %v760, 0
        %v765 = vrot.slane %v700, 7
        %v766 = vrot.slane %v701, 7
        %v767 = vrot.slane %v702, 7
        %v768 = vrot.slane %v703, 7
        %vm769 = vcmp.lt.s32.totalorder %v709, 1
        %v770 = vsel %vm769, %v767, %v768
        %v771 = vsel %vm769, %v766, %v767
        %v772 = vsel %vm769, %v765, %v766
        %v773 = vsel %vm769, %v768, %v765
        %v774 = vsel %vm761, 0.0, %v773
        %v775 = vsel %vm762, 0.0, %v772
        %v776 = vsel %vm763, 0.0, %v771
        %v777 = vsel %vm764, 0.0, %v770
        %vm778 = vcmp.eq.s32.totalorder %v757, 31
        %vm779 = vcmp.eq.s32.totalorder %v758, 31
        %vm780 = vcmp.eq.s32.totalorder %v759, 31
        %vm781 = vcmp.eq.s32.totalorder %v760, 31
        %v782 = vrot.slane %v700, 1
        %v783 = vrot.slane %v701, 1
        %v784 = vrot.slane %v702, 1
        %v785 = vrot.slane %v703, 1
        %vm786 = vcmp.lt.s32.totalorder %v709, 7
        %v787 = vsel %vm786, %v784, %v785
        %v788 = vsel %vm786, %v783, %v784
        %v789 = vsel %vm786, %v782, %v783
        %v790 = vsel %vm786, %v785, %v782
        %v791 = vsel %vm778, 0.0, %v789
        %v792 = vsel %vm779, 0.0, %v788
        %v793 = vsel %vm780, 0.0, %v787
        %v794 = vsel %vm781, 0.0, %v790
        %vm795 = vcmask 48128
        %v797 = vsel %vm795, %v700, 0
        %v800 = vsel %vm795, %v701, 0
        %v803 = vsel %vm795, %v702, 0
        %v806 = vsel %vm795, %v703, 0
        %vm808 = vcmask 1045504
        %v810 = vsel %vm808, %v705, 0
        %812 = vmatprep.subr.mxu0 0.0
        %813 = vmatpush1.msra.mxu0 %v810
        %814 = vmatprep.subr.mxu0 0.0
        %815 = vmatpush1.msra.mxu0 0.0
        %816 = vmatprep.subr.mxu0 0.0
        %817 = vmatpush1.msra.mxu0 0.0
        %818 = vmatprep.subr.mxu0 0.0
        %819 = vmatpush1.msra.mxu0 0.0
        %820 = vmatprep.subr.mxu0 0.0
        %821 = vmatpush1.msra.mxu0 0.0
        %822 = vmatprep.subr.mxu0 0.0
        %823 = vmatpush1.msra.mxu0 0.0
        %824 = vmatprep.subr.mxu0 0.0
        %825 = vmatpush1.msra.mxu0 0.0
        %826 = vmatprep.subr.mxu0 0.0
        %827 = vmatpush1.msra.mxu0 0.0
        %828 = vmatprep.subr.mxu0 0.0
        %829 = vmatpush1.msra.mxu0 0.0
        %830 = vmatprep.subr.mxu0 0.0
        %831 = vmatpush1.msra.mxu0 0.0
        %832 = vmatprep.subr.mxu0 0.0
        %833 = vmatpush1.msra.mxu0 0.0
        %834 = vmatprep.subr.mxu0 0.0
        %835 = vmatpush1.msra.mxu0 0.0
        %836 = vmatprep.subr.mxu0 0.0
        %837 = vmatpush1.msra.mxu0 0.0
        %838 = vmatprep.subr.mxu0 0.0
        %839 = vmatpush1.msra.mxu0 0.0
        %840 = vmatprep.subr.mxu0 0.0
        %841 = vmatpush1.msra.mxu0 0.0
        %842 = vmatprep.subr.mxu0 0.0
        %843 = vmatpush1.msra.mxu0 0.0
        %844 = vmatprep.subr.mxu0 0.0
        %845 = vmatpush1.msra.mxu0 0.0
        %846 = vmatprep.subr.mxu0 0.0
        %847 = vmatpush1.msra.mxu0 0.0
        %848 = vmatprep.subr.mxu0 0.0
        %849 = vmatpush1.msra.mxu0 0.0
        %850 = vmatprep.subr.mxu0 0.0
        %851 = vmatpush1.msra.mxu0 0.0
        %852 = vmatprep.subr.mxu0 0.0
        %853 = vmatpush1.msra.mxu0 0.0
        %854 = vmatprep.subr.mxu0 0.0
        %855 = vmatpush1.msra.mxu0 0.0
        %856 = vmatprep.subr.mxu0 0.0
        %857 = vmatpush1.msra.mxu0 0.0
        %858 = vmatprep.subr.mxu0 0.0
        %859 = vmatpush1.msra.mxu0 0.0
        %860 = vmatprep.subr.mxu0 0.0
        %861 = vmatpush1.msra.mxu0 0.0
        %862 = vmatprep.subr.mxu0 0.0
        %863 = vmatpush1.msra.mxu0 0.0
        %864 = vmatprep.subr.mxu0 0.0
        %865 = vmatpush1.msra.mxu0 0.0
        %866 = vmatprep.subr.mxu0 0.0
        %867 = vmatpush1.msra.mxu0 0.0
        %868 = vmatprep.subr.mxu0 0.0
        %869 = vmatpush1.msra.mxu0 0.0
        %870 = vmatprep.subr.mxu0 0.0
        %871 = vmatpush1.msra.mxu0 0.0
        %872 = vmatprep.subr.mxu0 0.0
        %873 = vmatpush1.msra.mxu0 0.0
        %874 = vmatprep.subr.mxu0 0.0
        %875 = vmatpush1.msra.mxu0 0.0
        %876 = vmatprep.mubr.f32.mxu0 0.0
        %877 = vmatmul.mubr.f32.gmra.mrb[0].mxu0 %v797
        %v878 = vpop.f32.mrb[0].mxu0
        %v879 = vadd.f32 0.0, %v878
        %v880 = vpop.f32.mrb[0].mxu0
        %881 = vmatprep.mubr.f32.mxu0 0.0
        %882 = vmatmul.mubr.f32.gmra.mrb[0].mxu0 %v800
        %v883 = vpop.f32.mrb[0].mxu0
        %v884 = vadd.f32 0.0, %v883
        %v885 = vpop.f32.mrb[0].mxu0
        %886 = vmatprep.mubr.f32.mxu0 0.0
        %887 = vmatmul.mubr.f32.gmra.mrb[0].mxu0 %v803
        %v888 = vpop.f32.mrb[0].mxu0
        %v889 = vadd.f32 0.0, %v888
        %v890 = vpop.f32.mrb[0].mxu0
        %891 = vmatprep.mubr.f32.mxu0 0.0
        %892 = vmatmul.mubr.f32.gmra.mrb[0].mxu0 %v806
        %v893 = vpop.f32.mrb[0].mxu0
        %v894 = vadd.f32 0.0, %v893
        %v895 = vpop.f32.mrb[0].mxu0
        %896 = vdwg.mxu0
        %v898 = vsel %vm795, %v774, 0
        %v901 = vsel %vm795, %v775, 0
        %v904 = vsel %vm795, %v776, 0
        %v907 = vsel %vm795, %v777, 0
        %v910 = vsel %vm808, %v704, 0
        %912 = vmatprep.subr.mxu0 0.0
        %913 = vmatpush1.msra.mxu0 %v910
        %914 = vmatprep.subr.mxu0 0.0
        %915 = vmatpush1.msra.mxu0 0.0
        %916 = vmatprep.subr.mxu0 0.0
        %917 = vmatpush1.msra.mxu0 0.0
        %918 = vmatprep.subr.mxu0 0.0
        %919 = vmatpush1.msra.mxu0 0.0
        %920 = vmatprep.subr.mxu0 0.0
        %921 = vmatpush1.msra.mxu0 0.0
        %922 = vmatprep.subr.mxu0 0.0
        %923 = vmatpush1.msra.mxu0 0.0
        %924 = vmatprep.subr.mxu0 0.0
        %925 = vmatpush1.msra.mxu0 0.0
        %926 = vmatprep.subr.mxu0 0.0
        %927 = vmatpush1.msra.mxu0 0.0
        %928 = vmatprep.subr.mxu0 0.0
        %929 = vmatpush1.msra.mxu0 0.0
        %930 = vmatprep.subr.mxu0 0.0
        %931 = vmatpush1.msra.mxu0 0.0
        %932 = vmatprep.subr.mxu0 0.0
        %933 = vmatpush1.msra.mxu0 0.0
        %934 = vmatprep.subr.mxu0 0.0
        %935 = vmatpush1.msra.mxu0 0.0
        %936 = vmatprep.subr.mxu0 0.0
        %937 = vmatpush1.msra.mxu0 0.0
        %938 = vmatprep.subr.mxu0 0.0
        %939 = vmatpush1.msra.mxu0 0.0
        %940 = vmatprep.subr.mxu0 0.0
        %941 = vmatpush1.msra.mxu0 0.0
        %942 = vmatprep.subr.mxu0 0.0
        %943 = vmatpush1.msra.mxu0 0.0
        %944 = vmatprep.subr.mxu0 0.0
        %945 = vmatpush1.msra.mxu0 0.0
        %946 = vmatprep.subr.mxu0 0.0
        %947 = vmatpush1.msra.mxu0 0.0
        %948 = vmatprep.subr.mxu0 0.0
        %949 = vmatpush1.msra.mxu0 0.0
        %950 = vmatprep.subr.mxu0 0.0
        %951 = vmatpush1.msra.mxu0 0.0
        %952 = vmatprep.subr.mxu0 0.0
        %953 = vmatpush1.msra.mxu0 0.0
        %954 = vmatprep.subr.mxu0 0.0
        %955 = vmatpush1.msra.mxu0 0.0
        %956 = vmatprep.subr.mxu0 0.0
        %957 = vmatpush1.msra.mxu0 0.0
        %958 = vmatprep.subr.mxu0 0.0
        %959 = vmatpush1.msra.mxu0 0.0
        %960 = vmatprep.subr.mxu0 0.0
        %961 = vmatpush1.msra.mxu0 0.0
        %962 = vmatprep.subr.mxu0 0.0
        %963 = vmatpush1.msra.mxu0 0.0
        %964 = vmatprep.subr.mxu0 0.0
        %965 = vmatpush1.msra.mxu0 0.0
        %966 = vmatprep.subr.mxu0 0.0
        %967 = vmatpush1.msra.mxu0 0.0
        %968 = vmatprep.subr.mxu0 0.0
        %969 = vmatpush1.msra.mxu0 0.0
        %970 = vmatprep.subr.mxu0 0.0
        %971 = vmatpush1.msra.mxu0 0.0
        %972 = vmatprep.subr.mxu0 0.0
        %973 = vmatpush1.msra.mxu0 0.0
        %974 = vmatprep.subr.mxu0 0.0
        %975 = vmatpush1.msra.mxu0 0.0
        %976 = vmatprep.mubr.f32.mxu0 0.0
        %977 = vmatmul.mubr.f32.gmra.mrb[0].mxu0 %v898
        %v978 = vpop.f32.mrb[0].mxu0
        %v979 = vadd.f32 %v879, %v978
        %v980 = vpop.f32.mrb[0].mxu0
        %981 = vmatprep.mubr.f32.mxu0 0.0
        %982 = vmatmul.mubr.f32.gmra.mrb[0].mxu0 %v901
        %v983 = vpop.f32.mrb[0].mxu0
        %v984 = vadd.f32 %v884, %v983
        %v985 = vpop.f32.mrb[0].mxu0
        %986 = vmatprep.mubr.f32.mxu0 0.0
        %987 = vmatmul.mubr.f32.gmra.mrb[0].mxu0 %v904
        %v988 = vpop.f32.mrb[0].mxu0
        %v989 = vadd.f32 %v889, %v988
        %v990 = vpop.f32.mrb[0].mxu0
        %991 = vmatprep.mubr.f32.mxu0 0.0
        %992 = vmatmul.mubr.f32.gmra.mrb[0].mxu0 %v907
        %v993 = vpop.f32.mrb[0].mxu0
        %v994 = vadd.f32 %v894, %v993
        %v995 = vpop.f32.mrb[0].mxu0
        %996 = vdwg.mxu0
        %v998 = vsel %vm795, %v791, 0
        %v1001 = vsel %vm795, %v792, 0
        %v1004 = vsel %vm795, %v793, 0
        %v1007 = vsel %vm795, %v794, 0
        %v1010 = vsel %vm808, %v706, 0
        %1012 = vmatprep.subr.mxu0 0.0
        %1013 = vmatpush1.msra.mxu0 %v1010
        %1014 = vmatprep.subr.mxu0 0.0
        %1015 = vmatpush1.msra.mxu0 0.0
        %1016 = vmatprep.subr.mxu0 0.0
        %1017 = vmatpush1.msra.mxu0 0.0
        %1018 = vmatprep.subr.mxu0 0.0
        %1019 = vmatpush1.msra.mxu0 0.0
        %1020 = vmatprep.subr.mxu0 0.0
        %1021 = vmatpush1.msra.mxu0 0.0
        %1022 = vmatprep.subr.mxu0 0.0
        %1023 = vmatpush1.msra.mxu0 0.0
        %1024 = vmatprep.subr.mxu0 0.0
        %1025 = vmatpush1.msra.mxu0 0.0
        %1026 = vmatprep.subr.mxu0 0.0
        %1027 = vmatpush1.msra.mxu0 0.0
        %1028 = vmatprep.subr.mxu0 0.0
        %1029 = vmatpush1.msra.mxu0 0.0
        %1030 = vmatprep.subr.mxu0 0.0
        %1031 = vmatpush1.msra.mxu0 0.0
        %1032 = vmatprep.subr.mxu0 0.0
        %1033 = vmatpush1.msra.mxu0 0.0
        %1034 = vmatprep.subr.mxu0 0.0
        %1035 = vmatpush1.msra.mxu0 0.0
        %1036 = vmatprep.subr.mxu0 0.0
        %1037 = vmatpush1.msra.mxu0 0.0
        %1038 = vmatprep.subr.mxu0 0.0
        %1039 = vmatpush1.msra.mxu0 0.0
        %1040 = vmatprep.subr.mxu0 0.0
        %1041 = vmatpush1.msra.mxu0 0.0
        %1042 = vmatprep.subr.mxu0 0.0
        %1043 = vmatpush1.msra.mxu0 0.0
        %1044 = vmatprep.subr.mxu0 0.0
        %1045 = vmatpush1.msra.mxu0 0.0
        %1046 = vmatprep.subr.mxu0 0.0
        %1047 = vmatpush1.msra.mxu0 0.0
        %1048 = vmatprep.subr.mxu0 0.0
        %1049 = vmatpush1.msra.mxu0 0.0
        %1050 = vmatprep.subr.mxu0 0.0
        %1051 = vmatpush1.msra.mxu0 0.0
        %1052 = vmatprep.subr.mxu0 0.0
        %1053 = vmatpush1.msra.mxu0 0.0
        %1054 = vmatprep.subr.mxu0 0.0
        %1055 = vmatpush1.msra.mxu0 0.0
        %1056 = vmatprep.subr.mxu0 0.0
        %1057 = vmatpush1.msra.mxu0 0.0
        %1058 = vmatprep.subr.mxu0 0.0
        %1059 = vmatpush1.msra.mxu0 0.0
        %1060 = vmatprep.subr.mxu0 0.0
        %1061 = vmatpush1.msra.mxu0 0.0
        %1062 = vmatprep.subr.mxu0 0.0
        %1063 = vmatpush1.msra.mxu0 0.0
        %1064 = vmatprep.subr.mxu0 0.0
        %1065 = vmatpush1.msra.mxu0 0.0
        %1066 = vmatprep.subr.mxu0 0.0
        %1067 = vmatpush1.msra.mxu0 0.0
        %1068 = vmatprep.subr.mxu0 0.0
        %1069 = vmatpush1.msra.mxu0 0.0
        %1070 = vmatprep.subr.mxu0 0.0
        %1071 = vmatpush1.msra.mxu0 0.0
        %1072 = vmatprep.subr.mxu0 0.0
        %1073 = vmatpush1.msra.mxu0 0.0
        %1074 = vmatprep.subr.mxu0 0.0
        %1075 = vmatpush1.msra.mxu0 0.0
        %1076 = vmatprep.mubr.f32.mxu0 0.0
        %1077 = vmatmul.mubr.f32.gmra.mrb[0].mxu0 %v998
        %v1078 = vpop.f32.mrb[0].mxu0
        %v1079 = vadd.f32 0.0, %v1078
        %v1080 = vpop.f32.mrb[0].mxu0
        %1081 = vmatprep.mubr.f32.mxu0 0.0
        %1082 = vmatmul.mubr.f32.gmra.mrb[0].mxu0 %v1001
        %v1083 = vpop.f32.mrb[0].mxu0
        %v1084 = vadd.f32 0.0, %v1083
        %v1085 = vpop.f32.mrb[0].mxu0
        %1086 = vmatprep.mubr.f32.mxu0 0.0
        %1087 = vmatmul.mubr.f32.gmra.mrb[0].mxu0 %v1004
        %v1088 = vpop.f32.mrb[0].mxu0
        %v1089 = vadd.f32 0.0, %v1088
        %v1090 = vpop.f32.mrb[0].mxu0
        %1091 = vmatprep.mubr.f32.mxu0 0.0
        %1092 = vmatmul.mubr.f32.gmra.mrb[0].mxu0 %v1007
        %v1093 = vpop.f32.mrb[0].mxu0
        %v1094 = vadd.f32 0.0, %v1093
        %v1095 = vpop.f32.mrb[0].mxu0
        %1096 = vdwg.mxu0
        %v1097 = vadd.f32 %v979, %v1079
        %v1098 = vadd.f32 %v984, %v1084
        %v1099 = vadd.f32 %v989, %v1089
        %v1100 = vadd.f32 %v994, %v1094
        %v1102 = vlaneseq
        %v1103 = vshrl.u32 %v1102, 7
        %v1104 = vsub.s32 0, %v1103
        %v1105 = vrot.slane %v707, %v1104
        %v1107 = vadd.f32 %v1097, %v1105
        %v1108 = vadd.f32 %v1098, %v1105
        %v1109 = vadd.f32 %v1099, %v1105
        %v1110 = vadd.f32 %v1100, %v1105
        %v1111 = vmax.f32 %v1107, 0.0
        %v1112 = vmax.f32 %v1108, 0.0
        %v1113 = vmax.f32 %v1109, 0.0
        %v1114 = vmax.f32 %v1110, 0.0
        %v1119 = vcombine.high %v1111, %v1111
        %v1121 = vunpack.c.l.s4 1983009808
        %v1122 = vunpack.c.0.s8 %v1121
        %v1123 = vlaneseq
        %v1124 = vshrl.u32 %v1123, 7
        %v1125 = vsub.s32 %v1122, %v1124
        %v1126 = vrot.slane %v1111, %v1125
        %v1128 = vunpack.c.l.s4 1983009808
        %v1129 = vunpack.c.0.s8 %v1128
        %v1130 = vlaneseq
        %v1131 = vshrl.u32 %v1130, 7
        %v1132 = vsub.s32 %v1129, %v1131
        %v1133 = vrot.slane %v1119, %v1132
        %v1134 = vcombine.high %v1126, %v1126
        %v1135 = vcombine.high %v1133, %v1133
        %v1136 = vcombine.high %v1112, %v1112
        %v1138 = vunpack.c.l.s4 1983009808
        %v1139 = vunpack.c.0.s8 %v1138
        %v1140 = vlaneseq
        %v1141 = vshrl.u32 %v1140, 7
        %v1142 = vsub.s32 %v1139, %v1141
        %v1143 = vrot.slane %v1112, %v1142
        %v1145 = vunpack.c.l.s4 1983009808
        %v1146 = vunpack.c.0.s8 %v1145
        %v1147 = vlaneseq
        %v1148 = vshrl.u32 %v1147, 7
        %v1149 = vsub.s32 %v1146, %v1148
        %v1150 = vrot.slane %v1136, %v1149
        %v1151 = vcombine.high %v1143, %v1143
        %v1152 = vcombine.high %v1150, %v1150
        %v1153 = vcombine.high %v1113, %v1113
        %v1155 = vunpack.c.l.s4 1983009808
        %v1156 = vunpack.c.0.s8 %v1155
        %v1157 = vlaneseq
        %v1158 = vshrl.u32 %v1157, 7
        %v1159 = vsub.s32 %v1156, %v1158
        %v1160 = vrot.slane %v1113, %v1159
        %v1162 = vunpack.c.l.s4 1983009808
        %v1163 = vunpack.c.0.s8 %v1162
        %v1164 = vlaneseq
        %v1165 = vshrl.u32 %v1164, 7
        %v1166 = vsub.s32 %v1163, %v1165
        %v1167 = vrot.slane %v1153, %v1166
        %v1168 = vcombine.high %v1160, %v1160
        %v1169 = vcombine.high %v1167, %v1167
        %v1170 = vcombine.high %v1114, %v1114
        %v1172 = vunpack.c.l.s4 1983009808
        %v1173 = vunpack.c.0.s8 %v1172
        %v1174 = vlaneseq
        %v1175 = vshrl.u32 %v1174, 7
        %v1176 = vsub.s32 %v1173, %v1175
        %v1177 = vrot.slane %v1114, %v1176
        %v1179 = vunpack.c.l.s4 1983009808
        %v1180 = vunpack.c.0.s8 %v1179
        %v1181 = vlaneseq
        %v1182 = vshrl.u32 %v1181, 7
        %v1183 = vsub.s32 %v1180, %v1182
        %v1184 = vrot.slane %v1170, %v1183
        %v1185 = vcombine.high %v1177, %v1177
        %v1186 = vcombine.high %v1184, %v1184
        %vm1203 = vcmask 517120
        %v1204 = vsel %vm1203, %v1126, -inf
        %v1205 = vrot.slane %v1204, 4
        %v1206 = vmax.f32 %v1204, %v1205
        %v1207 = vrot.slane %v1206, 2
        %v1208 = vmax.f32 %v1206, %v1207
        %v1209 = vrot.slane %v1208, 1
        %v1210 = vmax.f32 %v1208, %v1209
        %v1211 = vsel %vm1203, %v1134, -inf
        %v1212 = vrot.slane %v1211, 4
        %v1213 = vmax.f32 %v1211, %v1212
        %v1214 = vrot.slane %v1213, 2
        %v1215 = vmax.f32 %v1213, %v1214
        %v1216 = vrot.slane %v1215, 1
        %v1217 = vmax.f32 %v1215, %v1216
        %v1218 = vsel %vm1203, %v1133, -inf
        %v1219 = vrot.slane %v1218, 4
        %v1220 = vmax.f32 %v1218, %v1219
        %v1221 = vrot.slane %v1220, 2
        %v1222 = vmax.f32 %v1220, %v1221
        %v1223 = vrot.slane %v1222, 1
        %v1224 = vmax.f32 %v1222, %v1223
        %v1225 = vsel %vm1203, %v1135, -inf
        %v1226 = vrot.slane %v1225, 4
        %v1227 = vmax.f32 %v1225, %v1226
        %v1228 = vrot.slane %v1227, 2
        %v1229 = vmax.f32 %v1227, %v1228
        %v1230 = vrot.slane %v1229, 1
        %v1231 = vmax.f32 %v1229, %v1230
        %v1232 = vsel %vm1203, %v1143, -inf
        %v1233 = vrot.slane %v1232, 4
        %v1234 = vmax.f32 %v1232, %v1233
        %v1235 = vrot.slane %v1234, 2
        %v1236 = vmax.f32 %v1234, %v1235
        %v1237 = vrot.slane %v1236, 1
        %v1238 = vmax.f32 %v1236, %v1237
        %v1239 = vsel %vm1203, %v1151, -inf
        %v1240 = vrot.slane %v1239, 4
        %v1241 = vmax.f32 %v1239, %v1240
        %v1242 = vrot.slane %v1241, 2
        %v1243 = vmax.f32 %v1241, %v1242
        %v1244 = vrot.slane %v1243, 1
        %v1245 = vmax.f32 %v1243, %v1244
        %v1246 = vsel %vm1203, %v1150, -inf
        %v1247 = vrot.slane %v1246, 4
        %v1248 = vmax.f32 %v1246, %v1247
        %v1249 = vrot.slane %v1248, 2
        %v1250 = vmax.f32 %v1248, %v1249
        %v1251 = vrot.slane %v1250, 1
        %v1252 = vmax.f32 %v1250, %v1251
        %v1253 = vsel %vm1203, %v1152, -inf
        %v1254 = vrot.slane %v1253, 4
        %v1255 = vmax.f32 %v1253, %v1254
        %v1256 = vrot.slane %v1255, 2
        %v1257 = vmax.f32 %v1255, %v1256
        %v1258 = vrot.slane %v1257, 1
        %v1259 = vmax.f32 %v1257, %v1258
        %v1260 = vsel %vm1203, %v1160, -inf
        %v1261 = vrot.slane %v1260, 4
        %v1262 = vmax.f32 %v1260, %v1261
        %v1263 = vrot.slane %v1262, 2
        %v1264 = vmax.f32 %v1262, %v1263
        %v1265 = vrot.slane %v1264, 1
        %v1266 = vmax.f32 %v1264, %v1265
        %v1267 = vsel %vm1203, %v1168, -inf
        %v1268 = vrot.slane %v1267, 4
        %v1269 = vmax.f32 %v1267, %v1268
        %v1270 = vrot.slane %v1269, 2
        %v1271 = vmax.f32 %v1269, %v1270
        %v1272 = vrot.slane %v1271, 1
        %v1273 = vmax.f32 %v1271, %v1272
        %v1274 = vsel %vm1203, %v1167, -inf
        %v1275 = vrot.slane %v1274, 4
        %v1276 = vmax.f32 %v1274, %v1275
        %v1277 = vrot.slane %v1276, 2
        %v1278 = vmax.f32 %v1276, %v1277
        %v1279 = vrot.slane %v1278, 1
        %v1280 = vmax.f32 %v1278, %v1279
        %v1281 = vsel %vm1203, %v1169, -inf
        %v1282 = vrot.slane %v1281, 4
        %v1283 = vmax.f32 %v1281, %v1282
        %v1284 = vrot.slane %v1283, 2
        %v1285 = vmax.f32 %v1283, %v1284
        %v1286 = vrot.slane %v1285, 1
        %v1287 = vmax.f32 %v1285, %v1286
        %v1288 = vsel %vm1203, %v1177, -inf
        %v1289 = vrot.slane %v1288, 4
        %v1290 = vmax.f32 %v1288, %v1289
        %v1291 = vrot.slane %v1290, 2
        %v1292 = vmax.f32 %v1290, %v1291
        %v1293 = vrot.slane %v1292, 1
        %v1294 = vmax.f32 %v1292, %v1293
        %v1295 = vsel %vm1203, %v1185, -inf
        %v1296 = vrot.slane %v1295, 4
        %v1297 = vmax.f32 %v1295, %v1296
        %v1298 = vrot.slane %v1297, 2
        %v1299 = vmax.f32 %v1297, %v1298
        %v1300 = vrot.slane %v1299, 1
        %v1301 = vmax.f32 %v1299, %v1300
        %v1302 = vsel %vm1203, %v1184, -inf
        %v1303 = vrot.slane %v1302, 4
        %v1304 = vmax.f32 %v1302, %v1303
        %v1305 = vrot.slane %v1304, 2
        %v1306 = vmax.f32 %v1304, %v1305
        %v1307 = vrot.slane %v1306, 1
        %v1308 = vmax.f32 %v1306, %v1307
        %v1309 = vsel %vm1203, %v1186, -inf
        %v1310 = vrot.slane %v1309, 4
        %v1311 = vmax.f32 %v1309, %v1310
        %v1312 = vrot.slane %v1311, 2
        %v1313 = vmax.f32 %v1311, %v1312
        %v1314 = vrot.slane %v1313, 1
        %v1315 = vmax.f32 %v1313, %v1314
        %v1316 = vld [vmem:[#allocation7] sm:$0xff]
        %v1317 = vld [vmem:[#allocation7 + $0x8] sm:$0xff]
        %v1318 = vld [vmem:[#allocation7 + $0x10] sm:$0xff]
        %v1319 = vld [vmem:[#allocation7 + $0x18] sm:$0xff]
        %v1320 = vld [vmem:[#allocation7 + $0x20] sm:$0xff]
        %v1321 = vld [vmem:[#allocation7 + $0x28] sm:$0xff]
        %v1322 = vld [vmem:[#allocation7 + $0x30] sm:$0xff]
        %v1323 = vld [vmem:[#allocation7 + $0x38] sm:$0xff]
        %v1324 = vld [vmem:[#allocation8] sm:$0xff]
        %v1325 = vld [vmem:[#allocation8 + $0x8] sm:$0xff]
        %v1326 = vld [vmem:[#allocation8 + $0x10] sm:$0xff]
        %v1327 = vld [vmem:[#allocation8 + $0x18] sm:$0xff]
        %v1328 = vld [vmem:[#allocation8 + $0x20] sm:$0xff]
        %v1329 = vld [vmem:[#allocation8 + $0x28] sm:$0xff]
        %v1330 = vld [vmem:[#allocation8 + $0x30] sm:$0xff]
        %v1331 = vld [vmem:[#allocation8 + $0x38] sm:$0xff]
        %v1332 = vld [vmem:[#allocation10] sm:$0xff]
        %v1333 = vld [vmem:[#allocation10 + $0x8] sm:$0xff]
        %v1334 = vld [vmem:[#allocation10 + $0x10] sm:$0xff]
        %v1335 = vld [vmem:[#allocation10 + $0x18] sm:$0xff]
        %v1336 = vld [vmem:[#allocation10 + $0x20] sm:$0xff]
        %v1337 = vld [vmem:[#allocation10 + $0x28] sm:$0xff]
        %v1338 = vld [vmem:[#allocation10 + $0x30] sm:$0xff]
        %v1339 = vld [vmem:[#allocation10 + $0x38] sm:$0xff]
        %v1340 = vld [vmem:[%s8] sm:$0x1]
        %vm1341 = vcmp.lt.s32.totalorder %v709, 0
        %v1342 = vsub.s32 0, %v709
        %v1343 = vsel %vm1341, %v1342, %v709
        %v1344 = vshrl.u32 %v1343, 4
        %v1345 = vand.u32 %v1343, 15
        %v1346 = vsub.s32 0, %v1345
        %v1347 = vsel %vm1341, %v1346, %v1345
        %vm1348 = vcmp.lt.s32.totalorder %v710, 0
        %v1349 = vsub.s32 0, %v710
        %v1350 = vsel %vm1348, %v1349, %v710
        %v1351 = vshrl.u32 %v1350, 4
        %v1352 = vand.u32 %v1350, 15
        %v1353 = vsub.s32 0, %v1352
        %v1354 = vsel %vm1348, %v1353, %v1352
        %vm1355 = vcmp.ne.s32.totalorder %v1347, 0
        %vm1356 = vcmp.ne.s32.totalorder %v1354, 0
        %vm1357 = vcmp.lt.s32.totalorder %v1347, 0
        %vm1358 = vcmp.lt.s32.totalorder %v1354, 0
        %vm1359 = vmand %vm1357, %vm1355
        %vm1360 = vmand %vm1358, %vm1356
        %v1361 = vadd.s32 %v1347, 16
        %v1362 = vadd.s32 %v1354, 16
        %v1363 = vsel %vm1359, %v1361, %v1347
        %v1364 = vsel %vm1360, %v1362, %v1354
        %vm1365 = vcmp.eq.s32.totalorder %v1363, 0
        %vm1366 = vcmp.eq.s32.totalorder %v1364, 0
        %vm1383 = vcmask 1041409
        %v1384 = vsel %vm1383, %v1217, %v1210
        %vm1385 = vcmask 1042434
        %v1386 = vsel %vm1385, %v1224, %v1384
        %vm1387 = vcmask 1043459
        %v1388 = vsel %vm1387, %v1231, %v1386
        %vm1389 = vcmask 1044484
        %v1390 = vsel %vm1389, %v1238, %v1388
        %vm1391 = vcmask 1045509
        %v1392 = vsel %vm1391, %v1245, %v1390
        %vm1393 = vcmask 1046534
        %v1394 = vsel %vm1393, %v1252, %v1392
        %vm1395 = vcmask 1047559
        %v1396 = vsel %vm1395, %v1259, %v1394
        %v1397 = vsel %vm1383, %v1273, %v1266
        %v1398 = vsel %vm1385, %v1280, %v1397
        %v1399 = vsel %vm1387, %v1287, %v1398
        %v1400 = vsel %vm1389, %v1294, %v1399
        %v1401 = vsel %vm1391, %v1301, %v1400
        %v1402 = vsel %vm1393, %v1308, %v1401
        %v1403 = vsel %vm1395, %v1315, %v1402
        %v1406 = vrot.slane %v1396, 7
        %v1407 = vrot.slane %v1403, 7
        %v1408 = vsel %vm769, %v1406, %v1407
        %v1409 = vsel %vm769, %v1407, %v1406
        %v1410 = vsel %vm1365, 0.0, %v1409
        %v1411 = vsel %vm1366, 0.0, %v1408
        %vm1412 = vcmp.eq.s32.totalorder %v1363, 15
        %vm1413 = vcmp.eq.s32.totalorder %v1364, 15
        %v1414 = vrot.slane %v1396, 1
        %v1415 = vrot.slane %v1403, 1
        %v1416 = vsel %vm786, %v1414, %v1415
        %v1417 = vsel %vm786, %v1415, %v1414
        %v1418 = vsel %vm1412, 0.0, %v1416
        %v1419 = vsel %vm1413, 0.0, %v1417
        %vm1420 = vcmask 523264
        %v1421 = vsel %vm1420, %v1396, 0
        %v1423 = vsel %vm1420, %v1403, 0
        %1425 = vmatprep.subr.mxu0 0.0
        %1426 = vmatpush1.msra.mxu0 %v1324
        %1427 = vmatprep.subr.mxu0 0.0
        %1428 = vmatpush1.msra.mxu0 %v1325
        %1429 = vmatprep.subr.mxu0 0.0
        %1430 = vmatpush1.msra.mxu0 %v1326
        %1431 = vmatprep.subr.mxu0 0.0
        %1432 = vmatpush1.msra.mxu0 %v1327
        %1433 = vmatprep.subr.mxu0 0.0
        %1434 = vmatpush1.msra.mxu0 %v1328
        %1435 = vmatprep.subr.mxu0 0.0
        %1436 = vmatpush1.msra.mxu0 %v1329
        %1437 = vmatprep.subr.mxu0 0.0
        %1438 = vmatpush1.msra.mxu0 %v1330
        %1439 = vmatprep.subr.mxu0 0.0
        %1440 = vmatpush1.msra.mxu0 %v1331
        %1441 = vmatprep.subr.mxu0 0.0
        %1442 = vmatpush1.msra.mxu0 0.0
        %1443 = vmatprep.subr.mxu0 0.0
        %1444 = vmatpush1.msra.mxu0 0.0
        %1445 = vmatprep.subr.mxu0 0.0
        %1446 = vmatpush1.msra.mxu0 0.0
        %1447 = vmatprep.subr.mxu0 0.0
        %1448 = vmatpush1.msra.mxu0 0.0
        %1449 = vmatprep.subr.mxu0 0.0
        %1450 = vmatpush1.msra.mxu0 0.0
        %1451 = vmatprep.subr.mxu0 0.0
        %1452 = vmatpush1.msra.mxu0 0.0
        %1453 = vmatprep.subr.mxu0 0.0
        %1454 = vmatpush1.msra.mxu0 0.0
        %1455 = vmatprep.subr.mxu0 0.0
        %1456 = vmatpush1.msra.mxu0 0.0
        %1457 = vmatprep.subr.mxu0 0.0
        %1458 = vmatpush1.msra.mxu0 0.0
        %1459 = vmatprep.subr.mxu0 0.0
        %1460 = vmatpush1.msra.mxu0 0.0
        %1461 = vmatprep.subr.mxu0 0.0
        %1462 = vmatpush1.msra.mxu0 0.0
        %1463 = vmatprep.subr.mxu0 0.0
        %1464 = vmatpush1.msra.mxu0 0.0
        %1465 = vmatprep.subr.mxu0 0.0
        %1466 = vmatpush1.msra.mxu0 0.0
        %1467 = vmatprep.subr.mxu0 0.0
        %1468 = vmatpush1.msra.mxu0 0.0
        %1469 = vmatprep.subr.mxu0 0.0
        %1470 = vmatpush1.msra.mxu0 0.0
        %1471 = vmatprep.subr.mxu0 0.0
        %1472 = vmatpush1.msra.mxu0 0.0
        %1473 = vmatprep.subr.mxu0 0.0
        %1474 = vmatpush1.msra.mxu0 0.0
        %1475 = vmatprep.subr.mxu0 0.0
        %1476 = vmatpush1.msra.mxu0 0.0
        %1477 = vmatprep.subr.mxu0 0.0
        %1478 = vmatpush1.msra.mxu0 0.0
        %1479 = vmatprep.subr.mxu0 0.0
        %1480 = vmatpush1.msra.mxu0 0.0
        %1481 = vmatprep.subr.mxu0 0.0
        %1482 = vmatpush1.msra.mxu0 0.0
        %1483 = vmatprep.subr.mxu0 0.0
        %1484 = vmatpush1.msra.mxu0 0.0
        %1485 = vmatprep.subr.mxu0 0.0
        %1486 = vmatpush1.msra.mxu0 0.0
        %1487 = vmatprep.subr.mxu0 0.0
        %1488 = vmatpush1.msra.mxu0 0.0
        %1489 = vmatprep.mubr.f32.mxu0 0.0
        %1490 = vmatmul.mubr.f32.gmra.mrb[0].mxu0 %v1421
        %v1491 = vpop.f32.mrb[0].mxu0
        %v1492 = vadd.f32 0.0, %v1491
        %v1493 = vpop.f32.mrb[0].mxu0
        %1494 = vmatprep.mubr.f32.mxu0 0.0
        %1495 = vmatmul.mubr.f32.gmra.mrb[0].mxu0 %v1423
        %v1496 = vpop.f32.mrb[0].mxu0
        %v1497 = vadd.f32 0.0, %v1496
        %v1498 = vpop.f32.mrb[0].mxu0
        %1499 = vdwg.mxu0
        %v1501 = vsel %vm1420, %v1410, 0
        %v1504 = vsel %vm1420, %v1411, 0
        %1506 = vmatprep.subr.mxu0 0.0
        %1507 = vmatpush1.msra.mxu0 %v1316
        %1508 = vmatprep.subr.mxu0 0.0
        %1509 = vmatpush1.msra.mxu0 %v1317
        %1510 = vmatprep.subr.mxu0 0.0
        %1511 = vmatpush1.msra.mxu0 %v1318
        %1512 = vmatprep.subr.mxu0 0.0
        %1513 = vmatpush1.msra.mxu0 %v1319
        %1514 = vmatprep.subr.mxu0 0.0
        %1515 = vmatpush1.msra.mxu0 %v1320
        %1516 = vmatprep.subr.mxu0 0.0
        %1517 = vmatpush1.msra.mxu0 %v1321
        %1518 = vmatprep.subr.mxu0 0.0
        %1519 = vmatpush1.msra.mxu0 %v1322
        %1520 = vmatprep.subr.mxu0 0.0
        %1521 = vmatpush1.msra.mxu0 %v1323
        %1522 = vmatprep.subr.mxu0 0.0
        %1523 = vmatpush1.msra.mxu0 0.0
        %1524 = vmatprep.subr.mxu0 0.0
        %1525 = vmatpush1.msra.mxu0 0.0
        %1526 = vmatprep.subr.mxu0 0.0
        %1527 = vmatpush1.msra.mxu0 0.0
        %1528 = vmatprep.subr.mxu0 0.0
        %1529 = vmatpush1.msra.mxu0 0.0
        %1530 = vmatprep.subr.mxu0 0.0
        %1531 = vmatpush1.msra.mxu0 0.0
        %1532 = vmatprep.subr.mxu0 0.0
        %1533 = vmatpush1.msra.mxu0 0.0
        %1534 = vmatprep.subr.mxu0 0.0
        %1535 = vmatpush1.msra.mxu0 0.0
        %1536 = vmatprep.subr.mxu0 0.0
        %1537 = vmatpush1.msra.mxu0 0.0
        %1538 = vmatprep.subr.mxu0 0.0
        %1539 = vmatpush1.msra.mxu0 0.0
        %1540 = vmatprep.subr.mxu0 0.0
        %1541 = vmatpush1.msra.mxu0 0.0
        %1542 = vmatprep.subr.mxu0 0.0
        %1543 = vmatpush1.msra.mxu0 0.0
        %1544 = vmatprep.subr.mxu0 0.0
        %1545 = vmatpush1.msra.mxu0 0.0
        %1546 = vmatprep.subr.mxu0 0.0
        %1547 = vmatpush1.msra.mxu0 0.0
        %1548 = vmatprep.subr.mxu0 0.0
        %1549 = vmatpush1.msra.mxu0 0.0
        %1550 = vmatprep.subr.mxu0 0.0
        %1551 = vmatpush1.msra.mxu0 0.0
        %1552 = vmatprep.subr.mxu0 0.0
        %1553 = vmatpush1.msra.mxu0 0.0
        %1554 = vmatprep.subr.mxu0 0.0
        %1555 = vmatpush1.msra.mxu0 0.0
        %1556 = vmatprep.subr.mxu0 0.0
        %1557 = vmatpush1.msra.mxu0 0.0
        %1558 = vmatprep.subr.mxu0 0.0
        %1559 = vmatpush1.msra.mxu0 0.0
        %1560 = vmatprep.subr.mxu0 0.0
        %1561 = vmatpush1.msra.mxu0 0.0
        %1562 = vmatprep.subr.mxu0 0.0
        %1563 = vmatpush1.msra.mxu0 0.0
        %1564 = vmatprep.subr.mxu0 0.0
        %1565 = vmatpush1.msra.mxu0 0.0
        %1566 = vmatprep.subr.mxu0 0.0
        %1567 = vmatpush1.msra.mxu0 0.0
        %1568 = vmatprep.subr.mxu0 0.0
        %1569 = vmatpush1.msra.mxu0 0.0
        %1570 = vmatprep.mubr.f32.mxu0 0.0
        %1571 = vmatmul.mubr.f32.gmra.mrb[0].mxu0 %v1501
        %v1572 = vpop.f32.mrb[0].mxu0
        %v1573 = vadd.f32 %v1492, %v1572
        %v1574 = vpop.f32.mrb[0].mxu0
        %1575 = vmatprep.mubr.f32.mxu0 0.0
        %1576 = vmatmul.mubr.f32.gmra.mrb[0].mxu0 %v1504
        %v1577 = vpop.f32.mrb[0].mxu0
        %v1578 = vadd.f32 %v1497, %v1577
        %v1579 = vpop.f32.mrb[0].mxu0
        %1580 = vdwg.mxu0
        %v1582 = vsel %vm1420, %v1418, 0
        %v1585 = vsel %vm1420, %v1419, 0
        %1587 = vmatprep.subr.mxu0 0.0
        %1588 = vmatpush1.msra.mxu0 %v1332
        %1589 = vmatprep.subr.mxu0 0.0
        %1590 = vmatpush1.msra.mxu0 %v1333
        %1591 = vmatprep.subr.mxu0 0.0
        %1592 = vmatpush1.msra.mxu0 %v1334
        %1593 = vmatprep.subr.mxu0 0.0
        %1594 = vmatpush1.msra.mxu0 %v1335
        %1595 = vmatprep.subr.mxu0 0.0
        %1596 = vmatpush1.msra.mxu0 %v1336
        %1597 = vmatprep.subr.mxu0 0.0
        %1598 = vmatpush1.msra.mxu0 %v1337
        %1599 = vmatprep.subr.mxu0 0.0
        %1600 = vmatpush1.msra.mxu0 %v1338
        %1601 = vmatprep.subr.mxu0 0.0
        %1602 = vmatpush1.msra.mxu0 %v1339
        %1603 = vmatprep.subr.mxu0 0.0
        %1604 = vmatpush1.msra.mxu0 0.0
        %1605 = vmatprep.subr.mxu0 0.0
        %1606 = vmatpush1.msra.mxu0 0.0
        %1607 = vmatprep.subr.mxu0 0.0
        %1608 = vmatpush1.msra.mxu0 0.0
        %1609 = vmatprep.subr.mxu0 0.0
        %1610 = vmatpush1.msra.mxu0 0.0
        %1611 = vmatprep.subr.mxu0 0.0
        %1612 = vmatpush1.msra.mxu0 0.0
        %1613 = vmatprep.subr.mxu0 0.0
        %1614 = vmatpush1.msra.mxu0 0.0
        %1615 = vmatprep.subr.mxu0 0.0
        %1616 = vmatpush1.msra.mxu0 0.0
        %1617 = vmatprep.subr.mxu0 0.0
        %1618 = vmatpush1.msra.mxu0 0.0
        %1619 = vmatprep.subr.mxu0 0.0
        %1620 = vmatpush1.msra.mxu0 0.0
        %1621 = vmatprep.subr.mxu0 0.0
        %1622 = vmatpush1.msra.mxu0 0.0
        %1623 = vmatprep.subr.mxu0 0.0
        %1624 = vmatpush1.msra.mxu0 0.0
        %1625 = vmatprep.subr.mxu0 0.0
        %1626 = vmatpush1.msra.mxu0 0.0
        %1627 = vmatprep.subr.mxu0 0.0
        %1628 = vmatpush1.msra.mxu0 0.0
        %1629 = vmatprep.subr.mxu0 0.0
        %1630 = vmatpush1.msra.mxu0 0.0
        %1631 = vmatprep.subr.mxu0 0.0
        %1632 = vmatpush1.msra.mxu0 0.0
        %1633 = vmatprep.subr.mxu0 0.0
        %1634 = vmatpush1.msra.mxu0 0.0
        %1635 = vmatprep.subr.mxu0 0.0
        %1636 = vmatpush1.msra.mxu0 0.0
        %1637 = vmatprep.subr.mxu0 0.0
        %1638 = vmatpush1.msra.mxu0 0.0
        %1639 = vmatprep.subr.mxu0 0.0
        %1640 = vmatpush1.msra.mxu0 0.0
        %1641 = vmatprep.subr.mxu0 0.0
        %1642 = vmatpush1.msra.mxu0 0.0
        %1643 = vmatprep.subr.mxu0 0.0
        %1644 = vmatpush1.msra.mxu0 0.0
        %1645 = vmatprep.subr.mxu0 0.0
        %1646 = vmatpush1.msra.mxu0 0.0
        %1647 = vmatprep.subr.mxu0 0.0
        %1648 = vmatpush1.msra.mxu0 0.0
        %1649 = vmatprep.subr.mxu0 0.0
        %1650 = vmatpush1.msra.mxu0 0.0
        %1651 = vmatprep.mubr.f32.mxu0 0.0
        %1652 = vmatmul.mubr.f32.gmra.mrb[0].mxu0 %v1582
        %v1653 = vpop.f32.mrb[0].mxu0
        %v1654 = vadd.f32 0.0, %v1653
        %v1655 = vpop.f32.mrb[0].mxu0
        %1656 = vmatprep.mubr.f32.mxu0 0.0
        %1657 = vmatmul.mubr.f32.gmra.mrb[0].mxu0 %v1585
        %v1658 = vpop.f32.mrb[0].mxu0
        %v1659 = vadd.f32 0.0, %v1658
        %v1660 = vpop.f32.mrb[0].mxu0
        %1661 = vdwg.mxu0
        %v1662 = vadd.f32 %v1573, %v1654
        %v1663 = vadd.f32 %v1578, %v1659
        %v1665 = vlaneseq
        %v1666 = vshrl.u32 %v1665, 7
        %v1667 = vsub.s32 0, %v1666
        %v1668 = vrot.slane %v1340, %v1667
        %v1670 = vadd.f32 %v1662, %v1668
        %v1671 = vadd.f32 %v1663, %v1668
        %v1672 = vmax.f32 %v1670, 0.0
        %v1673 = vmax.f32 %v1671, 0.0
        %v1676 = vcombine.high %v1672, %v1672
        %v1678 = vunpack.c.l.s4 1983009808
        %v1679 = vunpack.c.0.s8 %v1678
        %v1680 = vlaneseq
        %v1681 = vshrl.u32 %v1680, 7
        %v1682 = vsub.s32 %v1679, %v1681
        %v1683 = vrot.slane %v1672, %v1682
        %v1685 = vunpack.c.l.s4 1983009808
        %v1686 = vunpack.c.0.s8 %v1685
        %v1687 = vlaneseq
        %v1688 = vshrl.u32 %v1687, 7
        %v1689 = vsub.s32 %v1686, %v1688
        %v1690 = vrot.slane %v1676, %v1689
        %v1691 = vcombine.high %v1683, %v1683
        %v1692 = vcombine.high %v1690, %v1690
        %v1693 = vcombine.high %v1673, %v1673
        %v1695 = vunpack.c.l.s4 1983009808
        %v1696 = vunpack.c.0.s8 %v1695
        %v1697 = vlaneseq
        %v1698 = vshrl.u32 %v1697, 7
        %v1699 = vsub.s32 %v1696, %v1698
        %v1700 = vrot.slane %v1673, %v1699
        %v1702 = vunpack.c.l.s4 1983009808
        %v1703 = vunpack.c.0.s8 %v1702
        %v1704 = vlaneseq
        %v1705 = vshrl.u32 %v1704, 7
        %v1706 = vsub.s32 %v1703, %v1705
        %v1707 = vrot.slane %v1693, %v1706
        %v1708 = vcombine.high %v1700, %v1700
        %v1709 = vcombine.high %v1707, %v1707
        %vm1718 = vcmask 1041408
        %v1719 = vsel %vm1718, %v1683, -inf
        %v1720 = vrot.slane %v1719, 4
        %v1721 = vmax.f32 %v1719, %v1720
        %v1722 = vrot.slane %v1721, 2
        %v1723 = vmax.f32 %v1721, %v1722
        %v1724 = vrot.slane %v1723, 1
        %v1725 = vmax.f32 %v1723, %v1724
        %v1726 = vsel %vm1718, %v1691, -inf
        %v1727 = vrot.slane %v1726, 4
        %v1728 = vmax.f32 %v1726, %v1727
        %v1729 = vrot.slane %v1728, 2
        %v1730 = vmax.f32 %v1728, %v1729
        %v1731 = vrot.slane %v1730, 1
        %v1732 = vmax.f32 %v1730, %v1731
        %v1733 = vsel %vm1718, %v1690, -inf
        %v1734 = vrot.slane %v1733, 4
        %v1735 = vmax.f32 %v1733, %v1734
        %v1736 = vrot.slane %v1735, 2
        %v1737 = vmax.f32 %v1735, %v1736
        %v1738 = vrot.slane %v1737, 1
        %v1739 = vmax.f32 %v1737, %v1738
        %v1740 = vsel %vm1718, %v1692, -inf
        %v1741 = vrot.slane %v1740, 4
        %v1742 = vmax.f32 %v1740, %v1741
        %v1743 = vrot.slane %v1742, 2
        %v1744 = vmax.f32 %v1742, %v1743
        %v1745 = vrot.slane %v1744, 1
        %v1746 = vmax.f32 %v1744, %v1745
        %v1747 = vsel %vm1718, %v1700, -inf
        %v1748 = vrot.slane %v1747, 4
        %v1749 = vmax.f32 %v1747, %v1748
        %v1750 = vrot.slane %v1749, 2
        %v1751 = vmax.f32 %v1749, %v1750
        %v1752 = vrot.slane %v1751, 1
        %v1753 = vmax.f32 %v1751, %v1752
        %v1754 = vsel %vm1718, %v1708, -inf
        %v1755 = vrot.slane %v1754, 4
        %v1756 = vmax.f32 %v1754, %v1755
        %v1757 = vrot.slane %v1756, 2
        %v1758 = vmax.f32 %v1756, %v1757
        %v1759 = vrot.slane %v1758, 1
        %v1760 = vmax.f32 %v1758, %v1759
        %v1761 = vsel %vm1718, %v1707, -inf
        %v1762 = vrot.slane %v1761, 4
        %v1763 = vmax.f32 %v1761, %v1762
        %v1764 = vrot.slane %v1763, 2
        %v1765 = vmax.f32 %v1763, %v1764
        %v1766 = vrot.slane %v1765, 1
        %v1767 = vmax.f32 %v1765, %v1766
        %v1768 = vsel %vm1718, %v1709, -inf
        %v1769 = vrot.slane %v1768, 4
        %v1770 = vmax.f32 %v1768, %v1769
        %v1771 = vrot.slane %v1770, 2
        %v1772 = vmax.f32 %v1770, %v1771
        %v1773 = vrot.slane %v1772, 1
        %v1774 = vmax.f32 %v1772, %v1773
        %v1775 = vld [vmem:[#allocation11] sm:$0xff]
        %v1776 = vld [vmem:[#allocation11 + $0x8] sm:$0xff]
        %v1777 = vld [vmem:[#allocation11 + $0x10] sm:$0xff]
        %v1778 = vld [vmem:[#allocation11 + $0x18] sm:$0xff]
        %v1779 = vld [vmem:[#allocation11 + $0x20] sm:$0xff]
        %v1780 = vld [vmem:[#allocation11 + $0x28] sm:$0xff]
        %v1781 = vld [vmem:[#allocation11 + $0x30] sm:$0xff]
        %v1782 = vld [vmem:[#allocation11 + $0x38] sm:$0xff]
        %v1783 = vld [vmem:[#allocation11 + $0x40] sm:$0xff]
        %v1784 = vld [vmem:[#allocation11 + $0x48] sm:$0xff]
        %v1785 = vld [vmem:[#allocation11 + $0x50] sm:$0xff]
        %v1786 = vld [vmem:[#allocation11 + $0x58] sm:$0xff]
        %v1787 = vld [vmem:[#allocation11 + $0x60] sm:$0xff]
        %v1788 = vld [vmem:[#allocation11 + $0x68] sm:$0xff]
        %v1789 = vld [vmem:[#allocation11 + $0x70] sm:$0xff]
        %v1790 = vld [vmem:[#allocation11 + $0x78] sm:$0xff]
        %v1791 = vld [vmem:[#allocation11 + $0x80] sm:$0xff]
        %v1792 = vld [vmem:[#allocation11 + $0x88] sm:$0xff]
        %v1793 = vld [vmem:[#allocation11 + $0x90] sm:$0xff]
        %v1794 = vld [vmem:[#allocation11 + $0x98] sm:$0xff]
        %v1795 = vld [vmem:[#allocation11 + $0xa0] sm:$0xff]
        %v1796 = vld [vmem:[#allocation11 + $0xa8] sm:$0xff]
        %v1797 = vld [vmem:[#allocation11 + $0xb0] sm:$0xff]
        %v1798 = vld [vmem:[#allocation11 + $0xb8] sm:$0xff]
        %v1799 = vld [vmem:[#allocation11 + $0xc0] sm:$0xff]
        %v1800 = vld [vmem:[#allocation11 + $0xc8] sm:$0xff]
        %v1801 = vld [vmem:[#allocation11 + $0xd0] sm:$0xff]
        %v1802 = vld [vmem:[#allocation11 + $0xd8] sm:$0xff]
        %v1803 = vld [vmem:[#allocation11 + $0xe0] sm:$0xff]
        %v1804 = vld [vmem:[#allocation11 + $0xe8] sm:$0xff]
        %v1805 = vld [vmem:[#allocation11 + $0xf0] sm:$0xff]
        %v1806 = vld [vmem:[#allocation11 + $0xf8] sm:$0xff]
        %v1807 = vld [vmem:[#allocation13] sm:$0xff]
        %v1808 = vld [vmem:[#allocation13 + $0x8] sm:$0xff]
        %v1809 = vld [vmem:[#allocation13 + $0x10] sm:$0xff]
        %v1810 = vld [vmem:[#allocation13 + $0x18] sm:$0xff]
        %v1811 = vld [vmem:[#allocation13 + $0x20] sm:$0xff]
        %v1812 = vld [vmem:[#allocation13 + $0x28] sm:$0xff]
        %v1813 = vld [vmem:[#allocation13 + $0x30] sm:$0xff]
        %v1814 = vld [vmem:[#allocation13 + $0x38] sm:$0xff]
        %v1815 = vld [vmem:[#allocation13 + $0x40] sm:$0xff]
        %v1816 = vld [vmem:[#allocation13 + $0x48] sm:$0xff]
        %v1817 = vld [vmem:[#allocation13 + $0x50] sm:$0xff]
        %v1818 = vld [vmem:[#allocation13 + $0x58] sm:$0xff]
        %v1819 = vld [vmem:[#allocation13 + $0x60] sm:$0xff]
        %v1820 = vld [vmem:[#allocation13 + $0x68] sm:$0xff]
        %v1821 = vld [vmem:[#allocation13 + $0x70] sm:$0xff]
        %v1822 = vld [vmem:[#allocation13 + $0x78] sm:$0xff]
        %v1823 = vld [vmem:[#allocation13 + $0x80] sm:$0xff]
        %v1824 = vld [vmem:[#allocation13 + $0x88] sm:$0xff]
        %v1825 = vld [vmem:[#allocation13 + $0x90] sm:$0xff]
        %v1826 = vld [vmem:[#allocation13 + $0x98] sm:$0xff]
        %v1827 = vld [vmem:[#allocation13 + $0xa0] sm:$0xff]
        %v1828 = vld [vmem:[#allocation13 + $0xa8] sm:$0xff]
        %v1829 = vld [vmem:[#allocation13 + $0xb0] sm:$0xff]
        %v1830 = vld [vmem:[#allocation13 + $0xb8] sm:$0xff]
        %v1831 = vld [vmem:[#allocation13 + $0xc0] sm:$0xff]
        %v1832 = vld [vmem:[#allocation13 + $0xc8] sm:$0xff]
        %v1833 = vld [vmem:[#allocation13 + $0xd0] sm:$0xff]
        %v1834 = vld [vmem:[#allocation13 + $0xd8] sm:$0xff]
        %v1835 = vld [vmem:[#allocation13 + $0xe0] sm:$0xff]
        %v1836 = vld [vmem:[#allocation13 + $0xe8] sm:$0xff]
        %v1837 = vld [vmem:[#allocation13 + $0xf0] sm:$0xff]
        %v1838 = vld [vmem:[#allocation13 + $0xf8] sm:$0xff]
        %v1839 = vld [vmem:[#allocation14] sm:$0xff]
        %v1840 = vld [vmem:[#allocation14 + $0x8] sm:$0xff]
        %v1841 = vld [vmem:[#allocation14 + $0x10] sm:$0xff]
        %v1842 = vld [vmem:[#allocation14 + $0x18] sm:$0xff]
        %v1843 = vld [vmem:[#allocation14 + $0x20] sm:$0xff]
        %v1844 = vld [vmem:[#allocation14 + $0x28] sm:$0xff]
        %v1845 = vld [vmem:[#allocation14 + $0x30] sm:$0xff]
        %v1846 = vld [vmem:[#allocation14 + $0x38] sm:$0xff]
        %v1847 = vld [vmem:[#allocation14 + $0x40] sm:$0xff]
        %v1848 = vld [vmem:[#allocation14 + $0x48] sm:$0xff]
        %v1849 = vld [vmem:[#allocation14 + $0x50] sm:$0xff]
        %v1850 = vld [vmem:[#allocation14 + $0x58] sm:$0xff]
        %v1851 = vld [vmem:[#allocation14 + $0x60] sm:$0xff]
        %v1852 = vld [vmem:[#allocation14 + $0x68] sm:$0xff]
        %v1853 = vld [vmem:[#allocation14 + $0x70] sm:$0xff]
        %v1854 = vld [vmem:[#allocation14 + $0x78] sm:$0xff]
        %v1855 = vld [vmem:[#allocation14 + $0x80] sm:$0xff]
        %v1856 = vld [vmem:[#allocation14 + $0x88] sm:$0xff]
        %v1857 = vld [vmem:[#allocation14 + $0x90] sm:$0xff]
        %v1858 = vld [vmem:[#allocation14 + $0x98] sm:$0xff]
        %v1859 = vld [vmem:[#allocation14 + $0xa0] sm:$0xff]
        %v1860 = vld [vmem:[#allocation14 + $0xa8] sm:$0xff]
        %v1861 = vld [vmem:[#allocation14 + $0xb0] sm:$0xff]
        %v1862 = vld [vmem:[#allocation14 + $0xb8] sm:$0xff]
        %v1863 = vld [vmem:[#allocation14 + $0xc0] sm:$0xff]
        %v1864 = vld [vmem:[#allocation14 + $0xc8] sm:$0xff]
        %v1865 = vld [vmem:[#allocation14 + $0xd0] sm:$0xff]
        %v1866 = vld [vmem:[#allocation14 + $0xd8] sm:$0xff]
        %v1867 = vld [vmem:[#allocation14 + $0xe0] sm:$0xff]
        %v1868 = vld [vmem:[#allocation14 + $0xe8] sm:$0xff]
        %v1869 = vld [vmem:[#allocation14 + $0xf0] sm:$0xff]
        %v1870 = vld [vmem:[#allocation14 + $0xf8] sm:$0xff]
        %v1871 = vld [vmem:[%s12] sm:$0x3]
        %vm1872 = vcmp.lt.s32.totalorder %v709, 0
        %v1873 = vsub.s32 0, %v709
        %v1874 = vsel %vm1872, %v1873, %v709
        %v1875 = vshrl.u32 %v1874, 3
        %v1876 = vand.u32 %v1874, 7
        %v1877 = vsub.s32 0, %v1876
        %v1878 = vsel %vm1872, %v1877, %v1876
        %vm1879 = vcmp.ne.s32.totalorder %v1878, 0
        %vm1880 = vcmp.lt.s32.totalorder %v1878, 0
        %vm1881 = vmand %vm1880, %vm1879
        %v1882 = vadd.s32 %v1878, 8
        %v1883 = vsel %vm1881, %v1882, %v1878
        %vm1884 = vcmp.eq.s32.totalorder %v1883, 0
        %v1893 = vsel %vm1383, %v1732, %v1725
        %v1894 = vsel %vm1385, %v1739, %v1893
        %v1895 = vsel %vm1387, %v1746, %v1894
        %v1896 = vsel %vm1389, %v1753, %v1895
        %v1897 = vsel %vm1391, %v1760, %v1896
        %v1898 = vsel %vm1393, %v1767, %v1897
        %v1899 = vsel %vm1395, %v1774, %v1898
        %v1901 = vrot.slane %v1899, 7
        %v1902 = vsel %vm1884, 0.0, %v1901
        %vm1903 = vcmp.eq.s32.totalorder %v1883, 7
        %v1904 = vrot.slane %v1899, 1
        %v1905 = vsel %vm1903, 0.0, %v1904
        %1906 = vmatprep.subr.mxu0 %v1808
        %1907 = vmatpush1.msra.mxu0 %v1807
        %1908 = vmatprep.subr.mxu0 %v1810
        %1909 = vmatpush1.msra.mxu0 %v1809
        %1910 = vmatprep.subr.mxu0 %v1812
        %1911 = vmatpush1.msra.mxu0 %v1811
        %1912 = vmatprep.subr.mxu0 %v1814
        %1913 = vmatpush1.msra.mxu0 %v1813
        %1914 = vmatprep.subr.mxu0 %v1816
        %1915 = vmatpush1.msra.mxu0 %v1815
        %1916 = vmatprep.subr.mxu0 %v1818
        %1917 = vmatpush1.msra.mxu0 %v1817
        %1918 = vmatprep.subr.mxu0 %v1820
        %1919 = vmatpush1.msra.mxu0 %v1819
        %1920 = vmatprep.subr.mxu0 %v1822
        %1921 = vmatpush1.msra.mxu0 %v1821
        %1922 = vmatprep.subr.mxu0 %v1824
        %1923 = vmatpush1.msra.mxu0 %v1823
        %1924 = vmatprep.subr.mxu0 %v1826
        %1925 = vmatpush1.msra.mxu0 %v1825
        %1926 = vmatprep.subr.mxu0 %v1828
        %1927 = vmatpush1.msra.mxu0 %v1827
        %1928 = vmatprep.subr.mxu0 %v1830
        %1929 = vmatpush1.msra.mxu0 %v1829
        %1930 = vmatprep.subr.mxu0 %v1832
        %1931 = vmatpush1.msra.mxu0 %v1831
        %1932 = vmatprep.subr.mxu0 %v1834
        %1933 = vmatpush1.msra.mxu0 %v1833
        %1934 = vmatprep.subr.mxu0 %v1836
        %1935 = vmatpush1.msra.mxu0 %v1835
        %1936 = vmatprep.subr.mxu0 %v1838
        %1937 = vmatpush1.msra.mxu0 %v1837
        %1938 = vmatprep.subr.mxu0 0.0
        %1939 = vmatpush1.msra.mxu0 0.0
        %1940 = vmatprep.subr.mxu0 0.0
        %1941 = vmatpush1.msra.mxu0 0.0
        %1942 = vmatprep.subr.mxu0 0.0
        %1943 = vmatpush1.msra.mxu0 0.0
        %1944 = vmatprep.subr.mxu0 0.0
        %1945 = vmatpush1.msra.mxu0 0.0
        %1946 = vmatprep.subr.mxu0 0.0
        %1947 = vmatpush1.msra.mxu0 0.0
        %1948 = vmatprep.subr.mxu0 0.0
        %1949 = vmatpush1.msra.mxu0 0.0
        %1950 = vmatprep.subr.mxu0 0.0
        %1951 = vmatpush1.msra.mxu0 0.0
        %1952 = vmatprep.subr.mxu0 0.0
        %1953 = vmatpush1.msra.mxu0 0.0
        %1954 = vmatprep.subr.mxu0 0.0
        %1955 = vmatpush1.msra.mxu0 0.0
        %1956 = vmatprep.subr.mxu0 0.0
        %1957 = vmatpush1.msra.mxu0 0.0
        %1958 = vmatprep.subr.mxu0 0.0
        %1959 = vmatpush1.msra.mxu0 0.0
        %1960 = vmatprep.subr.mxu0 0.0
        %1961 = vmatpush1.msra.mxu0 0.0
        %1962 = vmatprep.subr.mxu0 0.0
        %1963 = vmatpush1.msra.mxu0 0.0
        %1964 = vmatprep.subr.mxu0 0.0
        %1965 = vmatpush1.msra.mxu0 0.0
        %1966 = vmatprep.subr.mxu0 0.0
        %1967 = vmatpush1.msra.mxu0 0.0
        %1968 = vmatprep.subr.mxu0 0.0
        %1969 = vmatpush1.msra.mxu0 0.0
        %1970 = vmatprep.mubr.f32.mxu0 0.0
        %1971 = vmatmul.mubr.f32.gmra.mrb[0].mxu0 %v1899
        %v1972 = vpop.f32.mrb[0].mxu0
        %v1973 = vadd.f32 0.0, %v1972
        %v1974 = vpop.f32.mrb[0].mxu0
        %v1975 = vadd.f32 0.0, %v1974
        %1976 = vdwg.mxu0
        %1977 = vmatprep.subr.mxu0 %v1776
        %1978 = vmatpush1.msra.mxu0 %v1775
        %1979 = vmatprep.subr.mxu0 %v1778
        %1980 = vmatpush1.msra.mxu0 %v1777
        %1981 = vmatprep.subr.mxu0 %v1780
        %1982 = vmatpush1.msra.mxu0 %v1779
        %1983 = vmatprep.subr.mxu0 %v1782
        %1984 = vmatpush1.msra.mxu0 %v1781
        %1985 = vmatprep.subr.mxu0 %v1784
        %1986 = vmatpush1.msra.mxu0 %v1783
        %1987 = vmatprep.subr.mxu0 %v1786
        %1988 = vmatpush1.msra.mxu0 %v1785
        %1989 = vmatprep.subr.mxu0 %v1788
        %1990 = vmatpush1.msra.mxu0 %v1787
        %1991 = vmatprep.subr.mxu0 %v1790
        %1992 = vmatpush1.msra.mxu0 %v1789
        %1993 = vmatprep.subr.mxu0 %v1792
        %1994 = vmatpush1.msra.mxu0 %v1791
        %1995 = vmatprep.subr.mxu0 %v1794
        %1996 = vmatpush1.msra.mxu0 %v1793
        %1997 = vmatprep.subr.mxu0 %v1796
        %1998 = vmatpush1.msra.mxu0 %v1795
        %1999 = vmatprep.subr.mxu0 %v1798
        %2000 = vmatpush1.msra.mxu0 %v1797
        %2001 = vmatprep.subr.mxu0 %v1800
        %2002 = vmatpush1.msra.mxu0 %v1799
        %2003 = vmatprep.subr.mxu0 %v1802
        %2004 = vmatpush1.msra.mxu0 %v1801
        %2005 = vmatprep.subr.mxu0 %v1804
        %2006 = vmatpush1.msra.mxu0 %v1803
        %2007 = vmatprep.subr.mxu0 %v1806
        %2008 = vmatpush1.msra.mxu0 %v1805
        %2009 = vmatprep.subr.mxu0 0.0
        %2010 = vmatpush1.msra.mxu0 0.0
        %2011 = vmatprep.subr.mxu0 0.0
        %2012 = vmatpush1.msra.mxu0 0.0
        %2013 = vmatprep.subr.mxu0 0.0
        %2014 = vmatpush1.msra.mxu0 0.0
        %2015 = vmatprep.subr.mxu0 0.0
        %2016 = vmatpush1.msra.mxu0 0.0
        %2017 = vmatprep.subr.mxu0 0.0
        %2018 = vmatpush1.msra.mxu0 0.0
        %2019 = vmatprep.subr.mxu0 0.0
        %2020 = vmatpush1.msra.mxu0 0.0
        %2021 = vmatprep.subr.mxu0 0.0
        %2022 = vmatpush1.msra.mxu0 0.0
        %2023 = vmatprep.subr.mxu0 0.0
        %2024 = vmatpush1.msra.mxu0 0.0
        %2025 = vmatprep.subr.mxu0 0.0
        %2026 = vmatpush1.msra.mxu0 0.0
        %2027 = vmatprep.subr.mxu0 0.0
        %2028 = vmatpush1.msra.mxu0 0.0
        %2029 = vmatprep.subr.mxu0 0.0
        %2030 = vmatpush1.msra.mxu0 0.0
        %2031 = vmatprep.subr.mxu0 0.0
        %2032 = vmatpush1.msra.mxu0 0.0
        %2033 = vmatprep.subr.mxu0 0.0
        %2034 = vmatpush1.msra.mxu0 0.0
        %2035 = vmatprep.subr.mxu0 0.0
        %2036 = vmatpush1.msra.mxu0 0.0
        %2037 = vmatprep.subr.mxu0 0.0
        %2038 = vmatpush1.msra.mxu0 0.0
        %2039 = vmatprep.subr.mxu0 0.0
        %2040 = vmatpush1.msra.mxu0 0.0
        %2041 = vmatprep.mubr.f32.mxu0 0.0
        %2042 = vmatmul.mubr.f32.gmra.mrb[0].mxu0 %v1902
        %v2043 = vpop.f32.mrb[0].mxu0
        %v2044 = vadd.f32 %v1973, %v2043
        %v2045 = vpop.f32.mrb[0].mxu0
        %v2046 = vadd.f32 %v1975, %v2045
        %2047 = vdwg.mxu0
        %2048 = vmatprep.subr.mxu0 %v1840
        %2049 = vmatpush1.msra.mxu0 %v1839
        %2050 = vmatprep.subr.mxu0 %v1842
        %2051 = vmatpush1.msra.mxu0 %v1841
        %2052 = vmatprep.subr.mxu0 %v1844
        %2053 = vmatpush1.msra.mxu0 %v1843
        %2054 = vmatprep.subr.mxu0 %v1846
        %2055 = vmatpush1.msra.mxu0 %v1845
        %2056 = vmatprep.subr.mxu0 %v1848
        %2057 = vmatpush1.msra.mxu0 %v1847
        %2058 = vmatprep.subr.mxu0 %v1850
        %2059 = vmatpush1.msra.mxu0 %v1849
        %2060 = vmatprep.subr.mxu0 %v1852
        %2061 = vmatpush1.msra.mxu0 %v1851
        %2062 = vmatprep.subr.mxu0 %v1854
        %2063 = vmatpush1.msra.mxu0 %v1853
        %2064 = vmatprep.subr.mxu0 %v1856
        %2065 = vmatpush1.msra.mxu0 %v1855
        %2066 = vmatprep.subr.mxu0 %v1858
        %2067 = vmatpush1.msra.mxu0 %v1857
        %2068 = vmatprep.subr.mxu0 %v1860
        %2069 = vmatpush1.msra.mxu0 %v1859
        %2070 = vmatprep.subr.mxu0 %v1862
        %2071 = vmatpush1.msra.mxu0 %v1861
        %2072 = vmatprep.subr.mxu0 %v1864
        %2073 = vmatpush1.msra.mxu0 %v1863
        %2074 = vmatprep.subr.mxu0 %v1866
        %2075 = vmatpush1.msra.mxu0 %v1865
        %2076 = vmatprep.subr.mxu0 %v1868
        %2077 = vmatpush1.msra.mxu0 %v1867
        %2078 = vmatprep.subr.mxu0 %v1870
        %2079 = vmatpush1.msra.mxu0 %v1869
        %2080 = vmatprep.subr.mxu0 0.0
        %2081 = vmatpush1.msra.mxu0 0.0
        %2082 = vmatprep.subr.mxu0 0.0
        %2083 = vmatpush1.msra.mxu0 0.0
        %2084 = vmatprep.subr.mxu0 0.0
        %2085 = vmatpush1.msra.mxu0 0.0
        %2086 = vmatprep.subr.mxu0 0.0
        %2087 = vmatpush1.msra.mxu0 0.0
        %2088 = vmatprep.subr.mxu0 0.0
        %2089 = vmatpush1.msra.mxu0 0.0
        %2090 = vmatprep.subr.mxu0 0.0
        %2091 = vmatpush1.msra.mxu0 0.0
        %2092 = vmatprep.subr.mxu0 0.0
        %2093 = vmatpush1.msra.mxu0 0.0
        %2094 = vmatprep.subr.mxu0 0.0
        %2095 = vmatpush1.msra.mxu0 0.0
        %2096 = vmatprep.subr.mxu0 0.0
        %2097 = vmatpush1.msra.mxu0 0.0
        %2098 = vmatprep.subr.mxu0 0.0
        %2099 = vmatpush1.msra.mxu0 0.0
        %2100 = vmatprep.subr.mxu0 0.0
        %2101 = vmatpush1.msra.mxu0 0.0
        %2102 = vmatprep.subr.mxu0 0.0
        %2103 = vmatpush1.msra.mxu0 0.0
        %2104 = vmatprep.subr.mxu0 0.0
        %2105 = vmatpush1.msra.mxu0 0.0
        %2106 = vmatprep.subr.mxu0 0.0
        %2107 = vmatpush1.msra.mxu0 0.0
        %2108 = vmatprep.subr.mxu0 0.0
        %2109 = vmatpush1.msra.mxu0 0.0
        %2110 = vmatprep.subr.mxu0 0.0
        %2111 = vmatpush1.msra.mxu0 0.0
        %2112 = vmatprep.mubr.f32.mxu0 0.0
        %2113 = vmatmul.mubr.f32.gmra.mrb[0].mxu0 %v1905
        %v2114 = vpop.f32.mrb[0].mxu0
        %v2115 = vadd.f32 0.0, %v2114
        %v2116 = vpop.f32.mrb[0].mxu0
        %v2117 = vadd.f32 0.0, %v2116
        %2118 = vdwg.mxu0
        %v2119 = vadd.f32 %v2044, %v2115
        %v2120 = vadd.f32 %v2046, %v2117
        %v2122 = vlaneseq
        %v2123 = vshrl.u32 %v2122, 7
        %v2124 = vsub.s32 0, %v2123
        %v2125 = vrot.slane %v1871, %v2124
        %v2126 = vlaneseq
        %v2127 = vshrl.u32 %v2126, 7
        %v2128 = vsub.s32 1, %v2127
        %v2129 = vrot.slane %v1871, %v2128
        %v2132 = vadd.f32 %v2119, %v2125
        %v2133 = vadd.f32 %v2120, %v2129
        %v2134 = vmax.f32 %v2132, 0.0
        %v2135 = vmax.f32 %v2133, 0.0
        %v2138 = vcombine.low %v2134, %v2135
        %v2139 = vcombine.high %v2134, %v2135
        %v2141 = vunpack.c.l.s4 1983009808
        %v2142 = vunpack.c.0.s8 %v2141
        %v2143 = vlaneseq
        %v2144 = vshrl.u32 %v2143, 7
        %v2145 = vsub.s32 %v2142, %v2144
        %v2146 = vrot.slane %v2138, %v2145
        %v2148 = vunpack.c.l.s4 1983009808
        %v2149 = vunpack.c.0.s8 %v2148
        %v2150 = vlaneseq
        %v2151 = vshrl.u32 %v2150, 7
        %v2152 = vsub.s32 %v2149, %v2151
        %v2153 = vrot.slane %v2139, %v2152
        %v2154 = vcombine.high %v2146, %v2146
        %v2155 = vcombine.high %v2153, %v2153
        %v2157 = vunpack.c.l.s4 1983009808
        %v2158 = vunpack.c.0.s8 %v2157
        %v2159 = vlaneseq
        %v2160 = vshrl.u32 %v2159, 7
        %v2161 = vsub.s32 %v2158, %v2160
        %v2162 = vrot.slane %v2146, %v2161
        %v2163 = vcombine.high %v2162, %v2162
        %v2165 = vunpack.c.l.s4 1983009808
        %v2166 = vunpack.c.0.s8 %v2165
        %v2167 = vlaneseq
        %v2168 = vshrl.u32 %v2167, 7
        %v2169 = vsub.s32 %v2166, %v2168
        %v2170 = vrot.slane %v2154, %v2169
        %v2171 = vcombine.high %v2170, %v2170
        %v2173 = vunpack.c.l.s4 1983009808
        %v2174 = vunpack.c.0.s8 %v2173
        %v2175 = vlaneseq
        %v2176 = vshrl.u32 %v2175, 7
        %v2177 = vsub.s32 %v2174, %v2176
        %v2178 = vrot.slane %v2153, %v2177
        %v2179 = vcombine.high %v2178, %v2178
        %v2181 = vunpack.c.l.s4 1983009808
        %v2182 = vunpack.c.0.s8 %v2181
        %v2183 = vlaneseq
        %v2184 = vshrl.u32 %v2183, 7
        %v2185 = vsub.s32 %v2182, %v2184
        %v2186 = vrot.slane %v2155, %v2185
        %v2187 = vcombine.high %v2186, %v2186
        %v2196 = vsel %vm1718, %v2162, -inf
        %v2197 = vrot.slane %v2196, 4
        %v2198 = vmax.f32 %v2196, %v2197
        %v2199 = vrot.slane %v2198, 2
        %v2200 = vmax.f32 %v2198, %v2199
        %v2201 = vrot.slane %v2200, 1
        %v2202 = vmax.f32 %v2200, %v2201
        %v2203 = vsel %vm1718, %v2163, -inf
        %v2204 = vrot.slane %v2203, 4
        %v2205 = vmax.f32 %v2203, %v2204
        %v2206 = vrot.slane %v2205, 2
        %v2207 = vmax.f32 %v2205, %v2206
        %v2208 = vrot.slane %v2207, 1
        %v2209 = vmax.f32 %v2207, %v2208
        %v2210 = vsel %vm1718, %v2170, -inf
        %v2211 = vrot.slane %v2210, 4
        %v2212 = vmax.f32 %v2210, %v2211
        %v2213 = vrot.slane %v2212, 2
        %v2214 = vmax.f32 %v2212, %v2213
        %v2215 = vrot.slane %v2214, 1
        %v2216 = vmax.f32 %v2214, %v2215
        %v2217 = vsel %vm1718, %v2171, -inf
        %v2218 = vrot.slane %v2217, 4
        %v2219 = vmax.f32 %v2217, %v2218
        %v2220 = vrot.slane %v2219, 2
        %v2221 = vmax.f32 %v2219, %v2220
        %v2222 = vrot.slane %v2221, 1
        %v2223 = vmax.f32 %v2221, %v2222
        %v2224 = vsel %vm1718, %v2178, -inf
        %v2225 = vrot.slane %v2224, 4
        %v2226 = vmax.f32 %v2224, %v2225
        %v2227 = vrot.slane %v2226, 2
        %v2228 = vmax.f32 %v2226, %v2227
        %v2229 = vrot.slane %v2228, 1
        %v2230 = vmax.f32 %v2228, %v2229
        %v2231 = vsel %vm1718, %v2179, -inf
        %v2232 = vrot.slane %v2231, 4
        %v2233 = vmax.f32 %v2231, %v2232
        %v2234 = vrot.slane %v2233, 2
        %v2235 = vmax.f32 %v2233, %v2234
        %v2236 = vrot.slane %v2235, 1
        %v2237 = vmax.f32 %v2235, %v2236
        %v2238 = vsel %vm1718, %v2186, -inf
        %v2239 = vrot.slane %v2238, 4
        %v2240 = vmax.f32 %v2238, %v2239
        %v2241 = vrot.slane %v2240, 2
        %v2242 = vmax.f32 %v2240, %v2241
        %v2243 = vrot.slane %v2242, 1
        %v2244 = vmax.f32 %v2242, %v2243
        %v2245 = vsel %vm1718, %v2187, -inf
        %v2246 = vrot.slane %v2245, 4
        %v2247 = vmax.f32 %v2245, %v2246
        %v2248 = vrot.slane %v2247, 2
        %v2249 = vmax.f32 %v2247, %v2248
        %v2250 = vrot.slane %v2249, 1
        %v2251 = vmax.f32 %v2249, %v2250
        %v2260 = vcombine.low %v2202, %v2209
        %v2261 = vcombine.low %v2216, %v2223
        %v2262 = vcombine.low %v2230, %v2237
        %v2263 = vcombine.low %v2244, %v2251
        %v2264 = vrot.slane %v2261, 7
        %v2265 = vsel %vm1383, %v2264, %v2260
        %v2266 = vsel %vm1391, %v2264, %v2265
        %v2267 = vrot.slane %v2262, 6
        %v2268 = vsel %vm1385, %v2267, %v2266
        %v2269 = vsel %vm1393, %v2267, %v2268
        %v2270 = vrot.slane %v2263, 5
        %v2271 = vsel %vm1387, %v2270, %v2269
        %v2272 = vsel %vm1395, %v2270, %v2271
        %v2275 = vunpack.c.l.s4 1935823168
        %v2276 = vunpack.c.0.s8 %v2275
        %v2277 = vlaneseq
        %v2278 = vshrl.u32 %v2277, 7
        %v2279 = vsub.s32 %v2276, %v2278
        %v2280 = vrot.slane %v2272, %v2279
        %v2281 = vld [vmem:[#allocation16] sm:$0xff]
        %v2282 = vld [vmem:[#allocation16 + $0x8] sm:$0xff]
        %v2283 = vld [vmem:[#allocation16 + $0x10] sm:$0xff]
        %v2284 = vld [vmem:[#allocation16 + $0x18] sm:$0xff]
        %v2285 = vld [vmem:[#allocation16 + $0x20] sm:$0xff]
        %v2286 = vld [vmem:[#allocation16 + $0x28] sm:$0xff]
        %v2287 = vld [vmem:[#allocation16 + $0x30] sm:$0xff]
        %v2288 = vld [vmem:[#allocation16 + $0x38] sm:$0xff]
        %v2289 = vld [vmem:[#allocation16 + $0x40] sm:$0xff]
        %v2290 = vld [vmem:[#allocation16 + $0x48] sm:$0xff]
        %v2291 = vld [vmem:[#allocation16 + $0x50] sm:$0xff]
        %v2292 = vld [vmem:[#allocation16 + $0x58] sm:$0xff]
        %v2293 = vld [vmem:[#allocation16 + $0x60] sm:$0xff]
        %v2294 = vld [vmem:[#allocation16 + $0x68] sm:$0xff]
        %v2295 = vld [vmem:[#allocation16 + $0x70] sm:$0xff]
        %v2296 = vld [vmem:[#allocation16 + $0x78] sm:$0xff]
        %v2297 = vld [vmem:[#allocation16 + $0x80] sm:$0xff]
        %v2298 = vld [vmem:[#allocation16 + $0x88] sm:$0xff]
        %v2299 = vld [vmem:[#allocation16 + $0x90] sm:$0xff]
        %v2300 = vld [vmem:[#allocation16 + $0x98] sm:$0xff]
        %v2301 = vld [vmem:[#allocation16 + $0xa0] sm:$0xff]
        %v2302 = vld [vmem:[#allocation16 + $0xa8] sm:$0xff]
        %v2303 = vld [vmem:[#allocation16 + $0xb0] sm:$0xff]
        %v2304 = vld [vmem:[#allocation16 + $0xb8] sm:$0xff]
        %v2305 = vld [vmem:[#allocation16 + $0xc0] sm:$0xff]
        %v2306 = vld [vmem:[#allocation16 + $0xc8] sm:$0xff]
        %v2307 = vld [vmem:[#allocation16 + $0xd0] sm:$0xff]
        %v2308 = vld [vmem:[#allocation16 + $0xd8] sm:$0xff]
        %v2309 = vld [vmem:[#allocation16 + $0xe0] sm:$0xff]
        %v2310 = vld [vmem:[#allocation16 + $0xe8] sm:$0xff]
        %v2311 = vld [vmem:[#allocation16 + $0xf0] sm:$0xff]
        %v2312 = vld [vmem:[#allocation16 + $0xf8] sm:$0xff]
        %v2313 = vld [vmem:[#allocation16 + $0x100] sm:$0xff]
        %v2314 = vld [vmem:[#allocation16 + $0x108] sm:$0xff]
        %v2315 = vld [vmem:[#allocation16 + $0x110] sm:$0xff]
        %v2316 = vld [vmem:[#allocation16 + $0x118] sm:$0xff]
        %v2317 = vld [vmem:[#allocation16 + $0x120] sm:$0xff]
        %v2318 = vld [vmem:[#allocation16 + $0x128] sm:$0xff]
        %v2319 = vld [vmem:[#allocation16 + $0x130] sm:$0xff]
        %v2320 = vld [vmem:[#allocation16 + $0x138] sm:$0xff]
        %v2321 = vld [vmem:[#allocation16 + $0x140] sm:$0xff]
        %v2322 = vld [vmem:[#allocation16 + $0x148] sm:$0xff]
        %v2323 = vld [vmem:[#allocation16 + $0x150] sm:$0xff]
        %v2324 = vld [vmem:[#allocation16 + $0x158] sm:$0xff]
        %v2325 = vld [vmem:[#allocation16 + $0x160] sm:$0xff]
        %v2326 = vld [vmem:[#allocation16 + $0x168] sm:$0xff]
        %v2327 = vld [vmem:[#allocation16 + $0x170] sm:$0xff]
        %v2328 = vld [vmem:[#allocation16 + $0x178] sm:$0xff]
        %v2329 = vld [vmem:[#allocation16 + $0x180] sm:$0xff]
        %v2330 = vld [vmem:[#allocation16 + $0x188] sm:$0xff]
        %v2331 = vld [vmem:[#allocation16 + $0x190] sm:$0xff]
        %v2332 = vld [vmem:[#allocation16 + $0x198] sm:$0xff]
        %v2333 = vld [vmem:[#allocation16 + $0x1a0] sm:$0xff]
        %v2334 = vld [vmem:[#allocation16 + $0x1a8] sm:$0xff]
        %v2335 = vld [vmem:[#allocation16 + $0x1b0] sm:$0xff]
        %v2336 = vld [vmem:[#allocation16 + $0x1b8] sm:$0xff]
        %v2337 = vld [vmem:[#allocation16 + $0x1c0] sm:$0xff]
        %v2338 = vld [vmem:[#allocation16 + $0x1c8] sm:$0xff]
        %v2339 = vld [vmem:[#allocation16 + $0x1d0] sm:$0xff]
        %v2340 = vld [vmem:[#allocation16 + $0x1d8] sm:$0xff]
        %v2341 = vld [vmem:[#allocation16 + $0x1e0] sm:$0xff]
        %v2342 = vld [vmem:[#allocation16 + $0x1e8] sm:$0xff]
        %v2343 = vld [vmem:[#allocation16 + $0x1f0] sm:$0xff]
        %v2344 = vld [vmem:[#allocation16 + $0x1f8] sm:$0xff]
        %v2345 = vld [vmem:[#allocation16 + $0x200] sm:$0xff]
        %v2346 = vld [vmem:[#allocation16 + $0x208] sm:$0xff]
        %v2347 = vld [vmem:[#allocation16 + $0x210] sm:$0xff]
        %v2348 = vld [vmem:[#allocation16 + $0x218] sm:$0xff]
        %v2349 = vld [vmem:[#allocation16 + $0x220] sm:$0xff]
        %v2350 = vld [vmem:[#allocation16 + $0x228] sm:$0xff]
        %v2351 = vld [vmem:[#allocation16 + $0x230] sm:$0xff]
        %v2352 = vld [vmem:[#allocation16 + $0x238] sm:$0xff]
        %v2353 = vld [vmem:[#allocation16 + $0x240] sm:$0xff]
        %v2354 = vld [vmem:[#allocation16 + $0x248] sm:$0xff]
        %v2355 = vld [vmem:[#allocation16 + $0x250] sm:$0xff]
        %v2356 = vld [vmem:[#allocation16 + $0x258] sm:$0xff]
        %v2357 = vld [vmem:[#allocation16 + $0x260] sm:$0xff]
        %v2358 = vld [vmem:[#allocation16 + $0x268] sm:$0xff]
        %v2359 = vld [vmem:[#allocation16 + $0x270] sm:$0xff]
        %v2360 = vld [vmem:[#allocation16 + $0x278] sm:$0xff]
        %v2361 = vld [vmem:[#allocation16 + $0x280] sm:$0xff]
        %v2362 = vld [vmem:[#allocation16 + $0x288] sm:$0xff]
        %v2363 = vld [vmem:[#allocation16 + $0x290] sm:$0xff]
        %v2364 = vld [vmem:[#allocation16 + $0x298] sm:$0xff]
        %v2365 = vld [vmem:[#allocation16 + $0x2a0] sm:$0xff]
        %v2366 = vld [vmem:[#allocation16 + $0x2a8] sm:$0xff]
        %v2367 = vld [vmem:[#allocation16 + $0x2b0] sm:$0xff]
        %v2368 = vld [vmem:[#allocation16 + $0x2b8] sm:$0xff]
        %v2369 = vld [vmem:[#allocation16 + $0x2c0] sm:$0xff]
        %v2370 = vld [vmem:[#allocation16 + $0x2c8] sm:$0xff]
        %v2371 = vld [vmem:[#allocation16 + $0x2d0] sm:$0xff]
        %v2372 = vld [vmem:[#allocation16 + $0x2d8] sm:$0xff]
        %v2373 = vld [vmem:[#allocation16 + $0x2e0] sm:$0xff]
        %v2374 = vld [vmem:[#allocation16 + $0x2e8] sm:$0xff]
        %v2375 = vld [vmem:[#allocation16 + $0x2f0] sm:$0xff]
        %v2376 = vld [vmem:[#allocation16 + $0x2f8] sm:$0xff]
        %v2377 = vld [vmem:[#allocation16 + $0x300] sm:$0xff]
        %v2378 = vld [vmem:[#allocation16 + $0x308] sm:$0xff]
        %v2379 = vld [vmem:[#allocation16 + $0x310] sm:$0xff]
        %v2380 = vld [vmem:[#allocation16 + $0x318] sm:$0xff]
        %v2381 = vld [vmem:[#allocation16 + $0x320] sm:$0xff]
        %v2382 = vld [vmem:[#allocation16 + $0x328] sm:$0xff]
        %v2383 = vld [vmem:[#allocation16 + $0x330] sm:$0xff]
        %v2384 = vld [vmem:[#allocation16 + $0x338] sm:$0xff]
        %v2385 = vld [vmem:[#allocation16 + $0x340] sm:$0xff]
        %v2386 = vld [vmem:[#allocation16 + $0x348] sm:$0xff]
        %v2387 = vld [vmem:[#allocation16 + $0x350] sm:$0xff]
        %v2388 = vld [vmem:[#allocation16 + $0x358] sm:$0xff]
        %v2389 = vld [vmem:[#allocation16 + $0x360] sm:$0xff]
        %v2390 = vld [vmem:[#allocation16 + $0x368] sm:$0xff]
        %v2391 = vld [vmem:[#allocation16 + $0x370] sm:$0xff]
        %v2392 = vld [vmem:[#allocation16 + $0x378] sm:$0xff]
        %v2393 = vld [vmem:[#allocation16 + $0x380] sm:$0xff]
        %v2394 = vld [vmem:[#allocation16 + $0x388] sm:$0xff]
        %v2395 = vld [vmem:[#allocation16 + $0x390] sm:$0xff]
        %v2396 = vld [vmem:[#allocation16 + $0x398] sm:$0xff]
        %v2397 = vld [vmem:[#allocation16 + $0x3a0] sm:$0xff]
        %v2398 = vld [vmem:[#allocation16 + $0x3a8] sm:$0xff]
        %v2399 = vld [vmem:[#allocation16 + $0x3b0] sm:$0xff]
        %v2400 = vld [vmem:[#allocation16 + $0x3b8] sm:$0xff]
        %v2401 = vld [vmem:[#allocation16 + $0x3c0] sm:$0xff]
        %v2402 = vld [vmem:[#allocation16 + $0x3c8] sm:$0xff]
        %v2403 = vld [vmem:[#allocation16 + $0x3d0] sm:$0xff]
        %v2404 = vld [vmem:[#allocation16 + $0x3d8] sm:$0xff]
        %v2405 = vld [vmem:[#allocation16 + $0x3e0] sm:$0xff]
        %v2406 = vld [vmem:[#allocation16 + $0x3e8] sm:$0xff]
        %v2407 = vld [vmem:[#allocation16 + $0x3f0] sm:$0xff]
        %v2408 = vld [vmem:[#allocation16 + $0x3f8] sm:$0xff]
        %v2409 = vld [vmem:[#allocation17] sm:$0x1]
        %v2411 = vlaneseq
        %v2412 = vshrl.u32 %v2411, 7
        %v2413 = vsub.s32 0, %v2412
        %v2414 = vrot.slane %v2280, %v2413
        %v2415 = vlaneseq
        %v2416 = vshrl.u32 %v2415, 7
        %v2417 = vsub.s32 1, %v2416
        %v2418 = vrot.slane %v2280, %v2417
        %v2419 = vlaneseq
        %v2420 = vshrl.u32 %v2419, 7
        %v2421 = vsub.s32 2, %v2420
        %v2422 = vrot.slane %v2280, %v2421
        %v2423 = vlaneseq
        %v2424 = vshrl.u32 %v2423, 7
        %v2425 = vsub.s32 3, %v2424
        %v2426 = vrot.slane %v2280, %v2425
        %v2427 = vlaneseq
        %v2428 = vshrl.u32 %v2427, 7
        %v2429 = vsub.s32 4, %v2428
        %v2430 = vrot.slane %v2280, %v2429
        %v2431 = vlaneseq
        %v2432 = vshrl.u32 %v2431, 7
        %v2433 = vsub.s32 5, %v2432
        %v2434 = vrot.slane %v2280, %v2433
        %v2435 = vlaneseq
        %v2436 = vshrl.u32 %v2435, 7
        %v2437 = vsub.s32 6, %v2436
        %v2438 = vrot.slane %v2280, %v2437
        %v2439 = vlaneseq
        %v2440 = vshrl.u32 %v2439, 7
        %v2441 = vsub.s32 7, %v2440
        %v2442 = vrot.slane %v2280, %v2441
        %2451 = vmatprep.subr.mxu0 0.0
        %2452 = vmatpush1.msra.mxu0 %v2281
        %2453 = vmatprep.subr.mxu0 0.0
        %2454 = vmatpush1.msra.mxu0 %v2282
        %2455 = vmatprep.subr.mxu0 0.0
        %2456 = vmatpush1.msra.mxu0 %v2283
        %2457 = vmatprep.subr.mxu0 0.0
        %2458 = vmatpush1.msra.mxu0 %v2284
        %2459 = vmatprep.subr.mxu0 0.0
        %2460 = vmatpush1.msra.mxu0 %v2285
        %2461 = vmatprep.subr.mxu0 0.0
        %2462 = vmatpush1.msra.mxu0 %v2286
        %2463 = vmatprep.subr.mxu0 0.0
        %2464 = vmatpush1.msra.mxu0 %v2287
        %2465 = vmatprep.subr.mxu0 0.0
        %2466 = vmatpush1.msra.mxu0 %v2288
        %2467 = vmatprep.subr.mxu0 0.0
        %2468 = vmatpush1.msra.mxu0 %v2289
        %2469 = vmatprep.subr.mxu0 0.0
        %2470 = vmatpush1.msra.mxu0 %v2290
        %2471 = vmatprep.subr.mxu0 0.0
        %2472 = vmatpush1.msra.mxu0 %v2291
        %2473 = vmatprep.subr.mxu0 0.0
        %2474 = vmatpush1.msra.mxu0 %v2292
        %2475 = vmatprep.subr.mxu0 0.0
        %2476 = vmatpush1.msra.mxu0 %v2293
        %2477 = vmatprep.subr.mxu0 0.0
        %2478 = vmatpush1.msra.mxu0 %v2294
        %2479 = vmatprep.subr.mxu0 0.0
        %2480 = vmatpush1.msra.mxu0 %v2295
        %2481 = vmatprep.subr.mxu0 0.0
        %2482 = vmatpush1.msra.mxu0 %v2296
        %2483 = vmatprep.subr.mxu0 0.0
        %2484 = vmatpush1.msra.mxu0 %v2297
        %2485 = vmatprep.subr.mxu0 0.0
        %2486 = vmatpush1.msra.mxu0 %v2298
        %2487 = vmatprep.subr.mxu0 0.0
        %2488 = vmatpush1.msra.mxu0 %v2299
        %2489 = vmatprep.subr.mxu0 0.0
        %2490 = vmatpush1.msra.mxu0 %v2300
        %2491 = vmatprep.subr.mxu0 0.0
        %2492 = vmatpush1.msra.mxu0 %v2301
        %2493 = vmatprep.subr.mxu0 0.0
        %2494 = vmatpush1.msra.mxu0 %v2302
        %2495 = vmatprep.subr.mxu0 0.0
        %2496 = vmatpush1.msra.mxu0 %v2303
        %2497 = vmatprep.subr.mxu0 0.0
        %2498 = vmatpush1.msra.mxu0 %v2304
        %2499 = vmatprep.subr.mxu0 0.0
        %2500 = vmatpush1.msra.mxu0 %v2305
        %2501 = vmatprep.subr.mxu0 0.0
        %2502 = vmatpush1.msra.mxu0 %v2306
        %2503 = vmatprep.subr.mxu0 0.0
        %2504 = vmatpush1.msra.mxu0 %v2307
        %2505 = vmatprep.subr.mxu0 0.0
        %2506 = vmatpush1.msra.mxu0 %v2308
        %2507 = vmatprep.subr.mxu0 0.0
        %2508 = vmatpush1.msra.mxu0 %v2309
        %2509 = vmatprep.subr.mxu0 0.0
        %2510 = vmatpush1.msra.mxu0 %v2310
        %2511 = vmatprep.subr.mxu0 0.0
        %2512 = vmatpush1.msra.mxu0 %v2311
        %2513 = vmatprep.subr.mxu0 0.0
        %2514 = vmatpush1.msra.mxu0 %v2312
        %2515 = vmatprep.mubr.f32.mxu0 %v2418
        %2516 = vmatmul.mubr.f32.gmra.mrb[0].mxu0 %v2414
        %v2517 = vpop.f32.mrb[0].mxu0
        %v2518 = vadd.f32 %v2409, %v2517
        %v2519 = vpop.f32.mrb[0].mxu0
        %2520 = vdwg.mxu0
        %2521 = vmatprep.subr.mxu0 0.0
        %2522 = vmatpush1.msra.mxu0 %v2313
        %2523 = vmatprep.subr.mxu0 0.0
        %2524 = vmatpush1.msra.mxu0 %v2314
        %2525 = vmatprep.subr.mxu0 0.0
        %2526 = vmatpush1.msra.mxu0 %v2315
        %2527 = vmatprep.subr.mxu0 0.0
        %2528 = vmatpush1.msra.mxu0 %v2316
        %2529 = vmatprep.subr.mxu0 0.0
        %2530 = vmatpush1.msra.mxu0 %v2317
        %2531 = vmatprep.subr.mxu0 0.0
        %2532 = vmatpush1.msra.mxu0 %v2318
        %2533 = vmatprep.subr.mxu0 0.0
        %2534 = vmatpush1.msra.mxu0 %v2319
        %2535 = vmatprep.subr.mxu0 0.0
        %2536 = vmatpush1.msra.mxu0 %v2320
        %2537 = vmatprep.subr.mxu0 0.0
        %2538 = vmatpush1.msra.mxu0 %v2321
        %2539 = vmatprep.subr.mxu0 0.0
        %2540 = vmatpush1.msra.mxu0 %v2322
        %2541 = vmatprep.subr.mxu0 0.0
        %2542 = vmatpush1.msra.mxu0 %v2323
        %2543 = vmatprep.subr.mxu0 0.0
        %2544 = vmatpush1.msra.mxu0 %v2324
        %2545 = vmatprep.subr.mxu0 0.0
        %2546 = vmatpush1.msra.mxu0 %v2325
        %2547 = vmatprep.subr.mxu0 0.0
        %2548 = vmatpush1.msra.mxu0 %v2326
        %2549 = vmatprep.subr.mxu0 0.0
        %2550 = vmatpush1.msra.mxu0 %v2327
        %2551 = vmatprep.subr.mxu0 0.0
        %2552 = vmatpush1.msra.mxu0 %v2328
        %2553 = vmatprep.subr.mxu0 0.0
        %2554 = vmatpush1.msra.mxu0 %v2329
        %2555 = vmatprep.subr.mxu0 0.0
        %2556 = vmatpush1.msra.mxu0 %v2330
        %2557 = vmatprep.subr.mxu0 0.0
        %2558 = vmatpush1.msra.mxu0 %v2331
        %2559 = vmatprep.subr.mxu0 0.0
        %2560 = vmatpush1.msra.mxu0 %v2332
        %2561 = vmatprep.subr.mxu0 0.0
        %2562 = vmatpush1.msra.mxu0 %v2333
        %2563 = vmatprep.subr.mxu0 0.0
        %2564 = vmatpush1.msra.mxu0 %v2334
        %2565 = vmatprep.subr.mxu0 0.0
        %2566 = vmatpush1.msra.mxu0 %v2335
        %2567 = vmatprep.subr.mxu0 0.0
        %2568 = vmatpush1.msra.mxu0 %v2336
        %2569 = vmatprep.subr.mxu0 0.0
        %2570 = vmatpush1.msra.mxu0 %v2337
        %2571 = vmatprep.subr.mxu0 0.0
        %2572 = vmatpush1.msra.mxu0 %v2338
        %2573 = vmatprep.subr.mxu0 0.0
        %2574 = vmatpush1.msra.mxu0 %v2339
        %2575 = vmatprep.subr.mxu0 0.0
        %2576 = vmatpush1.msra.mxu0 %v2340
        %2577 = vmatprep.subr.mxu0 0.0
        %2578 = vmatpush1.msra.mxu0 %v2341
        %2579 = vmatprep.subr.mxu0 0.0
        %2580 = vmatpush1.msra.mxu0 %v2342
        %2581 = vmatprep.subr.mxu0 0.0
        %2582 = vmatpush1.msra.mxu0 %v2343
        %2583 = vmatprep.subr.mxu0 0.0
        %2584 = vmatpush1.msra.mxu0 %v2344
        %2585 = vmatprep.mubr.f32.mxu0 %v2426
        %2586 = vmatmul.mubr.f32.gmra.mrb[0].mxu0 %v2422
        %v2587 = vpop.f32.mrb[0].mxu0
        %v2588 = vadd.f32 %v2518, %v2587
        %v2589 = vpop.f32.mrb[0].mxu0
        %2590 = vdwg.mxu0
        %2591 = vmatprep.subr.mxu0 0.0
        %2592 = vmatpush1.msra.mxu0 %v2345
        %2593 = vmatprep.subr.mxu0 0.0
        %2594 = vmatpush1.msra.mxu0 %v2346
        %2595 = vmatprep.subr.mxu0 0.0
        %2596 = vmatpush1.msra.mxu0 %v2347
        %2597 = vmatprep.subr.mxu0 0.0
        %2598 = vmatpush1.msra.mxu0 %v2348
        %2599 = vmatprep.subr.mxu0 0.0
        %2600 = vmatpush1.msra.mxu0 %v2349
        %2601 = vmatprep.subr.mxu0 0.0
        %2602 = vmatpush1.msra.mxu0 %v2350
        %2603 = vmatprep.subr.mxu0 0.0
        %2604 = vmatpush1.msra.mxu0 %v2351
        %2605 = vmatprep.subr.mxu0 0.0
        %2606 = vmatpush1.msra.mxu0 %v2352
        %2607 = vmatprep.subr.mxu0 0.0
        %2608 = vmatpush1.msra.mxu0 %v2353
        %2609 = vmatprep.subr.mxu0 0.0
        %2610 = vmatpush1.msra.mxu0 %v2354
        %2611 = vmatprep.subr.mxu0 0.0
        %2612 = vmatpush1.msra.mxu0 %v2355
        %2613 = vmatprep.subr.mxu0 0.0
        %2614 = vmatpush1.msra.mxu0 %v2356
        %2615 = vmatprep.subr.mxu0 0.0
        %2616 = vmatpush1.msra.mxu0 %v2357
        %2617 = vmatprep.subr.mxu0 0.0
        %2618 = vmatpush1.msra.mxu0 %v2358
        %2619 = vmatprep.subr.mxu0 0.0
        %2620 = vmatpush1.msra.mxu0 %v2359
        %2621 = vmatprep.subr.mxu0 0.0
        %2622 = vmatpush1.msra.mxu0 %v2360
        %2623 = vmatprep.subr.mxu0 0.0
        %2624 = vmatpush1.msra.mxu0 %v2361
        %2625 = vmatprep.subr.mxu0 0.0
        %2626 = vmatpush1.msra.mxu0 %v2362
        %2627 = vmatprep.subr.mxu0 0.0
        %2628 = vmatpush1.msra.mxu0 %v2363
        %2629 = vmatprep.subr.mxu0 0.0
        %2630 = vmatpush1.msra.mxu0 %v2364
        %2631 = vmatprep.subr.mxu0 0.0
        %2632 = vmatpush1.msra.mxu0 %v2365
        %2633 = vmatprep.subr.mxu0 0.0
        %2634 = vmatpush1.msra.mxu0 %v2366
        %2635 = vmatprep.subr.mxu0 0.0
        %2636 = vmatpush1.msra.mxu0 %v2367
        %2637 = vmatprep.subr.mxu0 0.0
        %2638 = vmatpush1.msra.mxu0 %v2368
        %2639 = vmatprep.subr.mxu0 0.0
        %2640 = vmatpush1.msra.mxu0 %v2369
        %2641 = vmatprep.subr.mxu0 0.0
        %2642 = vmatpush1.msra.mxu0 %v2370
        %2643 = vmatprep.subr.mxu0 0.0
        %2644 = vmatpush1.msra.mxu0 %v2371
        %2645 = vmatprep.subr.mxu0 0.0
        %2646 = vmatpush1.msra.mxu0 %v2372
        %2647 = vmatprep.subr.mxu0 0.0
        %2648 = vmatpush1.msra.mxu0 %v2373
        %2649 = vmatprep.subr.mxu0 0.0
        %2650 = vmatpush1.msra.mxu0 %v2374
        %2651 = vmatprep.subr.mxu0 0.0
        %2652 = vmatpush1.msra.mxu0 %v2375
        %2653 = vmatprep.subr.mxu0 0.0
        %2654 = vmatpush1.msra.mxu0 %v2376
        %2655 = vmatprep.mubr.f32.mxu0 %v2434
        %2656 = vmatmul.mubr.f32.gmra.mrb[0].mxu0 %v2430
        %v2657 = vpop.f32.mrb[0].mxu0
        %v2658 = vadd.f32 %v2588, %v2657
        %v2659 = vpop.f32.mrb[0].mxu0
        %2660 = vdwg.mxu0
        %2661 = vmatprep.subr.mxu0 0.0
        %2662 = vmatpush1.msra.mxu0 %v2377
        %2663 = vmatprep.subr.mxu0 0.0
        %2664 = vmatpush1.msra.mxu0 %v2378
        %2665 = vmatprep.subr.mxu0 0.0
        %2666 = vmatpush1.msra.mxu0 %v2379
        %2667 = vmatprep.subr.mxu0 0.0
        %2668 = vmatpush1.msra.mxu0 %v2380
        %2669 = vmatprep.subr.mxu0 0.0
        %2670 = vmatpush1.msra.mxu0 %v2381
        %2671 = vmatprep.subr.mxu0 0.0
        %2672 = vmatpush1.msra.mxu0 %v2382
        %2673 = vmatprep.subr.mxu0 0.0
        %2674 = vmatpush1.msra.mxu0 %v2383
        %2675 = vmatprep.subr.mxu0 0.0
        %2676 = vmatpush1.msra.mxu0 %v2384
        %2677 = vmatprep.subr.mxu0 0.0
        %2678 = vmatpush1.msra.mxu0 %v2385
        %2679 = vmatprep.subr.mxu0 0.0
        %2680 = vmatpush1.msra.mxu0 %v2386
        %2681 = vmatprep.subr.mxu0 0.0
        %2682 = vmatpush1.msra.mxu0 %v2387
        %2683 = vmatprep.subr.mxu0 0.0
        %2684 = vmatpush1.msra.mxu0 %v2388
        %2685 = vmatprep.subr.mxu0 0.0
        %2686 = vmatpush1.msra.mxu0 %v2389
        %2687 = vmatprep.subr.mxu0 0.0
        %2688 = vmatpush1.msra.mxu0 %v2390
        %2689 = vmatprep.subr.mxu0 0.0
        %2690 = vmatpush1.msra.mxu0 %v2391
        %2691 = vmatprep.subr.mxu0 0.0
        %2692 = vmatpush1.msra.mxu0 %v2392
        %2693 = vmatprep.subr.mxu0 0.0
        %2694 = vmatpush1.msra.mxu0 %v2393
        %2695 = vmatprep.subr.mxu0 0.0
        %2696 = vmatpush1.msra.mxu0 %v2394
        %2697 = vmatprep.subr.mxu0 0.0
        %2698 = vmatpush1.msra.mxu0 %v2395
        %2699 = vmatprep.subr.mxu0 0.0
        %2700 = vmatpush1.msra.mxu0 %v2396
        %2701 = vmatprep.subr.mxu0 0.0
        %2702 = vmatpush1.msra.mxu0 %v2397
        %2703 = vmatprep.subr.mxu0 0.0
        %2704 = vmatpush1.msra.mxu0 %v2398
        %2705 = vmatprep.subr.mxu0 0.0
        %2706 = vmatpush1.msra.mxu0 %v2399
        %2707 = vmatprep.subr.mxu0 0.0
        %2708 = vmatpush1.msra.mxu0 %v2400
        %2709 = vmatprep.subr.mxu0 0.0
        %2710 = vmatpush1.msra.mxu0 %v2401
        %2711 = vmatprep.subr.mxu0 0.0
        %2712 = vmatpush1.msra.mxu0 %v2402
        %2713 = vmatprep.subr.mxu0 0.0
        %2714 = vmatpush1.msra.mxu0 %v2403
        %2715 = vmatprep.subr.mxu0 0.0
        %2716 = vmatpush1.msra.mxu0 %v2404
        %2717 = vmatprep.subr.mxu0 0.0
        %2718 = vmatpush1.msra.mxu0 %v2405
        %2719 = vmatprep.subr.mxu0 0.0
        %2720 = vmatpush1.msra.mxu0 %v2406
        %2721 = vmatprep.subr.mxu0 0.0
        %2722 = vmatpush1.msra.mxu0 %v2407
        %2723 = vmatprep.subr.mxu0 0.0
        %2724 = vmatpush1.msra.mxu0 %v2408
        %2725 = vmatprep.mubr.f32.mxu0 %v2442
        %2726 = vmatmul.mubr.f32.gmra.mrb[0].mxu0 %v2438
        %v2727 = vpop.f32.mrb[0].mxu0
        %v2728 = vadd.f32 %v2658, %v2727
        %v2729 = vpop.f32.mrb[0].mxu0
        %2730 = vdwg.mxu0
        %v2731 = vmax.f32 %v2728, 0.0
        %v2732 = vld [vmem:[%s15] sm:$0xff]
        %v2733 = vld [vmem:[%s15 + $0x8] sm:$0xff]
        %v2734 = vld [vmem:[%s15 + $0x10] sm:$0xff]
        %v2735 = vld [vmem:[%s15 + $0x18] sm:$0xff]
        %v2736 = vld [vmem:[%s15 + $0x20] sm:$0xff]
        %v2737 = vld [vmem:[%s15 + $0x28] sm:$0xff]
        %v2738 = vld [vmem:[%s15 + $0x30] sm:$0xff]
        %v2739 = vld [vmem:[%s15 + $0x38] sm:$0xff]
        %v2740 = vld [vmem:[%s15 + $0x40] sm:$0xff]
        %v2741 = vld [vmem:[%s15 + $0x48] sm:$0xff]
        %v2742 = vld [vmem:[%s15 + $0x50] sm:$0xff]
        %v2743 = vld [vmem:[%s15 + $0x58] sm:$0xff]
        %v2744 = vld [vmem:[%s15 + $0x60] sm:$0xff]
        %v2745 = vld [vmem:[%s15 + $0x68] sm:$0xff]
        %v2746 = vld [vmem:[%s15 + $0x70] sm:$0xff]
        %v2747 = vld [vmem:[%s15 + $0x78] sm:$0xff]
        %v2748 = vld [vmem:[#allocation19] sm:$0x1]
        %2749 = vmatprep.subr.mxu0 0.0
        %2750 = vmatpush1.msra.mxu0 %v2732
        %2751 = vmatprep.subr.mxu0 0.0
        %2752 = vmatpush1.msra.mxu0 %v2733
        %2753 = vmatprep.subr.mxu0 0.0
        %2754 = vmatpush1.msra.mxu0 %v2734
        %2755 = vmatprep.subr.mxu0 0.0
        %2756 = vmatpush1.msra.mxu0 %v2735
        %2757 = vmatprep.subr.mxu0 0.0
        %2758 = vmatpush1.msra.mxu0 %v2736
        %2759 = vmatprep.subr.mxu0 0.0
        %2760 = vmatpush1.msra.mxu0 %v2737
        %2761 = vmatprep.subr.mxu0 0.0
        %2762 = vmatpush1.msra.mxu0 %v2738
        %2763 = vmatprep.subr.mxu0 0.0
        %2764 = vmatpush1.msra.mxu0 %v2739
        %2765 = vmatprep.subr.mxu0 0.0
        %2766 = vmatpush1.msra.mxu0 %v2740
        %2767 = vmatprep.subr.mxu0 0.0
        %2768 = vmatpush1.msra.mxu0 %v2741
        %2769 = vmatprep.subr.mxu0 0.0
        %2770 = vmatpush1.msra.mxu0 %v2742
        %2771 = vmatprep.subr.mxu0 0.0
        %2772 = vmatpush1.msra.mxu0 %v2743
        %2773 = vmatprep.subr.mxu0 0.0
        %2774 = vmatpush1.msra.mxu0 %v2744
        %2775 = vmatprep.subr.mxu0 0.0
        %2776 = vmatpush1.msra.mxu0 %v2745
        %2777 = vmatprep.subr.mxu0 0.0
        %2778 = vmatpush1.msra.mxu0 %v2746
        %2779 = vmatprep.subr.mxu0 0.0
        %2780 = vmatpush1.msra.mxu0 %v2747
        %2781 = vmatprep.subr.mxu0 0.0
        %2782 = vmatpush1.msra.mxu0 0.0
        %2783 = vmatprep.subr.mxu0 0.0
        %2784 = vmatpush1.msra.mxu0 0.0
        %2785 = vmatprep.subr.mxu0 0.0
        %2786 = vmatpush1.msra.mxu0 0.0
        %2787 = vmatprep.subr.mxu0 0.0
        %2788 = vmatpush1.msra.mxu0 0.0
        %2789 = vmatprep.subr.mxu0 0.0
        %2790 = vmatpush1.msra.mxu0 0.0
        %2791 = vmatprep.subr.mxu0 0.0
        %2792 = vmatpush1.msra.mxu0 0.0
        %2793 = vmatprep.subr.mxu0 0.0
        %2794 = vmatpush1.msra.mxu0 0.0
        %2795 = vmatprep.subr.mxu0 0.0
        %2796 = vmatpush1.msra.mxu0 0.0
        %2797 = vmatprep.subr.mxu0 0.0
        %2798 = vmatpush1.msra.mxu0 0.0
        %2799 = vmatprep.subr.mxu0 0.0
        %2800 = vmatpush1.msra.mxu0 0.0
        %2801 = vmatprep.subr.mxu0 0.0
        %2802 = vmatpush1.msra.mxu0 0.0
        %2803 = vmatprep.subr.mxu0 0.0
        %2804 = vmatpush1.msra.mxu0 0.0
        %2805 = vmatprep.subr.mxu0 0.0
        %2806 = vmatpush1.msra.mxu0 0.0
        %2807 = vmatprep.subr.mxu0 0.0
        %2808 = vmatpush1.msra.mxu0 0.0
        %2809 = vmatprep.subr.mxu0 0.0
        %2810 = vmatpush1.msra.mxu0 0.0
        %2811 = vmatprep.subr.mxu0 0.0
        %2812 = vmatpush1.msra.mxu0 0.0
        %2813 = vmatprep.mubr.f32.mxu0 0.0
        %2814 = vmatmul.mubr.f32.gmra.mrb[0].mxu0 %v2731
        %v2815 = vpop.f32.mrb[0].mxu0
        %v2816 = vadd.f32 %v2748, %v2815
        %v2817 = vpop.f32.mrb[0].mxu0
        %2818 = vdwg.mxu0
        %2819 = vst [vmem:[%s693] sm:$0x1] %v2816
        %s2820 = sand.u32 %s407, 1
        %s2821 = scalar_lea.sflag [#allocation4], %s2820
        %s2822 = sand.u32 %s407, 1
        %s2823 = scalar_lea.vmem [#allocation20], %s2822
        // Predicated region
        $region133: #{cnn_forward.1} parent=87 // pred_check
          %p2824 = pneg %p417
        $region134: #{cnn_forward.1} parent=87 // pred_check_branch
          %2826 = sbr.rel (%p2824) target = $region136
        $region135: #{cnn_forward.1} parent=87 // pred_region
          %s2828 = ssub.s32 16, 16
          %2829 = vsyncadd %s2821, %s2828
          %s2830 = smul.addr %s37, 16
          %s2831 = scalar_lea.hbm %s17, %s2830
          %s2833 = sshll.u32 %s2823, 4
          %s2834 = int_to_ptr.vmem [resolvable:$true] %s2833
          %2836 = dma.vmem_to_hbm [thread:$0]  %s2834, 16, %s2831, %s2821
        $region136: #{cnn_forward.1} parent=87 // pred_fallthru
          _
      $region88: #{cnn_forward.1} parent=5 // pred_fallthru
        _
      %p2837 = scmp.le.s32.totalorder 2, %s32
      // Predicated region
      $region137: #{cnn_forward.1} parent=5 // pred_check
        %p2838 = pneg %p2837
      $region138: #{cnn_forward.1} parent=5 // pred_check_branch
        %2840 = sbr.rel (%p2838) target = $region140
      $region139: #{cnn_forward.1} parent=5 // pred_region
        %s2841 = ssub.s32 %s32, 2
        // Predicated region
        $region141: #{cnn_forward.1} parent=139 // pred_check
          %p2842 = pneg %p423
        $region142: #{cnn_forward.1} parent=139 // pred_check_branch
          %2844 = sbr.rel (%p2842) target = $region144
        $region143: #{cnn_forward.1} parent=139 // pred_region
          %s2845 = sand.u32 %s408, 1
          %s2846 = scalar_lea.sflag [#allocation4], %s2845
          %s2847 = sand.u32 %s408, 1
          %s2848 = scalar_lea.vmem [#allocation20], %s2847
          %2849 = dma.done %s2846, 16
        $region144: #{cnn_forward.1} parent=139 // pred_fallthru
          _
      $region140: #{cnn_forward.1} parent=5 // pred_fallthru
        _
    $region6: #{cnn_forward.1} parent=1 // loop_footer
      %s36 = sadd.s32 1, %s32
    $region7: #{cnn_forward.1} parent=1 // loop_footer_branch
      %31 = sbr.rel target = $region3
    $region8: #{cnn_forward.1} parent=1 // loop_exit
      _
    %2850 = vsyncpa [#allocation3], 1
    %s2851 = scalar_lea.sflag [#allocation3], 1
    %2852 = vsyncpa %s2851, 1
    %2853 = vsyncpa [#allocation6], 1
    %2854 = vsyncpa [#allocation9], 1
    %2855 = vsyncpa [#allocation12], 1
    %2856 = vsyncpa [#allocation15], 1
    %2857 = vsyncpa [#allocation18], 1
    %2858 = vsyncpa [#allocation4], 1
    %s2859 = scalar_lea.sflag [#allocation4], 1
    %2860 = vsyncpa %s2859, 1

</llo_original>
